<compile_context>
chip_gen: v7x
topology: tpu7x:2x2x1
jax: 0.10.0
libtpu: 0.0.40
codegen_flags: <defaults>
</compile_context>

<pallas_src>
import jax
import jax.numpy as jnp
from jax import lax
from jax.experimental import pallas as pl
from jax.experimental.pallas import tpu as pltpu


def _fold_bn(gamma, beta, mean, var, eps=1e-5):
    # NOTE: eps must match the reference BatchNorm eps (PyTorch default 1e-5);
    # eval-mode running statistics are what get folded.
    scale = gamma / jnp.sqrt(var + eps)
    return scale, beta - mean * scale


def _vmem_limit_bytes():
    # Scale the scoped-VMEM cap with the generation: 128 MiB physical
    # (v5e/v6e) -> ~76 MiB, 64 MiB physical (v7x) -> ~38 MiB, clamped.
    try:
        phys = getattr(pltpu.get_tpu_info(), "vmem_capacity_bytes", None)
    except Exception:
        phys = None
    if not phys:
        return 32 * 1024 * 1024
    return int(max(32 * 1024 * 1024, min(96 * 1024 * 1024, (phys * 3) // 5)))


# ---------------------------------------------------------------------------
# Fused MBConv kernel: expand + depthwise + SE + project, one image per step.
# ---------------------------------------------------------------------------
def _make_mbconv_kernel(*, has_expand, ksize, stride, pad, lpad,
                        H, W, Ho, Wo, Cin, Cexp, Cout, mxu_dtype):
    Hbuf = H + 2 * pad
    Wbuf = W + 2 * lpad
    r0 = lpad + (W // 8) * 8          # 8-aligned start of the right halo zero

    def kernel(*refs):
        if has_expand:
            (x_ref, ew_ref, es_ref, eb_ref,
             dww_ref, dws_ref, dwb_ref,
             w1_ref, b1_ref, w2_ref, b2_ref,
             pw_ref, ps_ref, pb_ref,
             o_ref, xpad_ref) = refs
        else:
            (x_ref,
             dww_ref, dws_ref, dwb_ref,
             w1_ref, b1_ref, w2_ref, b2_ref,
             pw_ref, ps_ref, pb_ref,
             o_ref, xpad_ref) = refs

        C = Cexp

        # ---- zero ONLY the halo of the padding scratch (interior is fully
        # overwritten below).  Not gated by pl.when(pid == 0): with a
        # "parallel" grid the second TensorCore never executes pid 0, so
        # per-step halo zeroing is the megacore-safe way to kill the previous
        # full Hbuf x Wbuf x C store pass.  All stores are tile-aligned.
        if pad > 0:
            zrow = jnp.zeros((pad, Wbuf, C), xpad_ref.dtype)
            xpad_ref[0:pad, :, :] = zrow                       # top rows
            xpad_ref[pad + H:Hbuf, :, :] = zrow                # bottom rows
            xpad_ref[:, 0:lpad, :] = jnp.zeros((Hbuf, lpad, C), xpad_ref.dtype)
            xpad_ref[:, r0:Wbuf, :] = jnp.zeros((Hbuf, Wbuf - r0, C),
                                                xpad_ref.dtype)

        # ---- expand 1x1 conv (MXU, bf16 operands, f32 acc) + BN + Swish,
        # written straight into the padded VMEM scratch: the expand output
        # never round-trips through HBM.
        if has_expand:
            xin = x_ref[0].reshape(H * W, Cin)
            xe = jnp.dot(xin.astype(mxu_dtype), ew_ref[...],
                         preferred_element_type=jnp.float32)
            xe = xe * es_ref[...] + eb_ref[...]                # folded BN (f32)
            xe = xe * jax.nn.sigmoid(xe)                       # Swish (f32)
            xpad_ref[pad:pad + H, lpad:lpad + W, :] = (
                xe.reshape(H, W, C).astype(xpad_ref.dtype))
        else:
            xpad_ref[pad:pad + H, lpad:lpad + W, :] = (
                x_ref[0].astype(xpad_ref.dtype))

        # ---- depthwise kxk conv + folded BN + Swish (f32 accumulation) ----
        wv = dww_ref[...]                                      # (k, k, C) f32
        xp = xpad_ref[...].astype(jnp.float32)                 # (Hbuf,Wbuf,C)
        acc = jnp.zeros((Ho, Wo, C), jnp.float32)
        if stride == 1:
            # TODO(synk): derive the kw-shifted views from one slab per kh
            # with pltpu.roll (XLU) to cut vld pressure from k^2 to k loads.
            for kh in range(ksize):
                for kw in range(ksize):
                    w0 = lpad - pad + kw
                    patch = xp[kh:kh + Ho, w0:w0 + Wo, :]
                    acc = acc + patch * wv[kh, kw, :]
        else:
            # TODO(synk): stride > 1 -- pre-split W into even/odd phases at
            # staging time so every tap slice is contiguous, instead of a
            # strided sublane slice (XLU relayout) per tap.
            for kh in range(ksize):
                for kw in range(ksize):
                    w0 = lpad - pad + kw
                    patch = lax.slice(
                        xp, (kh, w0, 0),
                        (kh + (Ho - 1) * stride + 1,
                         w0 + (Wo - 1) * stride + 1, C),
                        (stride, stride, 1))
                    acc = acc + patch * wv[kh, kw, :]

        y = acc * dws_ref[...] + dwb_ref[...]                  # folded BN
        y = y * jax.nn.sigmoid(y)                              # Swish

        # ---- fused Squeeze-Excitation (per image) ----
        pooled = jnp.sum(jnp.sum(y, axis=0), axis=0, keepdims=True)   # (1, C)
        pooled = pooled * (1.0 / (Ho * Wo))
        # TODO(synk): if the 1-row MXU dots show as a latency tail in the
        # bundle, redo them as VPU multiply + cross-lane reduce (XLU/EUP free).
        h = jnp.dot(pooled.astype(mxu_dtype), w1_ref[...],
                    preferred_element_type=jnp.float32) + b1_ref[...]
        h = h * jax.nn.sigmoid(h)                              # Swish
        g = jnp.dot(h.astype(mxu_dtype), w2_ref[...],
                    preferred_element_type=jnp.float32) + b2_ref[...]
        g = jax.nn.sigmoid(g)                                  # (1, C) gate

        # ---- fused project 1x1 conv (MXU) + folded BN, no activation ----
        yg = (y * g).astype(mxu_dtype).reshape(Ho * Wo, C)
        out = jnp.dot(yg, pw_ref[...], preferred_element_type=jnp.float32)
        out = out * ps_ref[...] + pb_ref[...]
        o_ref[0] = out.reshape(Ho, Wo, Cout).astype(o_ref.dtype)

    return kernel


# ---------------------------------------------------------------------------
# Forward pass (wrapper / glue)
# ---------------------------------------------------------------------------
def mbconv_forward(x_nchw, p, *, kernel_size=3, stride=1,
                   compute_dtype=jnp.float32, mxu_dtype=jnp.bfloat16):
    """Fused MBConv forward.  x_nchw: (N, Cin, H, W) -> (N, Cout, Ho, Wo).

    compute_dtype: storage dtype of activations (padding scratch / output).
    mxu_dtype:     dtype of matmul operands (bf16 recommended on all gens;
                   accumulation and all elementwise math stay f32).
    """
    x = jnp.transpose(x_nchw, (0, 2, 3, 1)).astype(compute_dtype)  # NCHW->NHWC
    N, H, W, Cin = x.shape
    has_expand = "expand_w" in p
    Cexp = p["expand_w"].shape[1] if has_expand else Cin
    Cout = p["proj_w"].shape[1]
    Cse = p["se_w1"].shape[1]

    pad = (kernel_size - 1) // 2
    Ho = (H + 2 * pad - kernel_size) // stride + 1
    Wo = (W + 2 * pad - kernel_size) // stride + 1
    LPAD = 8                                   # sublane-aligned W halo
    assert pad <= LPAD, "kernel_size too large for fixed halo"

    kernel = _make_mbconv_kernel(
        has_expand=has_expand, ksize=kernel_size, stride=stride, pad=pad,
        lpad=LPAD, H=H, W=W, Ho=Ho, Wo=Wo, Cin=Cin, Cexp=Cexp, Cout=Cout,
        mxu_dtype=mxu_dtype)

    f32 = jnp.float32
    operands = [x]
    in_specs = [pl.BlockSpec((1, H, W, Cin), lambda n: (n, 0, 0, 0))]
    if has_expand:
        operands += [p["expand_w"].astype(mxu_dtype),
                     p["exp_scale"].reshape(1, Cexp).astype(f32),
                     p["exp_bias"].reshape(1, Cexp).astype(f32)]
        in_specs += [pl.BlockSpec((Cin, Cexp), lambda n: (0, 0)),
                     pl.BlockSpec((1, Cexp), lambda n: (0, 0)),
                     pl.BlockSpec((1, Cexp), lambda n: (0, 0))]
    operands += [p["dw_w"].astype(f32),
                 p["dw_scale"].reshape(1, 1, Cexp).astype(f32),
                 p["dw_bias"].reshape(1, 1, Cexp).astype(f32),
                 p["se_w1"].astype(mxu_dtype),
                 p["se_b1"].reshape(1, Cse).astype(f32),
                 p["se_w2"].astype(mxu_dtype),
                 p["se_b2"].reshape(1, Cexp).astype(f32),
                 p["proj_w"].astype(mxu_dtype),
                 p["proj_scale"].reshape(1, Cout).astype(f32),
                 p["proj_bias"].reshape(1, Cout).astype(f32)]
    in_specs += [
        pl.BlockSpec((kernel_size, kernel_size, Cexp), lambda n: (0, 0, 0)),
        pl.BlockSpec((1, 1, Cexp), lambda n: (0, 0, 0)),
        pl.BlockSpec((1, 1, Cexp), lambda n: (0, 0, 0)),
        pl.BlockSpec((Cexp, Cse), lambda n: (0, 0)),
        pl.BlockSpec((1, Cse), lambda n: (0, 0)),
        pl.BlockSpec((Cse, Cexp), lambda n: (0, 0)),
        pl.BlockSpec((1, Cexp), lambda n: (0, 0)),
        pl.BlockSpec((Cexp, Cout), lambda n: (0, 0)),
        pl.BlockSpec((1, Cout), lambda n: (0, 0)),
        pl.BlockSpec((1, Cout), lambda n: (0, 0)),
    ]

    # TODO(synk): for production spatial/channel sizes (e.g. 112x112x96+) the
    # one-image-per-step design exceeds v7x's 64 MiB VMEM: retile over output
    # rows with a (ksize-1)-row halo and make the SE pool a two-phase
    # accumulation; that also gives N=1 latency workloads a parallel grid axis.
    # NOTE: with toy channel counts (Cexp/Cout < 128) the lane axis is
    # underfilled and output stores are masked — realistic widths are needed
    # to surface the real bottlenecks.
    out = pl.pallas_call(
        kernel,
        out_shape=jax.ShapeDtypeStruct((N, Ho, Wo, Cout), compute_dtype),
        grid=(N,),
        in_specs=in_specs,
        out_specs=pl.BlockSpec((1, Ho, Wo, Cout), lambda n: (n, 0, 0, 0)),
        scratch_shapes=[pltpu.VMEM((H + 2 * pad, W + 2 * LPAD, Cexp),
                                   compute_dtype)],
        compiler_params=pltpu.CompilerParams(
            dimension_semantics=("parallel",),
            vmem_limit_bytes=_vmem_limit_bytes()),
    )(*operands)

    # NOTE: residual add + drop_connect in the reference are unreachable
    # (is_skip needs in_ch != out_ch, the forward guard needs in_ch == out_ch,
    # and the branch contains pdb.set_trace()), so nothing to add here.
    return jnp.transpose(out, (0, 3, 1, 2))                    # NHWC->NCHW


# ---------------------------------------------------------------------------
# Pure-JAX reference (for correctness check only)
# ---------------------------------------------------------------------------
def reference_forward(x_nchw, p, *, kernel_size=3, stride=1):
    x = jnp.transpose(x_nchw, (0, 2, 3, 1)).astype(jnp.float32)
    Cexp = p["expand_w"].shape[1]
    dn = ("NHWC", "HWIO", "NHWC")

    y = lax.conv_general_dilated(x, p["expand_w"][None, None], (1, 1), "VALID",
                                 dimension_numbers=dn)
    y = y * p["exp_scale"] + p["exp_bias"]
    y = y * jax.nn.sigmoid(y)

    pad = (kernel_size - 1) // 2
    y = lax.conv_general_dilated(y, p["dw_w"][:, :, None, :], (stride, stride),
                                 [(pad, pad), (pad, pad)], dimension_numbers=dn,
                                 feature_group_count=Cexp)
    y = y * p["dw_scale"] + p["dw_bias"]
    y = y * jax.nn.sigmoid(y)

    pooled = jnp.mean(y, axis=(1, 2))
    h = pooled @ p["se_w1"] + p["se_b1"]
    h = h * jax.nn.sigmoid(h)
    g = jax.nn.sigmoid(h @ p["se_w2"] + p["se_b2"])
    y = y * g[:, None, None, :]

    y = lax.conv_general_dilated(y, p["proj_w"][None, None], (1, 1), "VALID",
                                 dimension_numbers=dn)
    y = y * p["proj_scale"] + p["proj_bias"]
    return jnp.transpose(y, (0, 3, 1, 2))


# ---------------------------------------------------------------------------
# Deterministic parameter init (synthetic; matches module's __init__ shapes)
# ---------------------------------------------------------------------------
def init_params(key, in_ch, out_ch, ksize, expand_dim, se_ratio):
    cexp = in_ch * expand_dim
    cse = int(in_ch * se_ratio)
    keys = jax.random.split(key, 10)

    def bn(k, c):
        k1, k2, k3, k4 = jax.random.split(k, 4)
        gamma = jax.random.uniform(k1, (c,), minval=0.5, maxval=1.5)
        beta = 0.1 * jax.random.normal(k2, (c,))
        mean = 0.1 * jax.random.normal(k3, (c,))
        var = jax.random.uniform(k4, (c,), minval=0.5, maxval=1.5)
        return _fold_bn(gamma, beta, mean, var)

    exp_scale, exp_bias = bn(keys[0], cexp)
    dw_scale, dw_bias = bn(keys[1], cexp)
    proj_scale, proj_bias = bn(keys[2], out_ch)

    p = dict(
        expand_w=0.3 * jax.random.normal(keys[3], (in_ch, cexp)),
        exp_scale=exp_scale, exp_bias=exp_bias,
        dw_w=0.3 * jax.random.normal(keys[4], (ksize, ksize, cexp)),
        dw_scale=dw_scale, dw_bias=dw_bias,
        se_w1=0.3 * jax.random.normal(keys[5], (cexp, cse)),
        se_b1=0.1 * jax.random.normal(keys[6], (cse,)),
        se_w2=0.3 * jax.random.normal(keys[7], (cse, cexp)),
        se_b2=0.1 * jax.random.normal(keys[8], (cexp,)),
        proj_w=0.3 * jax.random.normal(keys[9], (cexp, out_ch)),
        proj_scale=proj_scale, proj_bias=proj_bias,
    )
    return jax.tree_util.tree_map(lambda a: a.astype(jnp.float32), p)


if __name__ == "__main__":
    key = jax.random.PRNGKey(0)
    kx, kp = jax.random.split(key)

    in_ch, out_ch, ksize, expand_dim, se_ratio, stride = 8, 8, 3, 4, 0.25, 1
    x = jax.random.normal(kx, (2, in_ch, 16, 16), dtype=jnp.float32)
    params = init_params(kp, in_ch, out_ch, ksize, expand_dim, se_ratio)

    ref = reference_forward(x, params, kernel_size=ksize, stride=stride)

    def rel_l2(a):
        return float(jnp.linalg.norm(a.astype(jnp.float32) - ref)
                     / jnp.linalg.norm(ref))

    # 1) exact path: f32 storage + f32 matmul operands -> tight check.
    out = mbconv_forward(x, params, kernel_size=ksize, stride=stride,
                         compute_dtype=jnp.float32, mxu_dtype=jnp.float32)
    out = jax.block_until_ready(out)
    assert out.shape == (2, out_ch, 16, 16), out.shape
    assert jnp.allclose(out, ref, rtol=1e-4, atol=1e-4), \
        float(jnp.max(jnp.abs(out - ref)))

    # 2) default perf path: f32 storage, bf16 MXU operands (f32 accumulation).
    out_mix = jax.block_until_ready(
        mbconv_forward(x, params, kernel_size=ksize, stride=stride))
    assert rel_l2(out_mix) < 0.05, rel_l2(out_mix)

    # 3) bf16 storage + bf16 MXU: halves HBM/VMEM traffic on v6e/v7x.
    out_bf = jax.block_until_ready(
        mbconv_forward(x, params, kernel_size=ksize, stride=stride,
                       compute_dtype=jnp.bfloat16))
    assert rel_l2(out_bf) < 0.05, rel_l2(out_bf)

    print("KERNEL_OK")
</pallas_src>

<mosaic_0001>
module attributes {stable_mosaic.version = 11 : i64} {
  func.func @kernel(%arg0: i32, %arg1: memref<1x16x16x8xf32, #tpu.memory_space<vmem>>, %arg2: memref<8x32xf32, #tpu.memory_space<vmem>>, %arg3: memref<1x32xf32, #tpu.memory_space<vmem>>, %arg4: memref<1x32xf32, #tpu.memory_space<vmem>>, %arg5: memref<3x3x32xf32, #tpu.memory_space<vmem>>, %arg6: memref<1x1x32xf32, #tpu.memory_space<vmem>>, %arg7: memref<1x1x32xf32, #tpu.memory_space<vmem>>, %arg8: memref<32x2xf32, #tpu.memory_space<vmem>>, %arg9: memref<1x2xf32, #tpu.memory_space<vmem>>, %arg10: memref<2x32xf32, #tpu.memory_space<vmem>>, %arg11: memref<1x32xf32, #tpu.memory_space<vmem>>, %arg12: memref<32x8xf32, #tpu.memory_space<vmem>>, %arg13: memref<1x8xf32, #tpu.memory_space<vmem>>, %arg14: memref<1x8xf32, #tpu.memory_space<vmem>>, %arg15: memref<1x16x16x8xf32, #tpu.memory_space<vmem>>, %arg16: memref<18x32x32xf32, #tpu.memory_space<vmem>>) attributes {dimension_semantics = [#tpu.dimension_semantics<parallel>], iteration_bounds = array<i64: 2>, scalar_prefetch = 0 : i64, scratch_operands = 1 : i64, tpu.core_type = #tpu.core_type<tc>, window_params = [{transform_indices = @transform_0, window_bounds = array<i64: 1, 16, 16, 8>}, {pipeline_mode = #tpu.pipeline_mode<synchronous>, transform_indices = @transform_1, window_bounds = array<i64: 8, 32>}, {pipeline_mode = #tpu.pipeline_mode<synchronous>, transform_indices = @transform_2, window_bounds = array<i64: 1, 32>}, {pipeline_mode = #tpu.pipeline_mode<synchronous>, transform_indices = @transform_3, window_bounds = array<i64: 1, 32>}, {pipeline_mode = #tpu.pipeline_mode<synchronous>, transform_indices = @transform_4, window_bounds = array<i64: 3, 3, 32>}, {pipeline_mode = #tpu.pipeline_mode<synchronous>, transform_indices = @transform_5, window_bounds = array<i64: 1, 1, 32>}, {pipeline_mode = #tpu.pipeline_mode<synchronous>, transform_indices = @transform_6, window_bounds = array<i64: 1, 1, 32>}, {pipeline_mode = #tpu.pipeline_mode<synchronous>, transform_indices = @transform_7, window_bounds = array<i64: 32, 2>}, {pipeline_mode = #tpu.pipeline_mode<synchronous>, transform_indices = @transform_8, window_bounds = array<i64: 1, 2>}, {pipeline_mode = #tpu.pipeline_mode<synchronous>, transform_indices = @transform_9, window_bounds = array<i64: 2, 32>}, {pipeline_mode = #tpu.pipeline_mode<synchronous>, transform_indices = @transform_10, window_bounds = array<i64: 1, 32>}, {pipeline_mode = #tpu.pipeline_mode<synchronous>, transform_indices = @transform_11, window_bounds = array<i64: 32, 8>}, {pipeline_mode = #tpu.pipeline_mode<synchronous>, transform_indices = @transform_12, window_bounds = array<i64: 1, 8>}, {pipeline_mode = #tpu.pipeline_mode<synchronous>, transform_indices = @transform_13, window_bounds = array<i64: 1, 8>}, {transform_indices = @transform_14, window_bounds = array<i64: 1, 16, 16, 8>}]} {
    %cst = arith.constant 0.000000e+00 : f32
    %0 = vector.broadcast %cst : f32 to vector<1x32x32xf32>
    %c0 = arith.constant 0 : index
    %c0_0 = arith.constant 0 : index
    %c0_1 = arith.constant 0 : index
    %1 = vector.load %arg16[%c0, %c0_0, %c0_1] : memref<18x32x32xf32, #tpu.memory_space<vmem>>, vector<1x32x32xf32>
    tpu.vector_store %arg16[%c0, %c0_0, %c0_1], %0 {strides = array<i32>} : memref<18x32x32xf32, #tpu.memory_space<vmem>>, vector<1x32x32xf32>,
    %c17 = arith.constant 17 : index
    %c0_2 = arith.constant 0 : index
    %c0_3 = arith.constant 0 : index
    %2 = vector.load %arg16[%c17, %c0_2, %c0_3] : memref<18x32x32xf32, #tpu.memory_space<vmem>>, vector<1x32x32xf32>
    tpu.vector_store %arg16[%c17, %c0_2, %c0_3], %0 {strides = array<i32>} : memref<18x32x32xf32, #tpu.memory_space<vmem>>, vector<1x32x32xf32>,
    %cst_4 = arith.constant 0.000000e+00 : f32
    %3 = vector.broadcast %cst_4 : f32 to vector<18x8x32xf32>
    %c0_5 = arith.constant 0 : index
    %c0_6 = arith.constant 0 : index
    %c0_7 = arith.constant 0 : index
    %4 = vector.load %arg16[%c0_5, %c0_6, %c0_7] : memref<18x32x32xf32, #tpu.memory_space<vmem>>, vector<18x8x32xf32>
    tpu.vector_store %arg16[%c0_5, %c0_6, %c0_7], %3 {strides = array<i32>} : memref<18x32x32xf32, #tpu.memory_space<vmem>>, vector<18x8x32xf32>,
    %cst_8 = arith.constant 0.000000e+00 : f32
    %5 = vector.broadcast %cst_8 : f32 to vector<18x8x32xf32>
    %c0_9 = arith.constant 0 : index
    %c24 = arith.constant 24 : index
    %c0_10 = arith.constant 0 : index
    %6 = vector.load %arg16[%c0_9, %c24, %c0_10] : memref<18x32x32xf32, #tpu.memory_space<vmem>>, vector<18x8x32xf32>
    tpu.vector_store %arg16[%c0_9, %c24, %c0_10], %5 {strides = array<i32>} : memref<18x32x32xf32, #tpu.memory_space<vmem>>, vector<18x8x32xf32>,
    %c0_11 = arith.constant 0 : index
    %c0_12 = arith.constant 0 : index
    %c0_13 = arith.constant 0 : index
    %c0_14 = arith.constant 0 : index
    %7 = vector.load %arg1[%c0_11, %c0_12, %c0_13, %c0_14] : memref<1x16x16x8xf32, #tpu.memory_space<vmem>>, vector<1x16x16x8xf32>
    %8 = vector.shape_cast %7 : vector<1x16x16x8xf32> to vector<16x16x8xf32>
    %9 = vector.shape_cast %8 : vector<16x16x8xf32> to vector<256x8xf32>
    %c0_15 = arith.constant 0 : index
    %c0_16 = arith.constant 0 : index
    %10 = vector.load %arg2[%c0_15, %c0_16] : memref<8x32xf32, #tpu.memory_space<vmem>>, vector<8x32xf32>
    %cst_17 = arith.constant dense<0.000000e+00> : vector<256x32xf32>
    %11 = tpu.matmul %9, %10, %cst_17 {dimension_numbers = #tpu.dot_dimension_numbers<[1], [0], [0], [1], [0, 0, 1, 1], [], []>} : vector<256x8xf32>, vector<8x32xf32>, vector<256x32xf32> -> vector<256x32xf32>
    %c0_18 = arith.constant 0 : index
    %c0_19 = arith.constant 0 : index
    %12 = vector.load %arg3[%c0_18, %c0_19] : memref<1x32xf32, #tpu.memory_space<vmem>>, vector<1x32xf32>
    %13 = vector.broadcast %12 : vector<1x32xf32> to vector<256x32xf32>
    %14 = arith.mulf %11, %13 : vector<256x32xf32>
    %c0_20 = arith.constant 0 : index
    %c0_21 = arith.constant 0 : index
    %15 = vector.load %arg4[%c0_20, %c0_21] : memref<1x32xf32, #tpu.memory_space<vmem>>, vector<1x32xf32>
    %16 = vector.broadcast %15 : vector<1x32xf32> to vector<256x32xf32>
    %17 = arith.addf %14, %16 : vector<256x32xf32>
    %18 = arith.negf %17 : vector<256x32xf32>
    %19 = math.exp %18 : vector<256x32xf32>
    %cst_22 = arith.constant 1.000000e+00 : f32
    %20 = vector.broadcast %cst_22 : f32 to vector<256x32xf32>
    %21 = arith.addf %20, %19 : vector<256x32xf32>
    %22 = arith.divf %20, %21 : vector<256x32xf32>
    %23 = arith.mulf %17, %22 : vector<256x32xf32>
    %24 = vector.shape_cast %23 : vector<256x32xf32> to vector<16x16x32xf32>
    %c1 = arith.constant 1 : index
    %c8 = arith.constant 8 : index
    %c0_23 = arith.constant 0 : index
    %25 = vector.load %arg16[%c1, %c8, %c0_23] : memref<18x32x32xf32, #tpu.memory_space<vmem>>, vector<16x16x32xf32>
    tpu.vector_store %arg16[%c1, %c8, %c0_23], %24 {strides = array<i32>} : memref<18x32x32xf32, #tpu.memory_space<vmem>>, vector<16x16x32xf32>,
    %c0_24 = arith.constant 0 : index
    %c0_25 = arith.constant 0 : index
    %c0_26 = arith.constant 0 : index
    %26 = vector.load %arg5[%c0_24, %c0_25, %c0_26] : memref<3x3x32xf32, #tpu.memory_space<vmem>>, vector<3x3x32xf32>
    %c0_27 = arith.constant 0 : index
    %c0_28 = arith.constant 0 : index
    %c0_29 = arith.constant 0 : index
    %27 = vector.load %arg16[%c0_27, %c0_28, %c0_29] : memref<18x32x32xf32, #tpu.memory_space<vmem>>, vector<18x32x32xf32>
    %cst_30 = arith.constant 0.000000e+00 : f32
    %28 = vector.broadcast %cst_30 : f32 to vector<16x16x32xf32>
    %29 = vector.extract_strided_slice %27 {offsets = [0, 7, 0], sizes = [16, 16, 32], strides = [1, 1, 1]} : vector<18x32x32xf32> to vector<16x16x32xf32>
    %30 = vector.extract_strided_slice %26 {offsets = [0, 0, 0], sizes = [1, 1, 32], strides = [1, 1, 1]} : vector<3x3x32xf32> to vector<1x1x32xf32>
    %31 = vector.shape_cast %30 : vector<1x1x32xf32> to vector<32xf32>
    %32 = vector.shape_cast %31 : vector<32xf32> to vector<1x1x32xf32>
    %33 = vector.broadcast %32 : vector<1x1x32xf32> to vector<16x16x32xf32>
    %34 = arith.mulf %29, %33 : vector<16x16x32xf32>
    %35 = arith.addf %28, %34 : vector<16x16x32xf32>
    %36 = vector.extract_strided_slice %27 {offsets = [0, 8, 0], sizes = [16, 16, 32], strides = [1, 1, 1]} : vector<18x32x32xf32> to vector<16x16x32xf32>
    %37 = vector.extract_strided_slice %26 {offsets = [0, 1, 0], sizes = [1, 1, 32], strides = [1, 1, 1]} : vector<3x3x32xf32> to vector<1x1x32xf32>
    %38 = vector.shape_cast %37 : vector<1x1x32xf32> to vector<32xf32>
    %39 = vector.shape_cast %38 : vector<32xf32> to vector<1x1x32xf32>
    %40 = vector.broadcast %39 : vector<1x1x32xf32> to vector<16x16x32xf32>
    %41 = arith.mulf %36, %40 : vector<16x16x32xf32>
    %42 = arith.addf %35, %41 : vector<16x16x32xf32>
    %43 = vector.extract_strided_slice %27 {offsets = [0, 9, 0], sizes = [16, 16, 32], strides = [1, 1, 1]} : vector<18x32x32xf32> to vector<16x16x32xf32>
    %44 = vector.extract_strided_slice %26 {offsets = [0, 2, 0], sizes = [1, 1, 32], strides = [1, 1, 1]} : vector<3x3x32xf32> to vector<1x1x32xf32>
    %45 = vector.shape_cast %44 : vector<1x1x32xf32> to vector<32xf32>
    %46 = vector.shape_cast %45 : vector<32xf32> to vector<1x1x32xf32>
    %47 = vector.broadcast %46 : vector<1x1x32xf32> to vector<16x16x32xf32>
    %48 = arith.mulf %43, %47 : vector<16x16x32xf32>
    %49 = arith.addf %42, %48 : vector<16x16x32xf32>
    %50 = vector.extract_strided_slice %27 {offsets = [1, 7, 0], sizes = [16, 16, 32], strides = [1, 1, 1]} : vector<18x32x32xf32> to vector<16x16x32xf32>
    %51 = vector.extract_strided_slice %26 {offsets = [1, 0, 0], sizes = [1, 1, 32], strides = [1, 1, 1]} : vector<3x3x32xf32> to vector<1x1x32xf32>
    %52 = vector.shape_cast %51 : vector<1x1x32xf32> to vector<32xf32>
    %53 = vector.shape_cast %52 : vector<32xf32> to vector<1x1x32xf32>
    %54 = vector.broadcast %53 : vector<1x1x32xf32> to vector<16x16x32xf32>
    %55 = arith.mulf %50, %54 : vector<16x16x32xf32>
    %56 = arith.addf %49, %55 : vector<16x16x32xf32>
    %57 = vector.extract_strided_slice %27 {offsets = [1, 8, 0], sizes = [16, 16, 32], strides = [1, 1, 1]} : vector<18x32x32xf32> to vector<16x16x32xf32>
    %58 = vector.extract_strided_slice %26 {offsets = [1, 1, 0], sizes = [1, 1, 32], strides = [1, 1, 1]} : vector<3x3x32xf32> to vector<1x1x32xf32>
    %59 = vector.shape_cast %58 : vector<1x1x32xf32> to vector<32xf32>
    %60 = vector.shape_cast %59 : vector<32xf32> to vector<1x1x32xf32>
    %61 = vector.broadcast %60 : vector<1x1x32xf32> to vector<16x16x32xf32>
    %62 = arith.mulf %57, %61 : vector<16x16x32xf32>
    %63 = arith.addf %56, %62 : vector<16x16x32xf32>
    %64 = vector.extract_strided_slice %27 {offsets = [1, 9, 0], sizes = [16, 16, 32], strides = [1, 1, 1]} : vector<18x32x32xf32> to vector<16x16x32xf32>
    %65 = vector.extract_strided_slice %26 {offsets = [1, 2, 0], sizes = [1, 1, 32], strides = [1, 1, 1]} : vector<3x3x32xf32> to vector<1x1x32xf32>
    %66 = vector.shape_cast %65 : vector<1x1x32xf32> to vector<32xf32>
    %67 = vector.shape_cast %66 : vector<32xf32> to vector<1x1x32xf32>
    %68 = vector.broadcast %67 : vector<1x1x32xf32> to vector<16x16x32xf32>
    %69 = arith.mulf %64, %68 : vector<16x16x32xf32>
    %70 = arith.addf %63, %69 : vector<16x16x32xf32>
    %71 = vector.extract_strided_slice %27 {offsets = [2, 7, 0], sizes = [16, 16, 32], strides = [1, 1, 1]} : vector<18x32x32xf32> to vector<16x16x32xf32>
    %72 = vector.extract_strided_slice %26 {offsets = [2, 0, 0], sizes = [1, 1, 32], strides = [1, 1, 1]} : vector<3x3x32xf32> to vector<1x1x32xf32>
    %73 = vector.shape_cast %72 : vector<1x1x32xf32> to vector<32xf32>
    %74 = vector.shape_cast %73 : vector<32xf32> to vector<1x1x32xf32>
    %75 = vector.broadcast %74 : vector<1x1x32xf32> to vector<16x16x32xf32>
    %76 = arith.mulf %71, %75 : vector<16x16x32xf32>
    %77 = arith.addf %70, %76 : vector<16x16x32xf32>
    %78 = vector.extract_strided_slice %27 {offsets = [2, 8, 0], sizes = [16, 16, 32], strides = [1, 1, 1]} : vector<18x32x32xf32> to vector<16x16x32xf32>
    %79 = vector.extract_strided_slice %26 {offsets = [2, 1, 0], sizes = [1, 1, 32], strides = [1, 1, 1]} : vector<3x3x32xf32> to vector<1x1x32xf32>
    %80 = vector.shape_cast %79 : vector<1x1x32xf32> to vector<32xf32>
    %81 = vector.shape_cast %80 : vector<32xf32> to vector<1x1x32xf32>
    %82 = vector.broadcast %81 : vector<1x1x32xf32> to vector<16x16x32xf32>
    %83 = arith.mulf %78, %82 : vector<16x16x32xf32>
    %84 = arith.addf %77, %83 : vector<16x16x32xf32>
    %85 = vector.extract_strided_slice %27 {offsets = [2, 9, 0], sizes = [16, 16, 32], strides = [1, 1, 1]} : vector<18x32x32xf32> to vector<16x16x32xf32>
    %86 = vector.extract_strided_slice %26 {offsets = [2, 2, 0], sizes = [1, 1, 32], strides = [1, 1, 1]} : vector<3x3x32xf32> to vector<1x1x32xf32>
    %87 = vector.shape_cast %86 : vector<1x1x32xf32> to vector<32xf32>
    %88 = vector.shape_cast %87 : vector<32xf32> to vector<1x1x32xf32>
    %89 = vector.broadcast %88 : vector<1x1x32xf32> to vector<16x16x32xf32>
    %90 = arith.mulf %85, %89 : vector<16x16x32xf32>
    %91 = arith.addf %84, %90 : vector<16x16x32xf32>
    %c0_31 = arith.constant 0 : index
    %c0_32 = arith.constant 0 : index
    %c0_33 = arith.constant 0 : index
    %92 = vector.load %arg6[%c0_31, %c0_32, %c0_33] : memref<1x1x32xf32, #tpu.memory_space<vmem>>, vector<1x1x32xf32>
    %93 = vector.broadcast %92 : vector<1x1x32xf32> to vector<16x16x32xf32>
    %94 = arith.mulf %91, %93 : vector<16x16x32xf32>
    %c0_34 = arith.constant 0 : index
    %c0_35 = arith.constant 0 : index
    %c0_36 = arith.constant 0 : index
    %95 = vector.load %arg7[%c0_34, %c0_35, %c0_36] : memref<1x1x32xf32, #tpu.memory_space<vmem>>, vector<1x1x32xf32>
    %96 = vector.broadcast %95 : vector<1x1x32xf32> to vector<16x16x32xf32>
    %97 = arith.addf %94, %96 : vector<16x16x32xf32>
    %98 = arith.negf %97 : vector<16x16x32xf32>
    %99 = math.exp %98 : vector<16x16x32xf32>
    %cst_37 = arith.constant 1.000000e+00 : f32
    %100 = vector.broadcast %cst_37 : f32 to vector<16x16x32xf32>
    %101 = arith.addf %100, %99 : vector<16x16x32xf32>
    %102 = arith.divf %100, %101 : vector<16x16x32xf32>
    %103 = arith.mulf %97, %102 : vector<16x16x32xf32>
    %cst_38 = arith.constant dense<0.000000e+00> : vector<16x32xf32>
    %104 = vector.multi_reduction <add>, %103, %cst_38 [0] : vector<16x16x32xf32> to vector<16x32xf32>
    %cst_39 = arith.constant dense<0.000000e+00> : vector<32xf32>
    %105 = vector.multi_reduction <add>, %104, %cst_39 [0] : vector<16x32xf32> to vector<32xf32>
    %106 = vector.shape_cast %105 : vector<32xf32> to vector<1x32xf32>
    %cst_40 = arith.constant 3.906250e-03 : f32
    %107 = vector.broadcast %cst_40 : f32 to vector<1x32xf32>
    %108 = arith.mulf %106, %107 : vector<1x32xf32>
    %c0_41 = arith.constant 0 : index
    %c0_42 = arith.constant 0 : index
    %109 = vector.load %arg8[%c0_41, %c0_42] : memref<32x2xf32, #tpu.memory_space<vmem>>, vector<32x2xf32>
    %cst_43 = arith.constant dense<0.000000e+00> : vector<1x2xf32>
    %110 = tpu.matmul %108, %109, %cst_43 {dimension_numbers = #tpu.dot_dimension_numbers<[1], [0], [0], [1], [0, 0, 1, 1], [], []>} : vector<1x32xf32>, vector<32x2xf32>, vector<1x2xf32> -> vector<1x2xf32>
    %c0_44 = arith.constant 0 : index
    %c0_45 = arith.constant 0 : index
    %111 = vector.load %arg9[%c0_44, %c0_45] : memref<1x2xf32, #tpu.memory_space<vmem>>, vector<1x2xf32>
    %112 = arith.addf %110, %111 : vector<1x2xf32>
    %113 = arith.negf %112 : vector<1x2xf32>
    %114 = math.exp %113 : vector<1x2xf32>
    %cst_46 = arith.constant 1.000000e+00 : f32
    %115 = vector.broadcast %cst_46 : f32 to vector<1x2xf32>
    %116 = arith.addf %115, %114 : vector<1x2xf32>
    %117 = arith.divf %115, %116 : vector<1x2xf32>
    %118 = arith.mulf %112, %117 : vector<1x2xf32>
    %c0_47 = arith.constant 0 : index
    %c0_48 = arith.constant 0 : index
    %119 = vector.load %arg10[%c0_47, %c0_48] : memref<2x32xf32, #tpu.memory_space<vmem>>, vector<2x32xf32>
    %cst_49 = arith.constant dense<0.000000e+00> : vector<1x32xf32>
    %120 = tpu.matmul %118, %119, %cst_49 {dimension_numbers = #tpu.dot_dimension_numbers<[1], [0], [0], [1], [0, 0, 1, 1], [], []>} : vector<1x2xf32>, vector<2x32xf32>, vector<1x32xf32> -> vector<1x32xf32>
    %c0_50 = arith.constant 0 : index
    %c0_51 = arith.constant 0 : index
    %121 = vector.load %arg11[%c0_50, %c0_51] : memref<1x32xf32, #tpu.memory_space<vmem>>, vector<1x32xf32>
    %122 = arith.addf %120, %121 : vector<1x32xf32>
    %123 = arith.negf %122 : vector<1x32xf32>
    %124 = math.exp %123 : vector<1x32xf32>
    %cst_52 = arith.constant 1.000000e+00 : f32
    %125 = vector.broadcast %cst_52 : f32 to vector<1x32xf32>
    %126 = arith.addf %125, %124 : vector<1x32xf32>
    %127 = arith.divf %125, %126 : vector<1x32xf32>
    %128 = vector.shape_cast %127 : vector<1x32xf32> to vector<1x1x32xf32>
    %129 = vector.broadcast %128 : vector<1x1x32xf32> to vector<16x16x32xf32>
    %130 = arith.mulf %103, %129 : vector<16x16x32xf32>
    %131 = vector.shape_cast %130 : vector<16x16x32xf32> to vector<256x32xf32>
    %c0_53 = arith.constant 0 : index
    %c0_54 = arith.constant 0 : index
    %132 = vector.load %arg12[%c0_53, %c0_54] : memref<32x8xf32, #tpu.memory_space<vmem>>, vector<32x8xf32>
    %cst_55 = arith.constant dense<0.000000e+00> : vector<256x8xf32>
    %133 = tpu.matmul %131, %132, %cst_55 {dimension_numbers = #tpu.dot_dimension_numbers<[1], [0], [0], [1], [0, 0, 1, 1], [], []>} : vector<256x32xf32>, vector<32x8xf32>, vector<256x8xf32> -> vector<256x8xf32>
    %c0_56 = arith.constant 0 : index
    %c0_57 = arith.constant 0 : index
    %134 = vector.load %arg13[%c0_56, %c0_57] : memref<1x8xf32, #tpu.memory_space<vmem>>, vector<1x8xf32>
    %135 = vector.broadcast %134 : vector<1x8xf32> to vector<256x8xf32>
    %136 = arith.mulf %133, %135 : vector<256x8xf32>
    %c0_58 = arith.constant 0 : index
    %c0_59 = arith.constant 0 : index
    %137 = vector.load %arg14[%c0_58, %c0_59] : memref<1x8xf32, #tpu.memory_space<vmem>>, vector<1x8xf32>
    %138 = vector.broadcast %137 : vector<1x8xf32> to vector<256x8xf32>
    %139 = arith.addf %136, %138 : vector<256x8xf32>
    %140 = vector.shape_cast %139 : vector<256x8xf32> to vector<16x16x8xf32>
    %c0_60 = arith.constant 0 : index
    %c0_61 = arith.constant 0 : index
    %c0_62 = arith.constant 0 : index
    %c0_63 = arith.constant 0 : index
    %141 = vector.load %arg15[%c0_60, %c0_61, %c0_62, %c0_63] : memref<1x16x16x8xf32, #tpu.memory_space<vmem>>, vector<1x16x16x8xf32>
    %142 = vector.shape_cast %141 : vector<1x16x16x8xf32> to vector<16x16x8xf32>
    %143 = vector.shape_cast %140 : vector<16x16x8xf32> to vector<1x16x16x8xf32>
    tpu.vector_store %arg15[%c0_60, %c0_61, %c0_62, %c0_63], %143 {strides = array<i32>} : memref<1x16x16x8xf32, #tpu.memory_space<vmem>>, vector<1x16x16x8xf32>,
    return
  }
  func.func @transform_0(%arg0: i32) -> (i32, i32, i32, i32) {
    %c0_i32 = arith.constant 0 : i32
    %c0_i32_0 = arith.constant 0 : i32
    %c0_i32_1 = arith.constant 0 : i32
    %c0_i32_2 = arith.constant 0 : i32
    return %arg0, %c0_i32, %c0_i32_0, %c0_i32_1 : i32, i32, i32, i32
  }
  func.func @transform_1(%arg0: i32) -> (i32, i32) {
    %c0_i32 = arith.constant 0 : i32
    %c0_i32_0 = arith.constant 0 : i32
    %c0_i32_1 = arith.constant 0 : i32
    return %c0_i32, %c0_i32_0 : i32, i32
  }
  func.func @transform_2(%arg0: i32) -> (i32, i32) {
    %c0_i32 = arith.constant 0 : i32
    %c0_i32_0 = arith.constant 0 : i32
    %c0_i32_1 = arith.constant 0 : i32
    return %c0_i32, %c0_i32_0 : i32, i32
  }
  func.func @transform_3(%arg0: i32) -> (i32, i32) {
    %c0_i32 = arith.constant 0 : i32
    %c0_i32_0 = arith.constant 0 : i32
    %c0_i32_1 = arith.constant 0 : i32
    return %c0_i32, %c0_i32_0 : i32, i32
  }
  func.func @transform_4(%arg0: i32) -> (i32, i32, i32) {
    %c0_i32 = arith.constant 0 : i32
    %c0_i32_0 = arith.constant 0 : i32
    %c0_i32_1 = arith.constant 0 : i32
    %c0_i32_2 = arith.constant 0 : i32
    return %c0_i32, %c0_i32_0, %c0_i32_1 : i32, i32, i32
  }
  func.func @transform_5(%arg0: i32) -> (i32, i32, i32) {
    %c0_i32 = arith.constant 0 : i32
    %c0_i32_0 = arith.constant 0 : i32
    %c0_i32_1 = arith.constant 0 : i32
    %c0_i32_2 = arith.constant 0 : i32
    return %c0_i32, %c0_i32_0, %c0_i32_1 : i32, i32, i32
  }
  func.func @transform_6(%arg0: i32) -> (i32, i32, i32) {
    %c0_i32 = arith.constant 0 : i32
    %c0_i32_0 = arith.constant 0 : i32
    %c0_i32_1 = arith.constant 0 : i32
    %c0_i32_2 = arith.constant 0 : i32
    return %c0_i32, %c0_i32_0, %c0_i32_1 : i32, i32, i32
  }
  func.func @transform_7(%arg0: i32) -> (i32, i32) {
    %c0_i32 = arith.constant 0 : i32
    %c0_i32_0 = arith.constant 0 : i32
    %c0_i32_1 = arith.constant 0 : i32
    return %c0_i32, %c0_i32_0 : i32, i32
  }
  func.func @transform_8(%arg0: i32) -> (i32, i32) {
    %c0_i32 = arith.constant 0 : i32
    %c0_i32_0 = arith.constant 0 : i32
    %c0_i32_1 = arith.constant 0 : i32
    return %c0_i32, %c0_i32_0 : i32, i32
  }
  func.func @transform_9(%arg0: i32) -> (i32, i32) {
    %c0_i32 = arith.constant 0 : i32
    %c0_i32_0 = arith.constant 0 : i32
    %c0_i32_1 = arith.constant 0 : i32
    return %c0_i32, %c0_i32_0 : i32, i32
  }
  func.func @transform_10(%arg0: i32) -> (i32, i32) {
    %c0_i32 = arith.constant 0 : i32
    %c0_i32_0 = arith.constant 0 : i32
    %c0_i32_1 = arith.constant 0 : i32
    return %c0_i32, %c0_i32_0 : i32, i32
  }
  func.func @transform_11(%arg0: i32) -> (i32, i32) {
    %c0_i32 = arith.constant 0 : i32
    %c0_i32_0 = arith.constant 0 : i32
    %c0_i32_1 = arith.constant 0 : i32
    return %c0_i32, %c0_i32_0 : i32, i32
  }
  func.func @transform_12(%arg0: i32) -> (i32, i32) {
    %c0_i32 = arith.constant 0 : i32
    %c0_i32_0 = arith.constant 0 : i32
    %c0_i32_1 = arith.constant 0 : i32
    return %c0_i32, %c0_i32_0 : i32, i32
  }
  func.func @transform_13(%arg0: i32) -> (i32, i32) {
    %c0_i32 = arith.constant 0 : i32
    %c0_i32_0 = arith.constant 0 : i32
    %c0_i32_1 = arith.constant 0 : i32
    return %c0_i32, %c0_i32_0 : i32, i32
  }
  func.func @transform_14(%arg0: i32) -> (i32, i32, i32, i32) {
    %c0_i32 = arith.constant 0 : i32
    %c0_i32_0 = arith.constant 0 : i32
    %c0_i32_1 = arith.constant 0 : i32
    %c0_i32_2 = arith.constant 0 : i32
    return %arg0, %c0_i32, %c0_i32_0, %c0_i32_1 : i32, i32, i32, i32
  }
}

</mosaic_0001>

<llo_original>
// kernel: tpu_custom_call.1
$region0: #{tpu_custom_call.1}
  #allocation0 [shape = 'u32[]', space=smem, size = 0x4, offset = 0x4, fixed_abs, tag = 'smem constant byte address 0x4 - core index']
  #allocation1 [shape = 'u32[144,128]{1,0:T(1,128)}', space=vmem, size = 0x12000, scoped, tag = 'internal scratch']
  #allocation2 [shape = 'f32[18,32,32]{2,1,0:T(8,128)}', space=vmem, size = 0x48000, scoped, tag = 'scratch operand']
  %s0 = inlined_call_operand.vmem [shape: f32[2,16,16,8], index: 0, kind: input, shape index: {}]
  %s1 = inlined_call_operand.vmem [shape: f32[8,32], index: 1, kind: input, shape index: {}]
  %s2 = inlined_call_operand.vmem [shape: f32[1,32], index: 2, kind: input, shape index: {}]
  %s3 = inlined_call_operand.vmem [shape: f32[1,32], index: 3, kind: input, shape index: {}]
  %s4 = inlined_call_operand.vmem [shape: f32[3,3,32], index: 4, kind: input, shape index: {}]
  %s5 = inlined_call_operand.vmem [shape: f32[1,1,32], index: 5, kind: input, shape index: {}]
  %s6 = inlined_call_operand.vmem [shape: f32[1,1,32], index: 6, kind: input, shape index: {}]
  %s7 = inlined_call_operand.vmem [shape: f32[32,2], index: 7, kind: input, shape index: {}]
  %s8 = inlined_call_operand.vmem [shape: f32[1,2], index: 8, kind: input, shape index: {}]
  %s9 = inlined_call_operand.vmem [shape: f32[2,32], index: 9, kind: input, shape index: {}]
  %s10 = inlined_call_operand.vmem [shape: f32[1,32], index: 10, kind: input, shape index: {}]
  %s11 = inlined_call_operand.vmem [shape: f32[32,8], index: 11, kind: input, shape index: {}]
  %s12 = inlined_call_operand.vmem [shape: f32[1,8], index: 12, kind: input, shape index: {}]
  %s13 = inlined_call_operand.vmem [shape: f32[1,8], index: 13, kind: input, shape index: {}]
  %s14 = inlined_call_operand.vmem [shape: f32[2,16,16,8], index: 14, kind: output, shape index: {}]
  %s15 = sld [smem:[#allocation0]]
  $region89: #{tpu_custom_call.1} parent=0
    _
  %s17 = ssub.s32 1, %s15
  %s18 = scalar_select 0, %s17, %s15
  loop: start=0, step=1, limit=4
  $region2: #{tpu_custom_call.1} parent=0 // loop_pre_header
    _
  $region3: #{tpu_custom_call.1} parent=0 // loop_header
    %s20 = sphi 0, %s24
    %p21 = scmp.ge.s32.totalorder %s20, 4
    %s30 = sphi 0, %s32
    %s33 = sphi 0, %s30
    %s34 = sphi 0, %s33
    %s50 = sphi 0, %s34
    %s54 = sphi 0, %s54
    %s56 = sphi 0, %s54
    %s57 = sphi 0, %s56
    %s71 = sphi 0, %s57
    %s75 = sphi 0, %s75
    %s77 = sphi 0, %s75
    %s78 = sphi 0, %s77
    %s92 = sphi 0, %s78
    %s96 = sphi 0, %s96
    %s98 = sphi 0, %s96
    %s99 = sphi 0, %s98
    %s113 = sphi 0, %s99
    %s117 = sphi 0, %s117
    %s119 = sphi 0, %s117
    %s120 = sphi 0, %s119
    %s134 = sphi 0, %s120
    %s138 = sphi 0, %s138
    %s140 = sphi 0, %s138
    %s141 = sphi 0, %s140
    %s155 = sphi 0, %s141
    %s159 = sphi 0, %s159
    %s161 = sphi 0, %s159
    %s162 = sphi 0, %s161
    %s176 = sphi 0, %s162
    %s180 = sphi 0, %s180
    %s182 = sphi 0, %s180
    %s183 = sphi 0, %s182
    %s197 = sphi 0, %s183
    %s201 = sphi 0, %s201
    %s203 = sphi 0, %s201
    %s204 = sphi 0, %s203
    %s218 = sphi 0, %s204
    %s222 = sphi 0, %s222
    %s224 = sphi 0, %s222
    %s225 = sphi 0, %s224
    %s239 = sphi 0, %s225
    %s243 = sphi 0, %s243
    %s245 = sphi 0, %s243
    %s246 = sphi 0, %s245
    %s260 = sphi 0, %s246
    %s264 = sphi 0, %s264
    %s266 = sphi 0, %s264
    %s267 = sphi 0, %s266
    %s281 = sphi 0, %s267
    %s285 = sphi 0, %s285
    %s287 = sphi 0, %s285
    %s288 = sphi 0, %s287
    %s302 = sphi 0, %s288
    %s306 = sphi 0, %s306
    %s308 = sphi 0, %s306
    %s309 = sphi 0, %s308
    %s323 = sphi 0, %s309
    %s329 = sphi 0, %s331
    %s332 = sphi 0, %s329
    %s333 = sphi 0, %s332
    %s349 = sphi 0, %s333
  $region4: #{tpu_custom_call.1} parent=0 // loop_header_branch
    %23 = sbr.rel (%p21) target = $region8
  $region5: #{tpu_custom_call.1} parent=0 // loop_body
    %s25 = ssub.s32 %s20, 1
    %s26 = ssub.s32 %s20, 2
    %s27 = sadd.s32 %s20, 1
    %s28 = ssub.s32 %s20, %s27
    %p29 = scmp.eq.s32.totalorder %s28, 0
    %s31 = sadd.s32 %s30, 1
    %s32 = scalar_select %p29, %s30, %s31
    %p35 = pneg %p29
    %p36 = scmp.eq.s32.totalorder %s20, 1
    %p37 = por %p35, %p36
    %p38 = scmp.ne.s32.totalorder %s30, %s33
    %p39 = scmp.eq.s32.totalorder %s20, 0
    %p40 = por %p38, %p39
    %p41 = scmp.ne.s32.totalorder %s30, %s33
    %p42 = scmp.eq.s32.totalorder %s25, 1
    %p43 = por %p41, %p42
    %p44 = scmp.ne.s32.totalorder %s33, %s34
    %p45 = scmp.eq.s32.totalorder %s25, 0
    %p46 = por %p44, %p45
    %p47 = scmp.ne.s32.totalorder %s33, %s34
    %p48 = scmp.eq.s32.totalorder %s26, 1
    %p49 = por %p47, %p48
    %p51 = scmp.ne.s32.totalorder %s34, %s50
    %p52 = scmp.eq.s32.totalorder %s26, 0
    %p53 = por %p51, %p52
    %s55 = sadd.s32 %s54, 1
    %p58 = scmp.eq.s32.totalorder %s20, 1
    %p59 = scmp.ne.s32.totalorder %s54, %s56
    %p60 = scmp.eq.s32.totalorder %s20, 0
    %p61 = por %p59, %p60
    %p62 = scmp.ne.s32.totalorder %s54, %s56
    %p63 = scmp.eq.s32.totalorder %s25, 1
    %p64 = por %p62, %p63
    %p65 = scmp.ne.s32.totalorder %s56, %s57
    %p66 = scmp.eq.s32.totalorder %s25, 0
    %p67 = por %p65, %p66
    %p68 = scmp.ne.s32.totalorder %s56, %s57
    %p69 = scmp.eq.s32.totalorder %s26, 1
    %p70 = por %p68, %p69
    %p72 = scmp.ne.s32.totalorder %s57, %s71
    %p73 = scmp.eq.s32.totalorder %s26, 0
    %p74 = por %p72, %p73
    %s76 = sadd.s32 %s75, 1
    %p79 = scmp.eq.s32.totalorder %s20, 1
    %p80 = scmp.ne.s32.totalorder %s75, %s77
    %p81 = scmp.eq.s32.totalorder %s20, 0
    %p82 = por %p80, %p81
    %p83 = scmp.ne.s32.totalorder %s75, %s77
    %p84 = scmp.eq.s32.totalorder %s25, 1
    %p85 = por %p83, %p84
    %p86 = scmp.ne.s32.totalorder %s77, %s78
    %p87 = scmp.eq.s32.totalorder %s25, 0
    %p88 = por %p86, %p87
    %p89 = scmp.ne.s32.totalorder %s77, %s78
    %p90 = scmp.eq.s32.totalorder %s26, 1
    %p91 = por %p89, %p90
    %p93 = scmp.ne.s32.totalorder %s78, %s92
    %p94 = scmp.eq.s32.totalorder %s26, 0
    %p95 = por %p93, %p94
    %s97 = sadd.s32 %s96, 1
    %p100 = scmp.eq.s32.totalorder %s20, 1
    %p101 = scmp.ne.s32.totalorder %s96, %s98
    %p102 = scmp.eq.s32.totalorder %s20, 0
    %p103 = por %p101, %p102
    %p104 = scmp.ne.s32.totalorder %s96, %s98
    %p105 = scmp.eq.s32.totalorder %s25, 1
    %p106 = por %p104, %p105
    %p107 = scmp.ne.s32.totalorder %s98, %s99
    %p108 = scmp.eq.s32.totalorder %s25, 0
    %p109 = por %p107, %p108
    %p110 = scmp.ne.s32.totalorder %s98, %s99
    %p111 = scmp.eq.s32.totalorder %s26, 1
    %p112 = por %p110, %p111
    %p114 = scmp.ne.s32.totalorder %s99, %s113
    %p115 = scmp.eq.s32.totalorder %s26, 0
    %p116 = por %p114, %p115
    %s118 = sadd.s32 %s117, 1
    %p121 = scmp.eq.s32.totalorder %s20, 1
    %p122 = scmp.ne.s32.totalorder %s117, %s119
    %p123 = scmp.eq.s32.totalorder %s20, 0
    %p124 = por %p122, %p123
    %p125 = scmp.ne.s32.totalorder %s117, %s119
    %p126 = scmp.eq.s32.totalorder %s25, 1
    %p127 = por %p125, %p126
    %p128 = scmp.ne.s32.totalorder %s119, %s120
    %p129 = scmp.eq.s32.totalorder %s25, 0
    %p130 = por %p128, %p129
    %p131 = scmp.ne.s32.totalorder %s119, %s120
    %p132 = scmp.eq.s32.totalorder %s26, 1
    %p133 = por %p131, %p132
    %p135 = scmp.ne.s32.totalorder %s120, %s134
    %p136 = scmp.eq.s32.totalorder %s26, 0
    %p137 = por %p135, %p136
    %s139 = sadd.s32 %s138, 1
    %p142 = scmp.eq.s32.totalorder %s20, 1
    %p143 = scmp.ne.s32.totalorder %s138, %s140
    %p144 = scmp.eq.s32.totalorder %s20, 0
    %p145 = por %p143, %p144
    %p146 = scmp.ne.s32.totalorder %s138, %s140
    %p147 = scmp.eq.s32.totalorder %s25, 1
    %p148 = por %p146, %p147
    %p149 = scmp.ne.s32.totalorder %s140, %s141
    %p150 = scmp.eq.s32.totalorder %s25, 0
    %p151 = por %p149, %p150
    %p152 = scmp.ne.s32.totalorder %s140, %s141
    %p153 = scmp.eq.s32.totalorder %s26, 1
    %p154 = por %p152, %p153
    %p156 = scmp.ne.s32.totalorder %s141, %s155
    %p157 = scmp.eq.s32.totalorder %s26, 0
    %p158 = por %p156, %p157
    %s160 = sadd.s32 %s159, 1
    %p163 = scmp.eq.s32.totalorder %s20, 1
    %p164 = scmp.ne.s32.totalorder %s159, %s161
    %p165 = scmp.eq.s32.totalorder %s20, 0
    %p166 = por %p164, %p165
    %p167 = scmp.ne.s32.totalorder %s159, %s161
    %p168 = scmp.eq.s32.totalorder %s25, 1
    %p169 = por %p167, %p168
    %p170 = scmp.ne.s32.totalorder %s161, %s162
    %p171 = scmp.eq.s32.totalorder %s25, 0
    %p172 = por %p170, %p171
    %p173 = scmp.ne.s32.totalorder %s161, %s162
    %p174 = scmp.eq.s32.totalorder %s26, 1
    %p175 = por %p173, %p174
    %p177 = scmp.ne.s32.totalorder %s162, %s176
    %p178 = scmp.eq.s32.totalorder %s26, 0
    %p179 = por %p177, %p178
    %s181 = sadd.s32 %s180, 1
    %p184 = scmp.eq.s32.totalorder %s20, 1
    %p185 = scmp.ne.s32.totalorder %s180, %s182
    %p186 = scmp.eq.s32.totalorder %s20, 0
    %p187 = por %p185, %p186
    %p188 = scmp.ne.s32.totalorder %s180, %s182
    %p189 = scmp.eq.s32.totalorder %s25, 1
    %p190 = por %p188, %p189
    %p191 = scmp.ne.s32.totalorder %s182, %s183
    %p192 = scmp.eq.s32.totalorder %s25, 0
    %p193 = por %p191, %p192
    %p194 = scmp.ne.s32.totalorder %s182, %s183
    %p195 = scmp.eq.s32.totalorder %s26, 1
    %p196 = por %p194, %p195
    %p198 = scmp.ne.s32.totalorder %s183, %s197
    %p199 = scmp.eq.s32.totalorder %s26, 0
    %p200 = por %p198, %p199
    %s202 = sadd.s32 %s201, 1
    %p205 = scmp.eq.s32.totalorder %s20, 1
    %p206 = scmp.ne.s32.totalorder %s201, %s203
    %p207 = scmp.eq.s32.totalorder %s20, 0
    %p208 = por %p206, %p207
    %p209 = scmp.ne.s32.totalorder %s201, %s203
    %p210 = scmp.eq.s32.totalorder %s25, 1
    %p211 = por %p209, %p210
    %p212 = scmp.ne.s32.totalorder %s203, %s204
    %p213 = scmp.eq.s32.totalorder %s25, 0
    %p214 = por %p212, %p213
    %p215 = scmp.ne.s32.totalorder %s203, %s204
    %p216 = scmp.eq.s32.totalorder %s26, 1
    %p217 = por %p215, %p216
    %p219 = scmp.ne.s32.totalorder %s204, %s218
    %p220 = scmp.eq.s32.totalorder %s26, 0
    %p221 = por %p219, %p220
    %s223 = sadd.s32 %s222, 1
    %p226 = scmp.eq.s32.totalorder %s20, 1
    %p227 = scmp.ne.s32.totalorder %s222, %s224
    %p228 = scmp.eq.s32.totalorder %s20, 0
    %p229 = por %p227, %p228
    %p230 = scmp.ne.s32.totalorder %s222, %s224
    %p231 = scmp.eq.s32.totalorder %s25, 1
    %p232 = por %p230, %p231
    %p233 = scmp.ne.s32.totalorder %s224, %s225
    %p234 = scmp.eq.s32.totalorder %s25, 0
    %p235 = por %p233, %p234
    %p236 = scmp.ne.s32.totalorder %s224, %s225
    %p237 = scmp.eq.s32.totalorder %s26, 1
    %p238 = por %p236, %p237
    %p240 = scmp.ne.s32.totalorder %s225, %s239
    %p241 = scmp.eq.s32.totalorder %s26, 0
    %p242 = por %p240, %p241
    %s244 = sadd.s32 %s243, 1
    %p247 = scmp.eq.s32.totalorder %s20, 1
    %p248 = scmp.ne.s32.totalorder %s243, %s245
    %p249 = scmp.eq.s32.totalorder %s20, 0
    %p250 = por %p248, %p249
    %p251 = scmp.ne.s32.totalorder %s243, %s245
    %p252 = scmp.eq.s32.totalorder %s25, 1
    %p253 = por %p251, %p252
    %p254 = scmp.ne.s32.totalorder %s245, %s246
    %p255 = scmp.eq.s32.totalorder %s25, 0
    %p256 = por %p254, %p255
    %p257 = scmp.ne.s32.totalorder %s245, %s246
    %p258 = scmp.eq.s32.totalorder %s26, 1
    %p259 = por %p257, %p258
    %p261 = scmp.ne.s32.totalorder %s246, %s260
    %p262 = scmp.eq.s32.totalorder %s26, 0
    %p263 = por %p261, %p262
    %s265 = sadd.s32 %s264, 1
    %p268 = scmp.eq.s32.totalorder %s20, 1
    %p269 = scmp.ne.s32.totalorder %s264, %s266
    %p270 = scmp.eq.s32.totalorder %s20, 0
    %p271 = por %p269, %p270
    %p272 = scmp.ne.s32.totalorder %s264, %s266
    %p273 = scmp.eq.s32.totalorder %s25, 1
    %p274 = por %p272, %p273
    %p275 = scmp.ne.s32.totalorder %s266, %s267
    %p276 = scmp.eq.s32.totalorder %s25, 0
    %p277 = por %p275, %p276
    %p278 = scmp.ne.s32.totalorder %s266, %s267
    %p279 = scmp.eq.s32.totalorder %s26, 1
    %p280 = por %p278, %p279
    %p282 = scmp.ne.s32.totalorder %s267, %s281
    %p283 = scmp.eq.s32.totalorder %s26, 0
    %p284 = por %p282, %p283
    %s286 = sadd.s32 %s285, 1
    %p289 = scmp.eq.s32.totalorder %s20, 1
    %p290 = scmp.ne.s32.totalorder %s285, %s287
    %p291 = scmp.eq.s32.totalorder %s20, 0
    %p292 = por %p290, %p291
    %p293 = scmp.ne.s32.totalorder %s285, %s287
    %p294 = scmp.eq.s32.totalorder %s25, 1
    %p295 = por %p293, %p294
    %p296 = scmp.ne.s32.totalorder %s287, %s288
    %p297 = scmp.eq.s32.totalorder %s25, 0
    %p298 = por %p296, %p297
    %p299 = scmp.ne.s32.totalorder %s287, %s288
    %p300 = scmp.eq.s32.totalorder %s26, 1
    %p301 = por %p299, %p300
    %p303 = scmp.ne.s32.totalorder %s288, %s302
    %p304 = scmp.eq.s32.totalorder %s26, 0
    %p305 = por %p303, %p304
    %s307 = sadd.s32 %s306, 1
    %p310 = scmp.eq.s32.totalorder %s20, 1
    %p311 = scmp.ne.s32.totalorder %s306, %s308
    %p312 = scmp.eq.s32.totalorder %s20, 0
    %p313 = por %p311, %p312
    %p314 = scmp.ne.s32.totalorder %s306, %s308
    %p315 = scmp.eq.s32.totalorder %s25, 1
    %p316 = por %p314, %p315
    %p317 = scmp.ne.s32.totalorder %s308, %s309
    %p318 = scmp.eq.s32.totalorder %s25, 0
    %p319 = por %p317, %p318
    %p320 = scmp.ne.s32.totalorder %s308, %s309
    %p321 = scmp.eq.s32.totalorder %s26, 1
    %p322 = por %p320, %p321
    %p324 = scmp.ne.s32.totalorder %s309, %s323
    %p325 = scmp.eq.s32.totalorder %s26, 0
    %p326 = por %p324, %p325
    %s327 = ssub.s32 %s20, %s27
    %p328 = scmp.eq.s32.totalorder %s327, 0
    %s330 = sadd.s32 %s329, 1
    %s331 = scalar_select %p328, %s329, %s330
    %p334 = pneg %p328
    %p335 = scmp.eq.s32.totalorder %s20, 1
    %p336 = por %p334, %p335
    %p337 = scmp.ne.s32.totalorder %s329, %s332
    %p338 = scmp.eq.s32.totalorder %s20, 0
    %p339 = por %p337, %p338
    %p340 = scmp.ne.s32.totalorder %s329, %s332
    %p341 = scmp.eq.s32.totalorder %s25, 1
    %p342 = por %p340, %p341
    %p343 = scmp.ne.s32.totalorder %s332, %s333
    %p344 = scmp.eq.s32.totalorder %s25, 0
    %p345 = por %p343, %p344
    %p346 = scmp.ne.s32.totalorder %s332, %s333
    %p347 = scmp.eq.s32.totalorder %s26, 1
    %p348 = por %p346, %p347
    %p350 = scmp.ne.s32.totalorder %s333, %s349
    %p351 = scmp.eq.s32.totalorder %s26, 0
    %p352 = por %p350, %p351
    %p353 = scmp.le.s32.totalorder 1, %s20
    %p354 = scmp.lt.s32.totalorder %s20, 3
    %p355 = pnand %p353, %p354
    %p356 = pneg %p355
    // Predicated region
    $region9: #{tpu_custom_call.1} parent=5 // pred_check
      _
    $region10: #{tpu_custom_call.1} parent=5 // pred_check_branch
      %358 = sbr.rel (%p355) target = $region12
    $region11: #{tpu_custom_call.1} parent=5 // pred_region
      %s359 = ssub.s32 %s20, 1
      // Predicated region
      $region13: #{tpu_custom_call.1} parent=11 // pred_check
        %p360 = pneg %p67
      $region14: #{tpu_custom_call.1} parent=11 // pred_check_branch
        %362 = sbr.rel (%p360) target = $region16
      $region15: #{tpu_custom_call.1} parent=11 // pred_region
        _
      $region16: #{tpu_custom_call.1} parent=11 // pred_fallthru
        _
      // Predicated region
      $region17: #{tpu_custom_call.1} parent=11 // pred_check
        %p363 = pneg %p88
      $region18: #{tpu_custom_call.1} parent=11 // pred_check_branch
        %365 = sbr.rel (%p363) target = $region20
      $region19: #{tpu_custom_call.1} parent=11 // pred_region
        _
      $region20: #{tpu_custom_call.1} parent=11 // pred_fallthru
        _
      // Predicated region
      $region21: #{tpu_custom_call.1} parent=11 // pred_check
        %p366 = pneg %p109
      $region22: #{tpu_custom_call.1} parent=11 // pred_check_branch
        %368 = sbr.rel (%p366) target = $region24
      $region23: #{tpu_custom_call.1} parent=11 // pred_region
        _
      $region24: #{tpu_custom_call.1} parent=11 // pred_fallthru
        _
      // Predicated region
      $region25: #{tpu_custom_call.1} parent=11 // pred_check
        %p369 = pneg %p130
      $region26: #{tpu_custom_call.1} parent=11 // pred_check_branch
        %371 = sbr.rel (%p369) target = $region28
      $region27: #{tpu_custom_call.1} parent=11 // pred_region
        _
      $region28: #{tpu_custom_call.1} parent=11 // pred_fallthru
        _
      // Predicated region
      $region29: #{tpu_custom_call.1} parent=11 // pred_check
        %p372 = pneg %p151
      $region30: #{tpu_custom_call.1} parent=11 // pred_check_branch
        %374 = sbr.rel (%p372) target = $region32
      $region31: #{tpu_custom_call.1} parent=11 // pred_region
        _
      $region32: #{tpu_custom_call.1} parent=11 // pred_fallthru
        _
      // Predicated region
      $region33: #{tpu_custom_call.1} parent=11 // pred_check
        %p375 = pneg %p172
      $region34: #{tpu_custom_call.1} parent=11 // pred_check_branch
        %377 = sbr.rel (%p375) target = $region36
      $region35: #{tpu_custom_call.1} parent=11 // pred_region
        _
      $region36: #{tpu_custom_call.1} parent=11 // pred_fallthru
        _
      // Predicated region
      $region37: #{tpu_custom_call.1} parent=11 // pred_check
        %p378 = pneg %p193
      $region38: #{tpu_custom_call.1} parent=11 // pred_check_branch
        %380 = sbr.rel (%p378) target = $region40
      $region39: #{tpu_custom_call.1} parent=11 // pred_region
        _
      $region40: #{tpu_custom_call.1} parent=11 // pred_fallthru
        _
      // Predicated region
      $region41: #{tpu_custom_call.1} parent=11 // pred_check
        %p381 = pneg %p214
      $region42: #{tpu_custom_call.1} parent=11 // pred_check_branch
        %383 = sbr.rel (%p381) target = $region44
      $region43: #{tpu_custom_call.1} parent=11 // pred_region
        _
      $region44: #{tpu_custom_call.1} parent=11 // pred_fallthru
        _
      // Predicated region
      $region45: #{tpu_custom_call.1} parent=11 // pred_check
        %p384 = pneg %p235
      $region46: #{tpu_custom_call.1} parent=11 // pred_check_branch
        %386 = sbr.rel (%p384) target = $region48
      $region47: #{tpu_custom_call.1} parent=11 // pred_region
        _
      $region48: #{tpu_custom_call.1} parent=11 // pred_fallthru
        _
      // Predicated region
      $region49: #{tpu_custom_call.1} parent=11 // pred_check
        %p387 = pneg %p256
      $region50: #{tpu_custom_call.1} parent=11 // pred_check_branch
        %389 = sbr.rel (%p387) target = $region52
      $region51: #{tpu_custom_call.1} parent=11 // pred_region
        _
      $region52: #{tpu_custom_call.1} parent=11 // pred_fallthru
        _
      // Predicated region
      $region53: #{tpu_custom_call.1} parent=11 // pred_check
        %p390 = pneg %p277
      $region54: #{tpu_custom_call.1} parent=11 // pred_check_branch
        %392 = sbr.rel (%p390) target = $region56
      $region55: #{tpu_custom_call.1} parent=11 // pred_region
        _
      $region56: #{tpu_custom_call.1} parent=11 // pred_fallthru
        _
      // Predicated region
      $region57: #{tpu_custom_call.1} parent=11 // pred_check
        %p393 = pneg %p298
      $region58: #{tpu_custom_call.1} parent=11 // pred_check_branch
        %395 = sbr.rel (%p393) target = $region60
      $region59: #{tpu_custom_call.1} parent=11 // pred_region
        _
      $region60: #{tpu_custom_call.1} parent=11 // pred_fallthru
        _
      // Predicated region
      $region61: #{tpu_custom_call.1} parent=11 // pred_check
        %p396 = pneg %p319
      $region62: #{tpu_custom_call.1} parent=11 // pred_check_branch
        %398 = sbr.rel (%p396) target = $region64
      $region63: #{tpu_custom_call.1} parent=11 // pred_region
        _
      $region64: #{tpu_custom_call.1} parent=11 // pred_fallthru
        _
    $region12: #{tpu_custom_call.1} parent=5 // pred_fallthru
      _
    %p399 = scmp.lt.s32.totalorder %s20, 2
    // Predicated region
    $region65: #{tpu_custom_call.1} parent=5 // pred_check
      %p400 = pneg %p399
    $region66: #{tpu_custom_call.1} parent=5 // pred_check_branch
      %402 = sbr.rel (%p400) target = $region68
    $region67: #{tpu_custom_call.1} parent=5 // pred_region
      // Predicated region
      $region69: #{tpu_custom_call.1} parent=67 // pred_check
        %p403 = pneg %p40
      $region70: #{tpu_custom_call.1} parent=67 // pred_check_branch
        %405 = sbr.rel (%p403) target = $region72
      $region71: #{tpu_custom_call.1} parent=67 // pred_region
        %p406 = scmp.lt.s32.totalorder %s20, 1
        %s407 = scalar_select %p406, %s20, 1
        %s408 = smul.addr %s407, 32
        %s409 = smul.addr %s408, 8
        %s410 = scalar_lea.vmem %s0, %s409
      $region72: #{tpu_custom_call.1} parent=67 // pred_fallthru
        _
    $region68: #{tpu_custom_call.1} parent=5 // pred_fallthru
      _
    %p411 = scmp.le.s32.totalorder 1, %s20
    %p412 = scmp.lt.s32.totalorder %s20, 3
    %p413 = pnand %p411, %p412
    %p414 = pneg %p413
    // Predicated region
    $region73: #{tpu_custom_call.1} parent=5 // pred_check
      _
    $region74: #{tpu_custom_call.1} parent=5 // pred_check_branch
      %416 = sbr.rel (%p413) target = $region76
    $region75: #{tpu_custom_call.1} parent=5 // pred_region
      %s417 = ssub.s32 %s20, 1
      %p418 = scmp.lt.s32.totalorder %s25, 1
      %s419 = scalar_select %p418, %s25, 1
      %s420 = smul.addr %s419, 32
      %s421 = smul.addr %s420, 8
      %s422 = scalar_lea.vmem %s0, %s421
      %p423 = pneg %p46
      %p424 = pneg %p43
      %p425 = pneg %p67
      %p426 = pneg %p64
      %p427 = pneg %p88
      %p428 = pneg %p85
      %p429 = pneg %p109
      %p430 = pneg %p106
      %p431 = pneg %p130
      %p432 = pneg %p127
      %p433 = pneg %p151
      %p434 = pneg %p148
      %p435 = pneg %p172
      %p436 = pneg %p169
      %p437 = pneg %p193
      %p438 = pneg %p190
      %p439 = pneg %p214
      %p440 = pneg %p211
      %p441 = pneg %p235
      %p442 = pneg %p232
      %p443 = pneg %p256
      %p444 = pneg %p253
      %p445 = pneg %p277
      %p446 = pneg %p274
      %p447 = pneg %p298
      %p448 = pneg %p295
      %p449 = pneg %p319
      %p450 = pneg %p316
      %p451 = pneg %p345
      %p452 = pneg %p342
      %p453 = scmp.lt.s32.totalorder %s25, 1
      %s454 = scalar_select %p453, %s25, 1
      %s455 = smul.addr %s454, 32
      %s456 = smul.addr %s455, 8
      %s457 = scalar_lea.vmem %s14, %s456
      %p458 = scmp.lt.s32.totalorder %s25, 1
      %s459 = scalar_select %p458, %s25, 1
      %s460 = smul.addr %s459, 32
      %s461 = smul.addr %s460, 8
      %s462 = scalar_lea.vmem %s0, %s461
      %p463 = scmp.lt.s32.totalorder %s25, 1
      %s464 = scalar_select %p463, %s25, 1
      %s465 = smul.addr %s464, 32
      %s466 = smul.addr %s465, 8
      %s467 = scalar_lea.vmem %s14, %s466
      %vm468 = vcmask 261120
      %469 = vst.msk [vmem:[#allocation2] sm:$0xff] %vm468, 0.0
      %470 = vst.msk [vmem:[#allocation2 + $0x8] sm:$0xff] %vm468, 0.0
      %471 = vst.msk [vmem:[#allocation2 + $0x10] sm:$0xff] %vm468, 0.0
      %472 = vst.msk [vmem:[#allocation2 + $0x18] sm:$0xff] %vm468, 0.0
      %s473 = scalar_lea.vmem [#allocation2], 544
      %474 = vst.msk [vmem:[%s473] sm:$0xff] %vm468, 0.0
      %475 = vst.msk [vmem:[%s473 + $0x8] sm:$0xff] %vm468, 0.0
      %476 = vst.msk [vmem:[%s473 + $0x10] sm:$0xff] %vm468, 0.0
      %477 = vst.msk [vmem:[%s473 + $0x18] sm:$0xff] %vm468, 0.0
      %478 = vst.msk [vmem:[#allocation2] sm:$0xff] %vm468, 0.0
      %479 = vst.msk [vmem:[#allocation2 + $0x20] sm:$0xff] %vm468, 0.0
      %480 = vst.msk [vmem:[#allocation2 + $0x40] sm:$0xff] %vm468, 0.0
      %481 = vst.msk [vmem:[#allocation2 + $0x60] sm:$0xff] %vm468, 0.0
      %482 = vst.msk [vmem:[#allocation2 + $0x80] sm:$0xff] %vm468, 0.0
      %483 = vst.msk [vmem:[#allocation2 + $0xa0] sm:$0xff] %vm468, 0.0
      %484 = vst.msk [vmem:[#allocation2 + $0xc0] sm:$0xff] %vm468, 0.0
      %485 = vst.msk [vmem:[#allocation2 + $0xe0] sm:$0xff] %vm468, 0.0
      %486 = vst.msk [vmem:[#allocation2 + $0x100] sm:$0xff] %vm468, 0.0
      %487 = vst.msk [vmem:[#allocation2 + $0x120] sm:$0xff] %vm468, 0.0
      %488 = vst.msk [vmem:[#allocation2 + $0x140] sm:$0xff] %vm468, 0.0
      %489 = vst.msk [vmem:[#allocation2 + $0x160] sm:$0xff] %vm468, 0.0
      %490 = vst.msk [vmem:[#allocation2 + $0x180] sm:$0xff] %vm468, 0.0
      %491 = vst.msk [vmem:[#allocation2 + $0x1a0] sm:$0xff] %vm468, 0.0
      %492 = vst.msk [vmem:[#allocation2 + $0x1c0] sm:$0xff] %vm468, 0.0
      %493 = vst.msk [vmem:[#allocation2 + $0x1e0] sm:$0xff] %vm468, 0.0
      %494 = vst.msk [vmem:[#allocation2 + $0x200] sm:$0xff] %vm468, 0.0
      %495 = vst.msk [vmem:[#allocation2 + $0x220] sm:$0xff] %vm468, 0.0
      %496 = vst.msk [vmem:[#allocation2 + $0x18] sm:$0xff] %vm468, 0.0
      %497 = vst.msk [vmem:[#allocation2 + $0x38] sm:$0xff] %vm468, 0.0
      %498 = vst.msk [vmem:[#allocation2 + $0x58] sm:$0xff] %vm468, 0.0
      %499 = vst.msk [vmem:[#allocation2 + $0x78] sm:$0xff] %vm468, 0.0
      %500 = vst.msk [vmem:[#allocation2 + $0x98] sm:$0xff] %vm468, 0.0
      %501 = vst.msk [vmem:[#allocation2 + $0xb8] sm:$0xff] %vm468, 0.0
      %502 = vst.msk [vmem:[#allocation2 + $0xd8] sm:$0xff] %vm468, 0.0
      %503 = vst.msk [vmem:[#allocation2 + $0xf8] sm:$0xff] %vm468, 0.0
      %504 = vst.msk [vmem:[#allocation2 + $0x118] sm:$0xff] %vm468, 0.0
      %505 = vst.msk [vmem:[#allocation2 + $0x138] sm:$0xff] %vm468, 0.0
      %506 = vst.msk [vmem:[#allocation2 + $0x158] sm:$0xff] %vm468, 0.0
      %507 = vst.msk [vmem:[#allocation2 + $0x178] sm:$0xff] %vm468, 0.0
      %508 = vst.msk [vmem:[#allocation2 + $0x198] sm:$0xff] %vm468, 0.0
      %509 = vst.msk [vmem:[#allocation2 + $0x1b8] sm:$0xff] %vm468, 0.0
      %510 = vst.msk [vmem:[#allocation2 + $0x1d8] sm:$0xff] %vm468, 0.0
      %511 = vst.msk [vmem:[#allocation2 + $0x1f8] sm:$0xff] %vm468, 0.0
      %512 = vst.msk [vmem:[#allocation2 + $0x218] sm:$0xff] %vm468, 0.0
      %513 = vst.msk [vmem:[#allocation2 + $0x238] sm:$0xff] %vm468, 0.0
      %v514 = vld [vmem:[%s462] sm:$0xff]
      %v515 = vld [vmem:[%s462 + $0x8] sm:$0xff]
      %v516 = vld [vmem:[%s462 + $0x10] sm:$0xff]
      %v517 = vld [vmem:[%s462 + $0x18] sm:$0xff]
      %v518 = vld [vmem:[%s462 + $0x20] sm:$0xff]
      %v519 = vld [vmem:[%s462 + $0x28] sm:$0xff]
      %v520 = vld [vmem:[%s462 + $0x30] sm:$0xff]
      %v521 = vld [vmem:[%s462 + $0x38] sm:$0xff]
      %v522 = vld [vmem:[%s462 + $0x40] sm:$0xff]
      %v523 = vld [vmem:[%s462 + $0x48] sm:$0xff]
      %v524 = vld [vmem:[%s462 + $0x50] sm:$0xff]
      %v525 = vld [vmem:[%s462 + $0x58] sm:$0xff]
      %v526 = vld [vmem:[%s462 + $0x60] sm:$0xff]
      %v527 = vld [vmem:[%s462 + $0x68] sm:$0xff]
      %v528 = vld [vmem:[%s462 + $0x70] sm:$0xff]
      %v529 = vld [vmem:[%s462 + $0x78] sm:$0xff]
      %v530 = vld [vmem:[%s462 + $0x80] sm:$0xff]
      %v531 = vld [vmem:[%s462 + $0x88] sm:$0xff]
      %v532 = vld [vmem:[%s462 + $0x90] sm:$0xff]
      %v533 = vld [vmem:[%s462 + $0x98] sm:$0xff]
      %v534 = vld [vmem:[%s462 + $0xa0] sm:$0xff]
      %v535 = vld [vmem:[%s462 + $0xa8] sm:$0xff]
      %v536 = vld [vmem:[%s462 + $0xb0] sm:$0xff]
      %v537 = vld [vmem:[%s462 + $0xb8] sm:$0xff]
      %v538 = vld [vmem:[%s462 + $0xc0] sm:$0xff]
      %v539 = vld [vmem:[%s462 + $0xc8] sm:$0xff]
      %v540 = vld [vmem:[%s462 + $0xd0] sm:$0xff]
      %v541 = vld [vmem:[%s462 + $0xd8] sm:$0xff]
      %v542 = vld [vmem:[%s462 + $0xe0] sm:$0xff]
      %v543 = vld [vmem:[%s462 + $0xe8] sm:$0xff]
      %v544 = vld [vmem:[%s462 + $0xf0] sm:$0xff]
      %v545 = vld [vmem:[%s462 + $0xf8] sm:$0xff]
      %v546 = vld [vmem:[%s1] sm:$0xff]
      %vm547 = vcmask 64512
      %v549 = vsel %vm547, %v514, 0
      %v552 = vsel %vm547, %v515, 0
      %v555 = vsel %vm547, %v516, 0
      %v558 = vsel %vm547, %v517, 0
      %v561 = vsel %vm547, %v518, 0
      %v564 = vsel %vm547, %v519, 0
      %v567 = vsel %vm547, %v520, 0
      %v570 = vsel %vm547, %v521, 0
      %v573 = vsel %vm547, %v522, 0
      %v576 = vsel %vm547, %v523, 0
      %v579 = vsel %vm547, %v524, 0
      %v582 = vsel %vm547, %v525, 0
      %v585 = vsel %vm547, %v526, 0
      %v588 = vsel %vm547, %v527, 0
      %v591 = vsel %vm547, %v528, 0
      %v594 = vsel %vm547, %v529, 0
      %v597 = vsel %vm547, %v530, 0
      %v600 = vsel %vm547, %v531, 0
      %v603 = vsel %vm547, %v532, 0
      %v606 = vsel %vm547, %v533, 0
      %v609 = vsel %vm547, %v534, 0
      %v612 = vsel %vm547, %v535, 0
      %v615 = vsel %vm547, %v536, 0
      %v618 = vsel %vm547, %v537, 0
      %v621 = vsel %vm547, %v538, 0
      %v624 = vsel %vm547, %v539, 0
      %v627 = vsel %vm547, %v540, 0
      %v630 = vsel %vm547, %v541, 0
      %v633 = vsel %vm547, %v542, 0
      %v636 = vsel %vm547, %v543, 0
      %v639 = vsel %vm547, %v544, 0
      %v642 = vsel %vm547, %v545, 0
      %644 = vmatprep.subr.mxu0 0.0
      %645 = vmatpush1.msra.mxu0 %v546
      %646 = vmatprep.subr.mxu0 0.0
      %647 = vmatpush1.msra.mxu0 0.0
      %648 = vmatprep.subr.mxu0 0.0
      %649 = vmatpush1.msra.mxu0 0.0
      %650 = vmatprep.subr.mxu0 0.0
      %651 = vmatpush1.msra.mxu0 0.0
      %652 = vmatprep.subr.mxu0 0.0
      %653 = vmatpush1.msra.mxu0 0.0
      %654 = vmatprep.subr.mxu0 0.0
      %655 = vmatpush1.msra.mxu0 0.0
      %656 = vmatprep.subr.mxu0 0.0
      %657 = vmatpush1.msra.mxu0 0.0
      %658 = vmatprep.subr.mxu0 0.0
      %659 = vmatpush1.msra.mxu0 0.0
      %660 = vmatprep.subr.mxu0 0.0
      %661 = vmatpush1.msra.mxu0 0.0
      %662 = vmatprep.subr.mxu0 0.0
      %663 = vmatpush1.msra.mxu0 0.0
      %664 = vmatprep.subr.mxu0 0.0
      %665 = vmatpush1.msra.mxu0 0.0
      %666 = vmatprep.subr.mxu0 0.0
      %667 = vmatpush1.msra.mxu0 0.0
      %668 = vmatprep.subr.mxu0 0.0
      %669 = vmatpush1.msra.mxu0 0.0
      %670 = vmatprep.subr.mxu0 0.0
      %671 = vmatpush1.msra.mxu0 0.0
      %672 = vmatprep.subr.mxu0 0.0
      %673 = vmatpush1.msra.mxu0 0.0
      %674 = vmatprep.subr.mxu0 0.0
      %675 = vmatpush1.msra.mxu0 0.0
      %676 = vmatprep.subr.mxu0 0.0
      %677 = vmatpush1.msra.mxu0 0.0
      %678 = vmatprep.subr.mxu0 0.0
      %679 = vmatpush1.msra.mxu0 0.0
      %680 = vmatprep.subr.mxu0 0.0
      %681 = vmatpush1.msra.mxu0 0.0
      %682 = vmatprep.subr.mxu0 0.0
      %683 = vmatpush1.msra.mxu0 0.0
      %684 = vmatprep.subr.mxu0 0.0
      %685 = vmatpush1.msra.mxu0 0.0
      %686 = vmatprep.subr.mxu0 0.0
      %687 = vmatpush1.msra.mxu0 0.0
      %688 = vmatprep.subr.mxu0 0.0
      %689 = vmatpush1.msra.mxu0 0.0
      %690 = vmatprep.subr.mxu0 0.0
      %691 = vmatpush1.msra.mxu0 0.0
      %692 = vmatprep.subr.mxu0 0.0
      %693 = vmatpush1.msra.mxu0 0.0
      %694 = vmatprep.subr.mxu0 0.0
      %695 = vmatpush1.msra.mxu0 0.0
      %696 = vmatprep.subr.mxu0 0.0
      %697 = vmatpush1.msra.mxu0 0.0
      %698 = vmatprep.subr.mxu0 0.0
      %699 = vmatpush1.msra.mxu0 0.0
      %700 = vmatprep.subr.mxu0 0.0
      %701 = vmatpush1.msra.mxu0 0.0
      %702 = vmatprep.subr.mxu0 0.0
      %703 = vmatpush1.msra.mxu0 0.0
      %704 = vmatprep.subr.mxu0 0.0
      %705 = vmatpush1.msra.mxu0 0.0
      %706 = vmatprep.subr.mxu0 0.0
      %707 = vmatpush1.msra.mxu0 0.0
      %708 = vmatprep.mubr.f32.mxu0 0.0
      %709 = vmatmul.mubr.f32.gmra.mrb[0].mxu0 %v549
      %v710 = vpop.f32.mrb[0].mxu0
      %v711 = vadd.f32 0.0, %v710
      %v712 = vpop.f32.mrb[0].mxu0
      %713 = vmatprep.mubr.f32.mxu0 0.0
      %714 = vmatmul.mubr.f32.gmra.mrb[0].mxu0 %v552
      %v715 = vpop.f32.mrb[0].mxu0
      %v716 = vadd.f32 0.0, %v715
      %v717 = vpop.f32.mrb[0].mxu0
      %718 = vmatprep.mubr.f32.mxu0 0.0
      %719 = vmatmul.mubr.f32.gmra.mrb[0].mxu0 %v555
      %v720 = vpop.f32.mrb[0].mxu0
      %v721 = vadd.f32 0.0, %v720
      %v722 = vpop.f32.mrb[0].mxu0
      %723 = vmatprep.mubr.f32.mxu0 0.0
      %724 = vmatmul.mubr.f32.gmra.mrb[0].mxu0 %v558
      %v725 = vpop.f32.mrb[0].mxu0
      %v726 = vadd.f32 0.0, %v725
      %v727 = vpop.f32.mrb[0].mxu0
      %728 = vmatprep.mubr.f32.mxu0 0.0
      %729 = vmatmul.mubr.f32.gmra.mrb[0].mxu0 %v561
      %v730 = vpop.f32.mrb[0].mxu0
      %v731 = vadd.f32 0.0, %v730
      %v732 = vpop.f32.mrb[0].mxu0
      %733 = vmatprep.mubr.f32.mxu0 0.0
      %734 = vmatmul.mubr.f32.gmra.mrb[0].mxu0 %v564
      %v735 = vpop.f32.mrb[0].mxu0
      %v736 = vadd.f32 0.0, %v735
      %v737 = vpop.f32.mrb[0].mxu0
      %738 = vmatprep.mubr.f32.mxu0 0.0
      %739 = vmatmul.mubr.f32.gmra.mrb[0].mxu0 %v567
      %v740 = vpop.f32.mrb[0].mxu0
      %v741 = vadd.f32 0.0, %v740
      %v742 = vpop.f32.mrb[0].mxu0
      %743 = vmatprep.mubr.f32.mxu0 0.0
      %744 = vmatmul.mubr.f32.gmra.mrb[0].mxu0 %v570
      %v745 = vpop.f32.mrb[0].mxu0
      %v746 = vadd.f32 0.0, %v745
      %v747 = vpop.f32.mrb[0].mxu0
      %748 = vmatprep.mubr.f32.mxu0 0.0
      %749 = vmatmul.mubr.f32.gmra.mrb[0].mxu0 %v573
      %v750 = vpop.f32.mrb[0].mxu0
      %v751 = vadd.f32 0.0, %v750
      %v752 = vpop.f32.mrb[0].mxu0
      %753 = vmatprep.mubr.f32.mxu0 0.0
      %754 = vmatmul.mubr.f32.gmra.mrb[0].mxu0 %v576
      %v755 = vpop.f32.mrb[0].mxu0
      %v756 = vadd.f32 0.0, %v755
      %v757 = vpop.f32.mrb[0].mxu0
      %758 = vmatprep.mubr.f32.mxu0 0.0
      %759 = vmatmul.mubr.f32.gmra.mrb[0].mxu0 %v579
      %v760 = vpop.f32.mrb[0].mxu0
      %v761 = vadd.f32 0.0, %v760
      %v762 = vpop.f32.mrb[0].mxu0
      %763 = vmatprep.mubr.f32.mxu0 0.0
      %764 = vmatmul.mubr.f32.gmra.mrb[0].mxu0 %v582
      %v765 = vpop.f32.mrb[0].mxu0
      %v766 = vadd.f32 0.0, %v765
      %v767 = vpop.f32.mrb[0].mxu0
      %768 = vmatprep.mubr.f32.mxu0 0.0
      %769 = vmatmul.mubr.f32.gmra.mrb[0].mxu0 %v585
      %v770 = vpop.f32.mrb[0].mxu0
      %v771 = vadd.f32 0.0, %v770
      %v772 = vpop.f32.mrb[0].mxu0
      %773 = vmatprep.mubr.f32.mxu0 0.0
      %774 = vmatmul.mubr.f32.gmra.mrb[0].mxu0 %v588
      %v775 = vpop.f32.mrb[0].mxu0
      %v776 = vadd.f32 0.0, %v775
      %v777 = vpop.f32.mrb[0].mxu0
      %778 = vmatprep.mubr.f32.mxu0 0.0
      %779 = vmatmul.mubr.f32.gmra.mrb[0].mxu0 %v591
      %v780 = vpop.f32.mrb[0].mxu0
      %v781 = vadd.f32 0.0, %v780
      %v782 = vpop.f32.mrb[0].mxu0
      %783 = vmatprep.mubr.f32.mxu0 0.0
      %784 = vmatmul.mubr.f32.gmra.mrb[0].mxu0 %v594
      %v785 = vpop.f32.mrb[0].mxu0
      %v786 = vadd.f32 0.0, %v785
      %v787 = vpop.f32.mrb[0].mxu0
      %788 = vmatprep.mubr.f32.mxu0 0.0
      %789 = vmatmul.mubr.f32.gmra.mrb[0].mxu0 %v597
      %v790 = vpop.f32.mrb[0].mxu0
      %v791 = vadd.f32 0.0, %v790
      %v792 = vpop.f32.mrb[0].mxu0
      %793 = vmatprep.mubr.f32.mxu0 0.0
      %794 = vmatmul.mubr.f32.gmra.mrb[0].mxu0 %v600
      %v795 = vpop.f32.mrb[0].mxu0
      %v796 = vadd.f32 0.0, %v795
      %v797 = vpop.f32.mrb[0].mxu0
      %798 = vmatprep.mubr.f32.mxu0 0.0
      %799 = vmatmul.mubr.f32.gmra.mrb[0].mxu0 %v603
      %v800 = vpop.f32.mrb[0].mxu0
      %v801 = vadd.f32 0.0, %v800
      %v802 = vpop.f32.mrb[0].mxu0
      %803 = vmatprep.mubr.f32.mxu0 0.0
      %804 = vmatmul.mubr.f32.gmra.mrb[0].mxu0 %v606
      %v805 = vpop.f32.mrb[0].mxu0
      %v806 = vadd.f32 0.0, %v805
      %v807 = vpop.f32.mrb[0].mxu0
      %808 = vmatprep.mubr.f32.mxu0 0.0
      %809 = vmatmul.mubr.f32.gmra.mrb[0].mxu0 %v609
      %v810 = vpop.f32.mrb[0].mxu0
      %v811 = vadd.f32 0.0, %v810
      %v812 = vpop.f32.mrb[0].mxu0
      %813 = vmatprep.mubr.f32.mxu0 0.0
      %814 = vmatmul.mubr.f32.gmra.mrb[0].mxu0 %v612
      %v815 = vpop.f32.mrb[0].mxu0
      %v816 = vadd.f32 0.0, %v815
      %v817 = vpop.f32.mrb[0].mxu0
      %818 = vmatprep.mubr.f32.mxu0 0.0
      %819 = vmatmul.mubr.f32.gmra.mrb[0].mxu0 %v615
      %v820 = vpop.f32.mrb[0].mxu0
      %v821 = vadd.f32 0.0, %v820
      %v822 = vpop.f32.mrb[0].mxu0
      %823 = vmatprep.mubr.f32.mxu0 0.0
      %824 = vmatmul.mubr.f32.gmra.mrb[0].mxu0 %v618
      %v825 = vpop.f32.mrb[0].mxu0
      %v826 = vadd.f32 0.0, %v825
      %v827 = vpop.f32.mrb[0].mxu0
      %828 = vmatprep.mubr.f32.mxu0 0.0
      %829 = vmatmul.mubr.f32.gmra.mrb[0].mxu0 %v621
      %v830 = vpop.f32.mrb[0].mxu0
      %v831 = vadd.f32 0.0, %v830
      %v832 = vpop.f32.mrb[0].mxu0
      %833 = vmatprep.mubr.f32.mxu0 0.0
      %834 = vmatmul.mubr.f32.gmra.mrb[0].mxu0 %v624
      %v835 = vpop.f32.mrb[0].mxu0
      %v836 = vadd.f32 0.0, %v835
      %v837 = vpop.f32.mrb[0].mxu0
      %838 = vmatprep.mubr.f32.mxu0 0.0
      %839 = vmatmul.mubr.f32.gmra.mrb[0].mxu0 %v627
      %v840 = vpop.f32.mrb[0].mxu0
      %v841 = vadd.f32 0.0, %v840
      %v842 = vpop.f32.mrb[0].mxu0
      %843 = vmatprep.mubr.f32.mxu0 0.0
      %844 = vmatmul.mubr.f32.gmra.mrb[0].mxu0 %v630
      %v845 = vpop.f32.mrb[0].mxu0
      %v846 = vadd.f32 0.0, %v845
      %v847 = vpop.f32.mrb[0].mxu0
      %848 = vmatprep.mubr.f32.mxu0 0.0
      %849 = vmatmul.mubr.f32.gmra.mrb[0].mxu0 %v633
      %v850 = vpop.f32.mrb[0].mxu0
      %v851 = vadd.f32 0.0, %v850
      %v852 = vpop.f32.mrb[0].mxu0
      %853 = vmatprep.mubr.f32.mxu0 0.0
      %854 = vmatmul.mubr.f32.gmra.mrb[0].mxu0 %v636
      %v855 = vpop.f32.mrb[0].mxu0
      %v856 = vadd.f32 0.0, %v855
      %v857 = vpop.f32.mrb[0].mxu0
      %858 = vmatprep.mubr.f32.mxu0 0.0
      %859 = vmatmul.mubr.f32.gmra.mrb[0].mxu0 %v639
      %v860 = vpop.f32.mrb[0].mxu0
      %v861 = vadd.f32 0.0, %v860
      %v862 = vpop.f32.mrb[0].mxu0
      %863 = vmatprep.mubr.f32.mxu0 0.0
      %864 = vmatmul.mubr.f32.gmra.mrb[0].mxu0 %v642
      %v865 = vpop.f32.mrb[0].mxu0
      %v866 = vadd.f32 0.0, %v865
      %v867 = vpop.f32.mrb[0].mxu0
      %868 = vdwg.mxu0
      %v869 = vld [vmem:[%s2] sm:$0x1]
      %v871 = vlaneseq
      %v872 = vshrl.u32 %v871, 7
      %v873 = vsub.s32 0, %v872
      %v874 = vrot.slane %v869, %v873
      %v876 = vmul.f32 %v711, %v874
      %v877 = vmul.f32 %v716, %v874
      %v878 = vmul.f32 %v721, %v874
      %v879 = vmul.f32 %v726, %v874
      %v880 = vmul.f32 %v731, %v874
      %v881 = vmul.f32 %v736, %v874
      %v882 = vmul.f32 %v741, %v874
      %v883 = vmul.f32 %v746, %v874
      %v884 = vmul.f32 %v751, %v874
      %v885 = vmul.f32 %v756, %v874
      %v886 = vmul.f32 %v761, %v874
      %v887 = vmul.f32 %v766, %v874
      %v888 = vmul.f32 %v771, %v874
      %v889 = vmul.f32 %v776, %v874
      %v890 = vmul.f32 %v781, %v874
      %v891 = vmul.f32 %v786, %v874
      %v892 = vmul.f32 %v791, %v874
      %v893 = vmul.f32 %v796, %v874
      %v894 = vmul.f32 %v801, %v874
      %v895 = vmul.f32 %v806, %v874
      %v896 = vmul.f32 %v811, %v874
      %v897 = vmul.f32 %v816, %v874
      %v898 = vmul.f32 %v821, %v874
      %v899 = vmul.f32 %v826, %v874
      %v900 = vmul.f32 %v831, %v874
      %v901 = vmul.f32 %v836, %v874
      %v902 = vmul.f32 %v841, %v874
      %v903 = vmul.f32 %v846, %v874
      %v904 = vmul.f32 %v851, %v874
      %v905 = vmul.f32 %v856, %v874
      %v906 = vmul.f32 %v861, %v874
      %v907 = vmul.f32 %v866, %v874
      %v908 = vld [vmem:[%s3] sm:$0x1]
      %v910 = vlaneseq
      %v911 = vshrl.u32 %v910, 7
      %v912 = vsub.s32 0, %v911
      %v913 = vrot.slane %v908, %v912
      %v915 = vadd.f32 %v876, %v913
      %v916 = vadd.f32 %v877, %v913
      %v917 = vadd.f32 %v878, %v913
      %v918 = vadd.f32 %v879, %v913
      %v919 = vadd.f32 %v880, %v913
      %v920 = vadd.f32 %v881, %v913
      %v921 = vadd.f32 %v882, %v913
      %v922 = vadd.f32 %v883, %v913
      %v923 = vadd.f32 %v884, %v913
      %v924 = vadd.f32 %v885, %v913
      %v925 = vadd.f32 %v886, %v913
      %v926 = vadd.f32 %v887, %v913
      %v927 = vadd.f32 %v888, %v913
      %v928 = vadd.f32 %v889, %v913
      %v929 = vadd.f32 %v890, %v913
      %v930 = vadd.f32 %v891, %v913
      %v931 = vadd.f32 %v892, %v913
      %v932 = vadd.f32 %v893, %v913
      %v933 = vadd.f32 %v894, %v913
      %v934 = vadd.f32 %v895, %v913
      %v935 = vadd.f32 %v896, %v913
      %v936 = vadd.f32 %v897, %v913
      %v937 = vadd.f32 %v898, %v913
      %v938 = vadd.f32 %v899, %v913
      %v939 = vadd.f32 %v900, %v913
      %v940 = vadd.f32 %v901, %v913
      %v941 = vadd.f32 %v902, %v913
      %v942 = vadd.f32 %v903, %v913
      %v943 = vadd.f32 %v904, %v913
      %v944 = vadd.f32 %v905, %v913
      %v945 = vadd.f32 %v906, %v913
      %v946 = vadd.f32 %v907, %v913
      %v947 = vxor.u32 %v915, 2147483648
      %v948 = vxor.u32 %v916, 2147483648
      %v949 = vxor.u32 %v917, 2147483648
      %v950 = vxor.u32 %v918, 2147483648
      %v951 = vxor.u32 %v919, 2147483648
      %v952 = vxor.u32 %v920, 2147483648
      %v953 = vxor.u32 %v921, 2147483648
      %v954 = vxor.u32 %v922, 2147483648
      %v955 = vxor.u32 %v923, 2147483648
      %v956 = vxor.u32 %v924, 2147483648
      %v957 = vxor.u32 %v925, 2147483648
      %v958 = vxor.u32 %v926, 2147483648
      %v959 = vxor.u32 %v927, 2147483648
      %v960 = vxor.u32 %v928, 2147483648
      %v961 = vxor.u32 %v929, 2147483648
      %v962 = vxor.u32 %v930, 2147483648
      %v963 = vxor.u32 %v931, 2147483648
      %v964 = vxor.u32 %v932, 2147483648
      %v965 = vxor.u32 %v933, 2147483648
      %v966 = vxor.u32 %v934, 2147483648
      %v967 = vxor.u32 %v935, 2147483648
      %v968 = vxor.u32 %v936, 2147483648
      %v969 = vxor.u32 %v937, 2147483648
      %v970 = vxor.u32 %v938, 2147483648
      %v971 = vxor.u32 %v939, 2147483648
      %v972 = vxor.u32 %v940, 2147483648
      %v973 = vxor.u32 %v941, 2147483648
      %v974 = vxor.u32 %v942, 2147483648
      %v975 = vxor.u32 %v943, 2147483648
      %v976 = vxor.u32 %v944, 2147483648
      %v977 = vxor.u32 %v945, 2147483648
      %v978 = vxor.u32 %v946, 2147483648
      %v979 = vmul.f32 %v947, 1.442695
      %v980 = vpow.pop %v979
      %v981 = vmul.f32 %v948, 1.442695
      %v982 = vpow.pop %v981
      %v983 = vmul.f32 %v949, 1.442695
      %v984 = vpow.pop %v983
      %v985 = vmul.f32 %v950, 1.442695
      %v986 = vpow.pop %v985
      %v987 = vmul.f32 %v951, 1.442695
      %v988 = vpow.pop %v987
      %v989 = vmul.f32 %v952, 1.442695
      %v990 = vpow.pop %v989
      %v991 = vmul.f32 %v953, 1.442695
      %v992 = vpow.pop %v991
      %v993 = vmul.f32 %v954, 1.442695
      %v994 = vpow.pop %v993
      %v995 = vmul.f32 %v955, 1.442695
      %v996 = vpow.pop %v995
      %v997 = vmul.f32 %v956, 1.442695
      %v998 = vpow.pop %v997
      %v999 = vmul.f32 %v957, 1.442695
      %v1000 = vpow.pop %v999
      %v1001 = vmul.f32 %v958, 1.442695
      %v1002 = vpow.pop %v1001
      %v1003 = vmul.f32 %v959, 1.442695
      %v1004 = vpow.pop %v1003
      %v1005 = vmul.f32 %v960, 1.442695
      %v1006 = vpow.pop %v1005
      %v1007 = vmul.f32 %v961, 1.442695
      %v1008 = vpow.pop %v1007
      %v1009 = vmul.f32 %v962, 1.442695
      %v1010 = vpow.pop %v1009
      %v1011 = vmul.f32 %v963, 1.442695
      %v1012 = vpow.pop %v1011
      %v1013 = vmul.f32 %v964, 1.442695
      %v1014 = vpow.pop %v1013
      %v1015 = vmul.f32 %v965, 1.442695
      %v1016 = vpow.pop %v1015
      %v1017 = vmul.f32 %v966, 1.442695
      %v1018 = vpow.pop %v1017
      %v1019 = vmul.f32 %v967, 1.442695
      %v1020 = vpow.pop %v1019
      %v1021 = vmul.f32 %v968, 1.442695
      %v1022 = vpow.pop %v1021
      %v1023 = vmul.f32 %v969, 1.442695
      %v1024 = vpow.pop %v1023
      %v1025 = vmul.f32 %v970, 1.442695
      %v1026 = vpow.pop %v1025
      %v1027 = vmul.f32 %v971, 1.442695
      %v1028 = vpow.pop %v1027
      %v1029 = vmul.f32 %v972, 1.442695
      %v1030 = vpow.pop %v1029
      %v1031 = vmul.f32 %v973, 1.442695
      %v1032 = vpow.pop %v1031
      %v1033 = vmul.f32 %v974, 1.442695
      %v1034 = vpow.pop %v1033
      %v1035 = vmul.f32 %v975, 1.442695
      %v1036 = vpow.pop %v1035
      %v1037 = vmul.f32 %v976, 1.442695
      %v1038 = vpow.pop %v1037
      %v1039 = vmul.f32 %v977, 1.442695
      %v1040 = vpow.pop %v1039
      %v1041 = vmul.f32 %v978, 1.442695
      %v1042 = vpow.pop %v1041
      %v1043 = vadd.f32 %v980, 1.0
      %v1044 = vadd.f32 %v982, 1.0
      %v1045 = vadd.f32 %v984, 1.0
      %v1046 = vadd.f32 %v986, 1.0
      %v1047 = vadd.f32 %v988, 1.0
      %v1048 = vadd.f32 %v990, 1.0
      %v1049 = vadd.f32 %v992, 1.0
      %v1050 = vadd.f32 %v994, 1.0
      %v1051 = vadd.f32 %v996, 1.0
      %v1052 = vadd.f32 %v998, 1.0
      %v1053 = vadd.f32 %v1000, 1.0
      %v1054 = vadd.f32 %v1002, 1.0
      %v1055 = vadd.f32 %v1004, 1.0
      %v1056 = vadd.f32 %v1006, 1.0
      %v1057 = vadd.f32 %v1008, 1.0
      %v1058 = vadd.f32 %v1010, 1.0
      %v1059 = vadd.f32 %v1012, 1.0
      %v1060 = vadd.f32 %v1014, 1.0
      %v1061 = vadd.f32 %v1016, 1.0
      %v1062 = vadd.f32 %v1018, 1.0
      %v1063 = vadd.f32 %v1020, 1.0
      %v1064 = vadd.f32 %v1022, 1.0
      %v1065 = vadd.f32 %v1024, 1.0
      %v1066 = vadd.f32 %v1026, 1.0
      %v1067 = vadd.f32 %v1028, 1.0
      %v1068 = vadd.f32 %v1030, 1.0
      %v1069 = vadd.f32 %v1032, 1.0
      %v1070 = vadd.f32 %v1034, 1.0
      %v1071 = vadd.f32 %v1036, 1.0
      %v1072 = vadd.f32 %v1038, 1.0
      %v1073 = vadd.f32 %v1040, 1.0
      %v1074 = vadd.f32 %v1042, 1.0
      %v1075 = vrcp.pop %v1043
      %v1076 = vmul.f32 1.0, %v1075
      %v1077 = vrcp.pop %v1044
      %v1078 = vmul.f32 1.0, %v1077
      %v1079 = vrcp.pop %v1045
      %v1080 = vmul.f32 1.0, %v1079
      %v1081 = vrcp.pop %v1046
      %v1082 = vmul.f32 1.0, %v1081
      %v1083 = vrcp.pop %v1047
      %v1084 = vmul.f32 1.0, %v1083
      %v1085 = vrcp.pop %v1048
      %v1086 = vmul.f32 1.0, %v1085
      %v1087 = vrcp.pop %v1049
      %v1088 = vmul.f32 1.0, %v1087
      %v1089 = vrcp.pop %v1050
      %v1090 = vmul.f32 1.0, %v1089
      %v1091 = vrcp.pop %v1051
      %v1092 = vmul.f32 1.0, %v1091
      %v1093 = vrcp.pop %v1052
      %v1094 = vmul.f32 1.0, %v1093
      %v1095 = vrcp.pop %v1053
      %v1096 = vmul.f32 1.0, %v1095
      %v1097 = vrcp.pop %v1054
      %v1098 = vmul.f32 1.0, %v1097
      %v1099 = vrcp.pop %v1055
      %v1100 = vmul.f32 1.0, %v1099
      %v1101 = vrcp.pop %v1056
      %v1102 = vmul.f32 1.0, %v1101
      %v1103 = vrcp.pop %v1057
      %v1104 = vmul.f32 1.0, %v1103
      %v1105 = vrcp.pop %v1058
      %v1106 = vmul.f32 1.0, %v1105
      %v1107 = vrcp.pop %v1059
      %v1108 = vmul.f32 1.0, %v1107
      %v1109 = vrcp.pop %v1060
      %v1110 = vmul.f32 1.0, %v1109
      %v1111 = vrcp.pop %v1061
      %v1112 = vmul.f32 1.0, %v1111
      %v1113 = vrcp.pop %v1062
      %v1114 = vmul.f32 1.0, %v1113
      %v1115 = vrcp.pop %v1063
      %v1116 = vmul.f32 1.0, %v1115
      %v1117 = vrcp.pop %v1064
      %v1118 = vmul.f32 1.0, %v1117
      %v1119 = vrcp.pop %v1065
      %v1120 = vmul.f32 1.0, %v1119
      %v1121 = vrcp.pop %v1066
      %v1122 = vmul.f32 1.0, %v1121
      %v1123 = vrcp.pop %v1067
      %v1124 = vmul.f32 1.0, %v1123
      %v1125 = vrcp.pop %v1068
      %v1126 = vmul.f32 1.0, %v1125
      %v1127 = vrcp.pop %v1069
      %v1128 = vmul.f32 1.0, %v1127
      %v1129 = vrcp.pop %v1070
      %v1130 = vmul.f32 1.0, %v1129
      %v1131 = vrcp.pop %v1071
      %v1132 = vmul.f32 1.0, %v1131
      %v1133 = vrcp.pop %v1072
      %v1134 = vmul.f32 1.0, %v1133
      %v1135 = vrcp.pop %v1073
      %v1136 = vmul.f32 1.0, %v1135
      %v1137 = vrcp.pop %v1074
      %v1138 = vmul.f32 1.0, %v1137
      %v1139 = vmul.f32 %v915, %v1076
      %v1140 = vmul.f32 %v916, %v1078
      %v1141 = vmul.f32 %v917, %v1080
      %v1142 = vmul.f32 %v918, %v1082
      %v1143 = vmul.f32 %v919, %v1084
      %v1144 = vmul.f32 %v920, %v1086
      %v1145 = vmul.f32 %v921, %v1088
      %v1146 = vmul.f32 %v922, %v1090
      %v1147 = vmul.f32 %v923, %v1092
      %v1148 = vmul.f32 %v924, %v1094
      %v1149 = vmul.f32 %v925, %v1096
      %v1150 = vmul.f32 %v926, %v1098
      %v1151 = vmul.f32 %v927, %v1100
      %v1152 = vmul.f32 %v928, %v1102
      %v1153 = vmul.f32 %v929, %v1104
      %v1154 = vmul.f32 %v930, %v1106
      %v1155 = vmul.f32 %v931, %v1108
      %v1156 = vmul.f32 %v932, %v1110
      %v1157 = vmul.f32 %v933, %v1112
      %v1158 = vmul.f32 %v934, %v1114
      %v1159 = vmul.f32 %v935, %v1116
      %v1160 = vmul.f32 %v936, %v1118
      %v1161 = vmul.f32 %v937, %v1120
      %v1162 = vmul.f32 %v938, %v1122
      %v1163 = vmul.f32 %v939, %v1124
      %v1164 = vmul.f32 %v940, %v1126
      %v1165 = vmul.f32 %v941, %v1128
      %v1166 = vmul.f32 %v942, %v1130
      %v1167 = vmul.f32 %v943, %v1132
      %v1168 = vmul.f32 %v944, %v1134
      %v1169 = vmul.f32 %v945, %v1136
      %v1170 = vmul.f32 %v946, %v1138
      %s1171 = scalar_lea.vmem [#allocation2], 32
      %1172 = vst.msk [vmem:[%s1171 + $0x8] sm:$0xff] %vm468, %v1139
      %1173 = vst.msk [vmem:[%s1171 + $0x10] sm:$0xff] %vm468, %v1140
      %1174 = vst.msk [vmem:[%s1171 + $0x28] sm:$0xff] %vm468, %v1141
      %1175 = vst.msk [vmem:[%s1171 + $0x30] sm:$0xff] %vm468, %v1142
      %1176 = vst.msk [vmem:[%s1171 + $0x48] sm:$0xff] %vm468, %v1143
      %1177 = vst.msk [vmem:[%s1171 + $0x50] sm:$0xff] %vm468, %v1144
      %1178 = vst.msk [vmem:[%s1171 + $0x68] sm:$0xff] %vm468, %v1145
      %1179 = vst.msk [vmem:[%s1171 + $0x70] sm:$0xff] %vm468, %v1146
      %1180 = vst.msk [vmem:[%s1171 + $0x88] sm:$0xff] %vm468, %v1147
      %1181 = vst.msk [vmem:[%s1171 + $0x90] sm:$0xff] %vm468, %v1148
      %1182 = vst.msk [vmem:[%s1171 + $0xa8] sm:$0xff] %vm468, %v1149
      %1183 = vst.msk [vmem:[%s1171 + $0xb0] sm:$0xff] %vm468, %v1150
      %1184 = vst.msk [vmem:[%s1171 + $0xc8] sm:$0xff] %vm468, %v1151
      %1185 = vst.msk [vmem:[%s1171 + $0xd0] sm:$0xff] %vm468, %v1152
      %1186 = vst.msk [vmem:[%s1171 + $0xe8] sm:$0xff] %vm468, %v1153
      %1187 = vst.msk [vmem:[%s1171 + $0xf0] sm:$0xff] %vm468, %v1154
      %1188 = vst.msk [vmem:[%s1171 + $0x108] sm:$0xff] %vm468, %v1155
      %1189 = vst.msk [vmem:[%s1171 + $0x110] sm:$0xff] %vm468, %v1156
      %1190 = vst.msk [vmem:[%s1171 + $0x128] sm:$0xff] %vm468, %v1157
      %1191 = vst.msk [vmem:[%s1171 + $0x130] sm:$0xff] %vm468, %v1158
      %1192 = vst.msk [vmem:[%s1171 + $0x148] sm:$0xff] %vm468, %v1159
      %1193 = vst.msk [vmem:[%s1171 + $0x150] sm:$0xff] %vm468, %v1160
      %1194 = vst.msk [vmem:[%s1171 + $0x168] sm:$0xff] %vm468, %v1161
      %1195 = vst.msk [vmem:[%s1171 + $0x170] sm:$0xff] %vm468, %v1162
      %1196 = vst.msk [vmem:[%s1171 + $0x188] sm:$0xff] %vm468, %v1163
      %1197 = vst.msk [vmem:[%s1171 + $0x190] sm:$0xff] %vm468, %v1164
      %1198 = vst.msk [vmem:[%s1171 + $0x1a8] sm:$0xff] %vm468, %v1165
      %1199 = vst.msk [vmem:[%s1171 + $0x1b0] sm:$0xff] %vm468, %v1166
      %1200 = vst.msk [vmem:[%s1171 + $0x1c8] sm:$0xff] %vm468, %v1167
      %1201 = vst.msk [vmem:[%s1171 + $0x1d0] sm:$0xff] %vm468, %v1168
      %1202 = vst.msk [vmem:[%s1171 + $0x1e8] sm:$0xff] %vm468, %v1169
      %1203 = vst.msk [vmem:[%s1171 + $0x1f0] sm:$0xff] %vm468, %v1170
      %v1204 = vld [vmem:[%s4] sm:$0x7]
      %v1205 = vld [vmem:[%s4 + $0x4] sm:$0x7]
      %v1206 = vld [vmem:[%s4 + $0x8] sm:$0x7]
      %v1207 = vld [vmem:[#allocation2] sm:$0xff]
      %v1208 = vld [vmem:[#allocation2 + $0x8] sm:$0xff]
      %v1209 = vld [vmem:[#allocation2 + $0x10] sm:$0xff]
      %v1210 = vld [vmem:[#allocation2 + $0x18] sm:$0xff]
      %v1211 = vld [vmem:[#allocation2 + $0x20] sm:$0xff]
      %v1212 = vld [vmem:[#allocation2 + $0x28] sm:$0xff]
      %v1213 = vld [vmem:[#allocation2 + $0x30] sm:$0xff]
      %v1214 = vld [vmem:[#allocation2 + $0x38] sm:$0xff]
      %v1215 = vld [vmem:[#allocation2 + $0x40] sm:$0xff]
      %v1216 = vld [vmem:[#allocation2 + $0x48] sm:$0xff]
      %v1217 = vld [vmem:[#allocation2 + $0x50] sm:$0xff]
      %v1218 = vld [vmem:[#allocation2 + $0x58] sm:$0xff]
      %v1219 = vld [vmem:[#allocation2 + $0x60] sm:$0xff]
      %v1220 = vld [vmem:[#allocation2 + $0x68] sm:$0xff]
      %v1221 = vld [vmem:[#allocation2 + $0x70] sm:$0xff]
      %v1222 = vld [vmem:[#allocation2 + $0x78] sm:$0xff]
      %v1223 = vld [vmem:[#allocation2 + $0x80] sm:$0xff]
      %v1224 = vld [vmem:[#allocation2 + $0x88] sm:$0xff]
      %v1225 = vld [vmem:[#allocation2 + $0x90] sm:$0xff]
      %v1226 = vld [vmem:[#allocation2 + $0x98] sm:$0xff]
      %v1227 = vld [vmem:[#allocation2 + $0xa0] sm:$0xff]
      %v1228 = vld [vmem:[#allocation2 + $0xa8] sm:$0xff]
      %v1229 = vld [vmem:[#allocation2 + $0xb0] sm:$0xff]
      %v1230 = vld [vmem:[#allocation2 + $0xb8] sm:$0xff]
      %v1231 = vld [vmem:[#allocation2 + $0xc0] sm:$0xff]
      %v1232 = vld [vmem:[#allocation2 + $0xc8] sm:$0xff]
      %v1233 = vld [vmem:[#allocation2 + $0xd0] sm:$0xff]
      %v1234 = vld [vmem:[#allocation2 + $0xd8] sm:$0xff]
      %v1235 = vld [vmem:[#allocation2 + $0xe0] sm:$0xff]
      %v1236 = vld [vmem:[#allocation2 + $0xe8] sm:$0xff]
      %v1237 = vld [vmem:[#allocation2 + $0xf0] sm:$0xff]
      %v1238 = vld [vmem:[#allocation2 + $0xf8] sm:$0xff]
      %v1239 = vld [vmem:[#allocation2 + $0x100] sm:$0xff]
      %v1240 = vld [vmem:[#allocation2 + $0x108] sm:$0xff]
      %v1241 = vld [vmem:[#allocation2 + $0x110] sm:$0xff]
      %v1242 = vld [vmem:[#allocation2 + $0x118] sm:$0xff]
      %v1243 = vld [vmem:[#allocation2 + $0x120] sm:$0xff]
      %v1244 = vld [vmem:[#allocation2 + $0x128] sm:$0xff]
      %v1245 = vld [vmem:[#allocation2 + $0x130] sm:$0xff]
      %v1246 = vld [vmem:[#allocation2 + $0x138] sm:$0xff]
      %v1247 = vld [vmem:[#allocation2 + $0x140] sm:$0xff]
      %v1248 = vld [vmem:[#allocation2 + $0x148] sm:$0xff]
      %v1249 = vld [vmem:[#allocation2 + $0x150] sm:$0xff]
      %v1250 = vld [vmem:[#allocation2 + $0x158] sm:$0xff]
      %v1251 = vld [vmem:[#allocation2 + $0x160] sm:$0xff]
      %v1252 = vld [vmem:[#allocation2 + $0x168] sm:$0xff]
      %v1253 = vld [vmem:[#allocation2 + $0x170] sm:$0xff]
      %v1254 = vld [vmem:[#allocation2 + $0x178] sm:$0xff]
      %v1255 = vld [vmem:[#allocation2 + $0x180] sm:$0xff]
      %v1256 = vld [vmem:[#allocation2 + $0x188] sm:$0xff]
      %v1257 = vld [vmem:[#allocation2 + $0x190] sm:$0xff]
      %v1258 = vld [vmem:[#allocation2 + $0x198] sm:$0xff]
      %v1259 = vld [vmem:[#allocation2 + $0x1a0] sm:$0xff]
      %v1260 = vld [vmem:[#allocation2 + $0x1a8] sm:$0xff]
      %v1261 = vld [vmem:[#allocation2 + $0x1b0] sm:$0xff]
      %v1262 = vld [vmem:[#allocation2 + $0x1b8] sm:$0xff]
      %v1263 = vld [vmem:[#allocation2 + $0x1c0] sm:$0xff]
      %v1264 = vld [vmem:[#allocation2 + $0x1c8] sm:$0xff]
      %v1265 = vld [vmem:[#allocation2 + $0x1d0] sm:$0xff]
      %v1266 = vld [vmem:[#allocation2 + $0x1d8] sm:$0xff]
      %v1267 = vld [vmem:[#allocation2 + $0x1e0] sm:$0xff]
      %v1268 = vld [vmem:[#allocation2 + $0x1e8] sm:$0xff]
      %v1269 = vld [vmem:[#allocation2 + $0x1f0] sm:$0xff]
      %v1270 = vld [vmem:[#allocation2 + $0x1f8] sm:$0xff]
      %v1271 = vld [vmem:[#allocation2 + $0x200] sm:$0xff]
      %v1272 = vld [vmem:[#allocation2 + $0x208] sm:$0xff]
      %v1273 = vld [vmem:[#allocation2 + $0x210] sm:$0xff]
      %v1274 = vld [vmem:[#allocation2 + $0x218] sm:$0xff]
      %v1275 = vld [vmem:[#allocation2 + $0x220] sm:$0xff]
      %v1276 = vld [vmem:[#allocation2 + $0x228] sm:$0xff]
      %v1277 = vld [vmem:[#allocation2 + $0x230] sm:$0xff]
      %v1278 = vld [vmem:[#allocation2 + $0x238] sm:$0xff]
      %v1279 = vlaneseq
      %v1280 = vshrl.u32 %v1279, 7
      %v1281 = vsub.s32 0, %v1280
      %v1282 = vrot.slane %v1204, %v1281
      %v1283 = vmul.f32 %v1207, %v1282
      %v1284 = vmul.f32 %v1208, %v1282
      %v1285 = vmul.f32 %v1209, %v1282
      %v1286 = vmul.f32 %v1211, %v1282
      %v1287 = vmul.f32 %v1212, %v1282
      %v1288 = vmul.f32 %v1213, %v1282
      %v1289 = vmul.f32 %v1215, %v1282
      %v1290 = vmul.f32 %v1216, %v1282
      %v1291 = vmul.f32 %v1217, %v1282
      %v1292 = vmul.f32 %v1219, %v1282
      %v1293 = vmul.f32 %v1220, %v1282
      %v1294 = vmul.f32 %v1221, %v1282
      %v1295 = vmul.f32 %v1223, %v1282
      %v1296 = vmul.f32 %v1224, %v1282
      %v1297 = vmul.f32 %v1225, %v1282
      %v1298 = vmul.f32 %v1227, %v1282
      %v1299 = vmul.f32 %v1228, %v1282
      %v1300 = vmul.f32 %v1229, %v1282
      %v1301 = vmul.f32 %v1231, %v1282
      %v1302 = vmul.f32 %v1232, %v1282
      %v1303 = vmul.f32 %v1233, %v1282
      %v1304 = vmul.f32 %v1235, %v1282
      %v1305 = vmul.f32 %v1236, %v1282
      %v1306 = vmul.f32 %v1237, %v1282
      %v1307 = vmul.f32 %v1239, %v1282
      %v1308 = vmul.f32 %v1240, %v1282
      %v1309 = vmul.f32 %v1241, %v1282
      %v1310 = vmul.f32 %v1243, %v1282
      %v1311 = vmul.f32 %v1244, %v1282
      %v1312 = vmul.f32 %v1245, %v1282
      %v1313 = vmul.f32 %v1247, %v1282
      %v1314 = vmul.f32 %v1248, %v1282
      %v1315 = vmul.f32 %v1249, %v1282
      %v1316 = vmul.f32 %v1251, %v1282
      %v1317 = vmul.f32 %v1252, %v1282
      %v1318 = vmul.f32 %v1253, %v1282
      %v1319 = vmul.f32 %v1255, %v1282
      %v1320 = vmul.f32 %v1256, %v1282
      %v1321 = vmul.f32 %v1257, %v1282
      %v1322 = vmul.f32 %v1259, %v1282
      %v1323 = vmul.f32 %v1260, %v1282
      %v1324 = vmul.f32 %v1261, %v1282
      %v1325 = vmul.f32 %v1263, %v1282
      %v1326 = vmul.f32 %v1264, %v1282
      %v1327 = vmul.f32 %v1265, %v1282
      %v1328 = vmul.f32 %v1267, %v1282
      %v1329 = vmul.f32 %v1268, %v1282
      %v1330 = vmul.f32 %v1269, %v1282
      %v1331 = vadd.f32 %v1283, 0.0
      %v1332 = vadd.f32 %v1284, 0.0
      %v1333 = vadd.f32 %v1285, 0.0
      %v1334 = vadd.f32 %v1286, 0.0
      %v1335 = vadd.f32 %v1287, 0.0
      %v1336 = vadd.f32 %v1288, 0.0
      %v1337 = vadd.f32 %v1289, 0.0
      %v1338 = vadd.f32 %v1290, 0.0
      %v1339 = vadd.f32 %v1291, 0.0
      %v1340 = vadd.f32 %v1292, 0.0
      %v1341 = vadd.f32 %v1293, 0.0
      %v1342 = vadd.f32 %v1294, 0.0
      %v1343 = vadd.f32 %v1295, 0.0
      %v1344 = vadd.f32 %v1296, 0.0
      %v1345 = vadd.f32 %v1297, 0.0
      %v1346 = vadd.f32 %v1298, 0.0
      %v1347 = vadd.f32 %v1299, 0.0
      %v1348 = vadd.f32 %v1300, 0.0
      %v1349 = vadd.f32 %v1301, 0.0
      %v1350 = vadd.f32 %v1302, 0.0
      %v1351 = vadd.f32 %v1303, 0.0
      %v1352 = vadd.f32 %v1304, 0.0
      %v1353 = vadd.f32 %v1305, 0.0
      %v1354 = vadd.f32 %v1306, 0.0
      %v1355 = vadd.f32 %v1307, 0.0
      %v1356 = vadd.f32 %v1308, 0.0
      %v1357 = vadd.f32 %v1309, 0.0
      %v1358 = vadd.f32 %v1310, 0.0
      %v1359 = vadd.f32 %v1311, 0.0
      %v1360 = vadd.f32 %v1312, 0.0
      %v1361 = vadd.f32 %v1313, 0.0
      %v1362 = vadd.f32 %v1314, 0.0
      %v1363 = vadd.f32 %v1315, 0.0
      %v1364 = vadd.f32 %v1316, 0.0
      %v1365 = vadd.f32 %v1317, 0.0
      %v1366 = vadd.f32 %v1318, 0.0
      %v1367 = vadd.f32 %v1319, 0.0
      %v1368 = vadd.f32 %v1320, 0.0
      %v1369 = vadd.f32 %v1321, 0.0
      %v1370 = vadd.f32 %v1322, 0.0
      %v1371 = vadd.f32 %v1323, 0.0
      %v1372 = vadd.f32 %v1324, 0.0
      %v1373 = vadd.f32 %v1325, 0.0
      %v1374 = vadd.f32 %v1326, 0.0
      %v1375 = vadd.f32 %v1327, 0.0
      %v1376 = vadd.f32 %v1328, 0.0
      %v1377 = vadd.f32 %v1329, 0.0
      %v1378 = vadd.f32 %v1330, 0.0
      %v1379 = vlaneseq
      %v1380 = vshrl.u32 %v1379, 7
      %v1381 = vsub.s32 1, %v1380
      %v1382 = vrot.slane %v1204, %v1381
      %v1383 = vmul.f32 %v1208, %v1382
      %v1384 = vmul.f32 %v1209, %v1382
      %v1385 = vmul.f32 %v1212, %v1382
      %v1386 = vmul.f32 %v1213, %v1382
      %v1387 = vmul.f32 %v1216, %v1382
      %v1388 = vmul.f32 %v1217, %v1382
      %v1389 = vmul.f32 %v1220, %v1382
      %v1390 = vmul.f32 %v1221, %v1382
      %v1391 = vmul.f32 %v1224, %v1382
      %v1392 = vmul.f32 %v1225, %v1382
      %v1393 = vmul.f32 %v1228, %v1382
      %v1394 = vmul.f32 %v1229, %v1382
      %v1395 = vmul.f32 %v1232, %v1382
      %v1396 = vmul.f32 %v1233, %v1382
      %v1397 = vmul.f32 %v1236, %v1382
      %v1398 = vmul.f32 %v1237, %v1382
      %v1399 = vmul.f32 %v1240, %v1382
      %v1400 = vmul.f32 %v1241, %v1382
      %v1401 = vmul.f32 %v1244, %v1382
      %v1402 = vmul.f32 %v1245, %v1382
      %v1403 = vmul.f32 %v1248, %v1382
      %v1404 = vmul.f32 %v1249, %v1382
      %v1405 = vmul.f32 %v1252, %v1382
      %v1406 = vmul.f32 %v1253, %v1382
      %v1407 = vmul.f32 %v1256, %v1382
      %v1408 = vmul.f32 %v1257, %v1382
      %v1409 = vmul.f32 %v1260, %v1382
      %v1410 = vmul.f32 %v1261, %v1382
      %v1411 = vmul.f32 %v1264, %v1382
      %v1412 = vmul.f32 %v1265, %v1382
      %v1413 = vmul.f32 %v1268, %v1382
      %v1414 = vmul.f32 %v1269, %v1382
      %vm1447 = vcmask 1046528
      %v1448 = vrot.slane %v1383, 1
      %v1449 = vrot.slane %v1384, 1
      %v1450 = vsel %vm1447, %v1448, %v1449
      %v1451 = vrot.slane %v1385, 1
      %v1452 = vrot.slane %v1386, 1
      %v1453 = vsel %vm1447, %v1451, %v1452
      %v1454 = vrot.slane %v1387, 1
      %v1455 = vrot.slane %v1388, 1
      %v1456 = vsel %vm1447, %v1454, %v1455
      %v1457 = vrot.slane %v1389, 1
      %v1458 = vrot.slane %v1390, 1
      %v1459 = vsel %vm1447, %v1457, %v1458
      %v1460 = vrot.slane %v1391, 1
      %v1461 = vrot.slane %v1392, 1
      %v1462 = vsel %vm1447, %v1460, %v1461
      %v1463 = vrot.slane %v1393, 1
      %v1464 = vrot.slane %v1394, 1
      %v1465 = vsel %vm1447, %v1463, %v1464
      %v1466 = vrot.slane %v1395, 1
      %v1467 = vrot.slane %v1396, 1
      %v1468 = vsel %vm1447, %v1466, %v1467
      %v1469 = vrot.slane %v1397, 1
      %v1470 = vrot.slane %v1398, 1
      %v1471 = vsel %vm1447, %v1469, %v1470
      %v1472 = vrot.slane %v1399, 1
      %v1473 = vrot.slane %v1400, 1
      %v1474 = vsel %vm1447, %v1472, %v1473
      %v1475 = vrot.slane %v1401, 1
      %v1476 = vrot.slane %v1402, 1
      %v1477 = vsel %vm1447, %v1475, %v1476
      %v1478 = vrot.slane %v1403, 1
      %v1479 = vrot.slane %v1404, 1
      %v1480 = vsel %vm1447, %v1478, %v1479
      %v1481 = vrot.slane %v1405, 1
      %v1482 = vrot.slane %v1406, 1
      %v1483 = vsel %vm1447, %v1481, %v1482
      %v1484 = vrot.slane %v1407, 1
      %v1485 = vrot.slane %v1408, 1
      %v1486 = vsel %vm1447, %v1484, %v1485
      %v1487 = vrot.slane %v1409, 1
      %v1488 = vrot.slane %v1410, 1
      %v1489 = vsel %vm1447, %v1487, %v1488
      %v1490 = vrot.slane %v1411, 1
      %v1491 = vrot.slane %v1412, 1
      %v1492 = vsel %vm1447, %v1490, %v1491
      %v1493 = vrot.slane %v1413, 1
      %v1494 = vrot.slane %v1414, 1
      %v1495 = vsel %vm1447, %v1493, %v1494
      %v1544 = vadd.f32 %v1331, %v1448
      %v1545 = vadd.f32 %v1332, %v1450
      %v1546 = vadd.f32 %v1333, %v1449
      %v1547 = vadd.f32 %v1334, %v1451
      %v1548 = vadd.f32 %v1335, %v1453
      %v1549 = vadd.f32 %v1336, %v1452
      %v1550 = vadd.f32 %v1337, %v1454
      %v1551 = vadd.f32 %v1338, %v1456
      %v1552 = vadd.f32 %v1339, %v1455
      %v1553 = vadd.f32 %v1340, %v1457
      %v1554 = vadd.f32 %v1341, %v1459
      %v1555 = vadd.f32 %v1342, %v1458
      %v1556 = vadd.f32 %v1343, %v1460
      %v1557 = vadd.f32 %v1344, %v1462
      %v1558 = vadd.f32 %v1345, %v1461
      %v1559 = vadd.f32 %v1346, %v1463
      %v1560 = vadd.f32 %v1347, %v1465
      %v1561 = vadd.f32 %v1348, %v1464
      %v1562 = vadd.f32 %v1349, %v1466
      %v1563 = vadd.f32 %v1350, %v1468
      %v1564 = vadd.f32 %v1351, %v1467
      %v1565 = vadd.f32 %v1352, %v1469
      %v1566 = vadd.f32 %v1353, %v1471
      %v1567 = vadd.f32 %v1354, %v1470
      %v1568 = vadd.f32 %v1355, %v1472
      %v1569 = vadd.f32 %v1356, %v1474
      %v1570 = vadd.f32 %v1357, %v1473
      %v1571 = vadd.f32 %v1358, %v1475
      %v1572 = vadd.f32 %v1359, %v1477
      %v1573 = vadd.f32 %v1360, %v1476
      %v1574 = vadd.f32 %v1361, %v1478
      %v1575 = vadd.f32 %v1362, %v1480
      %v1576 = vadd.f32 %v1363, %v1479
      %v1577 = vadd.f32 %v1364, %v1481
      %v1578 = vadd.f32 %v1365, %v1483
      %v1579 = vadd.f32 %v1366, %v1482
      %v1580 = vadd.f32 %v1367, %v1484
      %v1581 = vadd.f32 %v1368, %v1486
      %v1582 = vadd.f32 %v1369, %v1485
      %v1583 = vadd.f32 %v1370, %v1487
      %v1584 = vadd.f32 %v1371, %v1489
      %v1585 = vadd.f32 %v1372, %v1488
      %v1586 = vadd.f32 %v1373, %v1490
      %v1587 = vadd.f32 %v1374, %v1492
      %v1588 = vadd.f32 %v1375, %v1491
      %v1589 = vadd.f32 %v1376, %v1493
      %v1590 = vadd.f32 %v1377, %v1495
      %v1591 = vadd.f32 %v1378, %v1494
      %v1592 = vlaneseq
      %v1593 = vshrl.u32 %v1592, 7
      %v1594 = vsub.s32 2, %v1593
      %v1595 = vrot.slane %v1204, %v1594
      %v1596 = vmul.f32 %v1208, %v1595
      %v1597 = vmul.f32 %v1209, %v1595
      %v1598 = vmul.f32 %v1210, %v1595
      %v1599 = vmul.f32 %v1212, %v1595
      %v1600 = vmul.f32 %v1213, %v1595
      %v1601 = vmul.f32 %v1214, %v1595
      %v1602 = vmul.f32 %v1216, %v1595
      %v1603 = vmul.f32 %v1217, %v1595
      %v1604 = vmul.f32 %v1218, %v1595
      %v1605 = vmul.f32 %v1220, %v1595
      %v1606 = vmul.f32 %v1221, %v1595
      %v1607 = vmul.f32 %v1222, %v1595
      %v1608 = vmul.f32 %v1224, %v1595
      %v1609 = vmul.f32 %v1225, %v1595
      %v1610 = vmul.f32 %v1226, %v1595
      %v1611 = vmul.f32 %v1228, %v1595
      %v1612 = vmul.f32 %v1229, %v1595
      %v1613 = vmul.f32 %v1230, %v1595
      %v1614 = vmul.f32 %v1232, %v1595
      %v1615 = vmul.f32 %v1233, %v1595
      %v1616 = vmul.f32 %v1234, %v1595
      %v1617 = vmul.f32 %v1236, %v1595
      %v1618 = vmul.f32 %v1237, %v1595
      %v1619 = vmul.f32 %v1238, %v1595
      %v1620 = vmul.f32 %v1240, %v1595
      %v1621 = vmul.f32 %v1241, %v1595
      %v1622 = vmul.f32 %v1242, %v1595
      %v1623 = vmul.f32 %v1244, %v1595
      %v1624 = vmul.f32 %v1245, %v1595
      %v1625 = vmul.f32 %v1246, %v1595
      %v1626 = vmul.f32 %v1248, %v1595
      %v1627 = vmul.f32 %v1249, %v1595
      %v1628 = vmul.f32 %v1250, %v1595
      %v1629 = vmul.f32 %v1252, %v1595
      %v1630 = vmul.f32 %v1253, %v1595
      %v1631 = vmul.f32 %v1254, %v1595
      %v1632 = vmul.f32 %v1256, %v1595
      %v1633 = vmul.f32 %v1257, %v1595
      %v1634 = vmul.f32 %v1258, %v1595
      %v1635 = vmul.f32 %v1260, %v1595
      %v1636 = vmul.f32 %v1261, %v1595
      %v1637 = vmul.f32 %v1262, %v1595
      %v1638 = vmul.f32 %v1264, %v1595
      %v1639 = vmul.f32 %v1265, %v1595
      %v1640 = vmul.f32 %v1266, %v1595
      %v1641 = vmul.f32 %v1268, %v1595
      %v1642 = vmul.f32 %v1269, %v1595
      %v1643 = vmul.f32 %v1270, %v1595
      %vm1692 = vcmask 1045504
      %v1693 = vrot.slane %v1596, 2
      %v1694 = vrot.slane %v1597, 2
      %v1695 = vsel %vm1692, %v1693, %v1694
      %v1696 = vrot.slane %v1598, 2
      %v1697 = vsel %vm1692, %v1694, %v1696
      %v1698 = vrot.slane %v1599, 2
      %v1699 = vrot.slane %v1600, 2
      %v1700 = vsel %vm1692, %v1698, %v1699
      %v1701 = vrot.slane %v1601, 2
      %v1702 = vsel %vm1692, %v1699, %v1701
      %v1703 = vrot.slane %v1602, 2
      %v1704 = vrot.slane %v1603, 2
      %v1705 = vsel %vm1692, %v1703, %v1704
      %v1706 = vrot.slane %v1604, 2
      %v1707 = vsel %vm1692, %v1704, %v1706
      %v1708 = vrot.slane %v1605, 2
      %v1709 = vrot.slane %v1606, 2
      %v1710 = vsel %vm1692, %v1708, %v1709
      %v1711 = vrot.slane %v1607, 2
      %v1712 = vsel %vm1692, %v1709, %v1711
      %v1713 = vrot.slane %v1608, 2
      %v1714 = vrot.slane %v1609, 2
      %v1715 = vsel %vm1692, %v1713, %v1714
      %v1716 = vrot.slane %v1610, 2
      %v1717 = vsel %vm1692, %v1714, %v1716
      %v1718 = vrot.slane %v1611, 2
      %v1719 = vrot.slane %v1612, 2
      %v1720 = vsel %vm1692, %v1718, %v1719
      %v1721 = vrot.slane %v1613, 2
      %v1722 = vsel %vm1692, %v1719, %v1721
      %v1723 = vrot.slane %v1614, 2
      %v1724 = vrot.slane %v1615, 2
      %v1725 = vsel %vm1692, %v1723, %v1724
      %v1726 = vrot.slane %v1616, 2
      %v1727 = vsel %vm1692, %v1724, %v1726
      %v1728 = vrot.slane %v1617, 2
      %v1729 = vrot.slane %v1618, 2
      %v1730 = vsel %vm1692, %v1728, %v1729
      %v1731 = vrot.slane %v1619, 2
      %v1732 = vsel %vm1692, %v1729, %v1731
      %v1733 = vrot.slane %v1620, 2
      %v1734 = vrot.slane %v1621, 2
      %v1735 = vsel %vm1692, %v1733, %v1734
      %v1736 = vrot.slane %v1622, 2
      %v1737 = vsel %vm1692, %v1734, %v1736
      %v1738 = vrot.slane %v1623, 2
      %v1739 = vrot.slane %v1624, 2
      %v1740 = vsel %vm1692, %v1738, %v1739
      %v1741 = vrot.slane %v1625, 2
      %v1742 = vsel %vm1692, %v1739, %v1741
      %v1743 = vrot.slane %v1626, 2
      %v1744 = vrot.slane %v1627, 2
      %v1745 = vsel %vm1692, %v1743, %v1744
      %v1746 = vrot.slane %v1628, 2
      %v1747 = vsel %vm1692, %v1744, %v1746
      %v1748 = vrot.slane %v1629, 2
      %v1749 = vrot.slane %v1630, 2
      %v1750 = vsel %vm1692, %v1748, %v1749
      %v1751 = vrot.slane %v1631, 2
      %v1752 = vsel %vm1692, %v1749, %v1751
      %v1753 = vrot.slane %v1632, 2
      %v1754 = vrot.slane %v1633, 2
      %v1755 = vsel %vm1692, %v1753, %v1754
      %v1756 = vrot.slane %v1634, 2
      %v1757 = vsel %vm1692, %v1754, %v1756
      %v1758 = vrot.slane %v1635, 2
      %v1759 = vrot.slane %v1636, 2
      %v1760 = vsel %vm1692, %v1758, %v1759
      %v1761 = vrot.slane %v1637, 2
      %v1762 = vsel %vm1692, %v1759, %v1761
      %v1763 = vrot.slane %v1638, 2
      %v1764 = vrot.slane %v1639, 2
      %v1765 = vsel %vm1692, %v1763, %v1764
      %v1766 = vrot.slane %v1640, 2
      %v1767 = vsel %vm1692, %v1764, %v1766
      %v1768 = vrot.slane %v1641, 2
      %v1769 = vrot.slane %v1642, 2
      %v1770 = vsel %vm1692, %v1768, %v1769
      %v1771 = vrot.slane %v1643, 2
      %v1772 = vsel %vm1692, %v1769, %v1771
      %v1821 = vadd.f32 %v1544, %v1693
      %v1822 = vadd.f32 %v1545, %v1695
      %v1823 = vadd.f32 %v1546, %v1697
      %v1824 = vadd.f32 %v1547, %v1698
      %v1825 = vadd.f32 %v1548, %v1700
      %v1826 = vadd.f32 %v1549, %v1702
      %v1827 = vadd.f32 %v1550, %v1703
      %v1828 = vadd.f32 %v1551, %v1705
      %v1829 = vadd.f32 %v1552, %v1707
      %v1830 = vadd.f32 %v1553, %v1708
      %v1831 = vadd.f32 %v1554, %v1710
      %v1832 = vadd.f32 %v1555, %v1712
      %v1833 = vadd.f32 %v1556, %v1713
      %v1834 = vadd.f32 %v1557, %v1715
      %v1835 = vadd.f32 %v1558, %v1717
      %v1836 = vadd.f32 %v1559, %v1718
      %v1837 = vadd.f32 %v1560, %v1720
      %v1838 = vadd.f32 %v1561, %v1722
      %v1839 = vadd.f32 %v1562, %v1723
      %v1840 = vadd.f32 %v1563, %v1725
      %v1841 = vadd.f32 %v1564, %v1727
      %v1842 = vadd.f32 %v1565, %v1728
      %v1843 = vadd.f32 %v1566, %v1730
      %v1844 = vadd.f32 %v1567, %v1732
      %v1845 = vadd.f32 %v1568, %v1733
      %v1846 = vadd.f32 %v1569, %v1735
      %v1847 = vadd.f32 %v1570, %v1737
      %v1848 = vadd.f32 %v1571, %v1738
      %v1849 = vadd.f32 %v1572, %v1740
      %v1850 = vadd.f32 %v1573, %v1742
      %v1851 = vadd.f32 %v1574, %v1743
      %v1852 = vadd.f32 %v1575, %v1745
      %v1853 = vadd.f32 %v1576, %v1747
      %v1854 = vadd.f32 %v1577, %v1748
      %v1855 = vadd.f32 %v1578, %v1750
      %v1856 = vadd.f32 %v1579, %v1752
      %v1857 = vadd.f32 %v1580, %v1753
      %v1858 = vadd.f32 %v1581, %v1755
      %v1859 = vadd.f32 %v1582, %v1757
      %v1860 = vadd.f32 %v1583, %v1758
      %v1861 = vadd.f32 %v1584, %v1760
      %v1862 = vadd.f32 %v1585, %v1762
      %v1863 = vadd.f32 %v1586, %v1763
      %v1864 = vadd.f32 %v1587, %v1765
      %v1865 = vadd.f32 %v1588, %v1767
      %v1866 = vadd.f32 %v1589, %v1768
      %v1867 = vadd.f32 %v1590, %v1770
      %v1868 = vadd.f32 %v1591, %v1772
      %v1869 = vlaneseq
      %v1870 = vshrl.u32 %v1869, 7
      %v1871 = vsub.s32 0, %v1870
      %v1872 = vrot.slane %v1205, %v1871
      %v1873 = vmul.f32 %v1211, %v1872
      %v1874 = vmul.f32 %v1212, %v1872
      %v1875 = vmul.f32 %v1213, %v1872
      %v1876 = vmul.f32 %v1215, %v1872
      %v1877 = vmul.f32 %v1216, %v1872
      %v1878 = vmul.f32 %v1217, %v1872
      %v1879 = vmul.f32 %v1219, %v1872
      %v1880 = vmul.f32 %v1220, %v1872
      %v1881 = vmul.f32 %v1221, %v1872
      %v1882 = vmul.f32 %v1223, %v1872
      %v1883 = vmul.f32 %v1224, %v1872
      %v1884 = vmul.f32 %v1225, %v1872
      %v1885 = vmul.f32 %v1227, %v1872
      %v1886 = vmul.f32 %v1228, %v1872
      %v1887 = vmul.f32 %v1229, %v1872
      %v1888 = vmul.f32 %v1231, %v1872
      %v1889 = vmul.f32 %v1232, %v1872
      %v1890 = vmul.f32 %v1233, %v1872
      %v1891 = vmul.f32 %v1235, %v1872
      %v1892 = vmul.f32 %v1236, %v1872
      %v1893 = vmul.f32 %v1237, %v1872
      %v1894 = vmul.f32 %v1239, %v1872
      %v1895 = vmul.f32 %v1240, %v1872
      %v1896 = vmul.f32 %v1241, %v1872
      %v1897 = vmul.f32 %v1243, %v1872
      %v1898 = vmul.f32 %v1244, %v1872
      %v1899 = vmul.f32 %v1245, %v1872
      %v1900 = vmul.f32 %v1247, %v1872
      %v1901 = vmul.f32 %v1248, %v1872
      %v1902 = vmul.f32 %v1249, %v1872
      %v1903 = vmul.f32 %v1251, %v1872
      %v1904 = vmul.f32 %v1252, %v1872
      %v1905 = vmul.f32 %v1253, %v1872
      %v1906 = vmul.f32 %v1255, %v1872
      %v1907 = vmul.f32 %v1256, %v1872
      %v1908 = vmul.f32 %v1257, %v1872
      %v1909 = vmul.f32 %v1259, %v1872
      %v1910 = vmul.f32 %v1260, %v1872
      %v1911 = vmul.f32 %v1261, %v1872
      %v1912 = vmul.f32 %v1263, %v1872
      %v1913 = vmul.f32 %v1264, %v1872
      %v1914 = vmul.f32 %v1265, %v1872
      %v1915 = vmul.f32 %v1267, %v1872
      %v1916 = vmul.f32 %v1268, %v1872
      %v1917 = vmul.f32 %v1269, %v1872
      %v1918 = vmul.f32 %v1271, %v1872
      %v1919 = vmul.f32 %v1272, %v1872
      %v1920 = vmul.f32 %v1273, %v1872
      %v1921 = vadd.f32 %v1821, %v1873
      %v1922 = vadd.f32 %v1822, %v1874
      %v1923 = vadd.f32 %v1823, %v1875
      %v1924 = vadd.f32 %v1824, %v1876
      %v1925 = vadd.f32 %v1825, %v1877
      %v1926 = vadd.f32 %v1826, %v1878
      %v1927 = vadd.f32 %v1827, %v1879
      %v1928 = vadd.f32 %v1828, %v1880
      %v1929 = vadd.f32 %v1829, %v1881
      %v1930 = vadd.f32 %v1830, %v1882
      %v1931 = vadd.f32 %v1831, %v1883
      %v1932 = vadd.f32 %v1832, %v1884
      %v1933 = vadd.f32 %v1833, %v1885
      %v1934 = vadd.f32 %v1834, %v1886
      %v1935 = vadd.f32 %v1835, %v1887
      %v1936 = vadd.f32 %v1836, %v1888
      %v1937 = vadd.f32 %v1837, %v1889
      %v1938 = vadd.f32 %v1838, %v1890
      %v1939 = vadd.f32 %v1839, %v1891
      %v1940 = vadd.f32 %v1840, %v1892
      %v1941 = vadd.f32 %v1841, %v1893
      %v1942 = vadd.f32 %v1842, %v1894
      %v1943 = vadd.f32 %v1843, %v1895
      %v1944 = vadd.f32 %v1844, %v1896
      %v1945 = vadd.f32 %v1845, %v1897
      %v1946 = vadd.f32 %v1846, %v1898
      %v1947 = vadd.f32 %v1847, %v1899
      %v1948 = vadd.f32 %v1848, %v1900
      %v1949 = vadd.f32 %v1849, %v1901
      %v1950 = vadd.f32 %v1850, %v1902
      %v1951 = vadd.f32 %v1851, %v1903
      %v1952 = vadd.f32 %v1852, %v1904
      %v1953 = vadd.f32 %v1853, %v1905
      %v1954 = vadd.f32 %v1854, %v1906
      %v1955 = vadd.f32 %v1855, %v1907
      %v1956 = vadd.f32 %v1856, %v1908
      %v1957 = vadd.f32 %v1857, %v1909
      %v1958 = vadd.f32 %v1858, %v1910
      %v1959 = vadd.f32 %v1859, %v1911
      %v1960 = vadd.f32 %v1860, %v1912
      %v1961 = vadd.f32 %v1861, %v1913
      %v1962 = vadd.f32 %v1862, %v1914
      %v1963 = vadd.f32 %v1863, %v1915
      %v1964 = vadd.f32 %v1864, %v1916
      %v1965 = vadd.f32 %v1865, %v1917
      %v1966 = vadd.f32 %v1866, %v1918
      %v1967 = vadd.f32 %v1867, %v1919
      %v1968 = vadd.f32 %v1868, %v1920
      %v1969 = vlaneseq
      %v1970 = vshrl.u32 %v1969, 7
      %v1971 = vsub.s32 1, %v1970
      %v1972 = vrot.slane %v1205, %v1971
      %v1973 = vmul.f32 %v1212, %v1972
      %v1974 = vmul.f32 %v1213, %v1972
      %v1975 = vmul.f32 %v1216, %v1972
      %v1976 = vmul.f32 %v1217, %v1972
      %v1977 = vmul.f32 %v1220, %v1972
      %v1978 = vmul.f32 %v1221, %v1972
      %v1979 = vmul.f32 %v1224, %v1972
      %v1980 = vmul.f32 %v1225, %v1972
      %v1981 = vmul.f32 %v1228, %v1972
      %v1982 = vmul.f32 %v1229, %v1972
      %v1983 = vmul.f32 %v1232, %v1972
      %v1984 = vmul.f32 %v1233, %v1972
      %v1985 = vmul.f32 %v1236, %v1972
      %v1986 = vmul.f32 %v1237, %v1972
      %v1987 = vmul.f32 %v1240, %v1972
      %v1988 = vmul.f32 %v1241, %v1972
      %v1989 = vmul.f32 %v1244, %v1972
      %v1990 = vmul.f32 %v1245, %v1972
      %v1991 = vmul.f32 %v1248, %v1972
      %v1992 = vmul.f32 %v1249, %v1972
      %v1993 = vmul.f32 %v1252, %v1972
      %v1994 = vmul.f32 %v1253, %v1972
      %v1995 = vmul.f32 %v1256, %v1972
      %v1996 = vmul.f32 %v1257, %v1972
      %v1997 = vmul.f32 %v1260, %v1972
      %v1998 = vmul.f32 %v1261, %v1972
      %v1999 = vmul.f32 %v1264, %v1972
      %v2000 = vmul.f32 %v1265, %v1972
      %v2001 = vmul.f32 %v1268, %v1972
      %v2002 = vmul.f32 %v1269, %v1972
      %v2003 = vmul.f32 %v1272, %v1972
      %v2004 = vmul.f32 %v1273, %v1972
      %v2037 = vrot.slane %v1973, 1
      %v2038 = vrot.slane %v1974, 1
      %v2039 = vsel %vm1447, %v2037, %v2038
      %v2040 = vrot.slane %v1975, 1
      %v2041 = vrot.slane %v1976, 1
      %v2042 = vsel %vm1447, %v2040, %v2041
      %v2043 = vrot.slane %v1977, 1
      %v2044 = vrot.slane %v1978, 1
      %v2045 = vsel %vm1447, %v2043, %v2044
      %v2046 = vrot.slane %v1979, 1
      %v2047 = vrot.slane %v1980, 1
      %v2048 = vsel %vm1447, %v2046, %v2047
      %v2049 = vrot.slane %v1981, 1
      %v2050 = vrot.slane %v1982, 1
      %v2051 = vsel %vm1447, %v2049, %v2050
      %v2052 = vrot.slane %v1983, 1
      %v2053 = vrot.slane %v1984, 1
      %v2054 = vsel %vm1447, %v2052, %v2053
      %v2055 = vrot.slane %v1985, 1
      %v2056 = vrot.slane %v1986, 1
      %v2057 = vsel %vm1447, %v2055, %v2056
      %v2058 = vrot.slane %v1987, 1
      %v2059 = vrot.slane %v1988, 1
      %v2060 = vsel %vm1447, %v2058, %v2059
      %v2061 = vrot.slane %v1989, 1
      %v2062 = vrot.slane %v1990, 1
      %v2063 = vsel %vm1447, %v2061, %v2062
      %v2064 = vrot.slane %v1991, 1
      %v2065 = vrot.slane %v1992, 1
      %v2066 = vsel %vm1447, %v2064, %v2065
      %v2067 = vrot.slane %v1993, 1
      %v2068 = vrot.slane %v1994, 1
      %v2069 = vsel %vm1447, %v2067, %v2068
      %v2070 = vrot.slane %v1995, 1
      %v2071 = vrot.slane %v1996, 1
      %v2072 = vsel %vm1447, %v2070, %v2071
      %v2073 = vrot.slane %v1997, 1
      %v2074 = vrot.slane %v1998, 1
      %v2075 = vsel %vm1447, %v2073, %v2074
      %v2076 = vrot.slane %v1999, 1
      %v2077 = vrot.slane %v2000, 1
      %v2078 = vsel %vm1447, %v2076, %v2077
      %v2079 = vrot.slane %v2001, 1
      %v2080 = vrot.slane %v2002, 1
      %v2081 = vsel %vm1447, %v2079, %v2080
      %v2082 = vrot.slane %v2003, 1
      %v2083 = vrot.slane %v2004, 1
      %v2084 = vsel %vm1447, %v2082, %v2083
      %v2133 = vadd.f32 %v1921, %v2037
      %v2134 = vadd.f32 %v1922, %v2039
      %v2135 = vadd.f32 %v1923, %v2038
      %v2136 = vadd.f32 %v1924, %v2040
      %v2137 = vadd.f32 %v1925, %v2042
      %v2138 = vadd.f32 %v1926, %v2041
      %v2139 = vadd.f32 %v1927, %v2043
      %v2140 = vadd.f32 %v1928, %v2045
      %v2141 = vadd.f32 %v1929, %v2044
      %v2142 = vadd.f32 %v1930, %v2046
      %v2143 = vadd.f32 %v1931, %v2048
      %v2144 = vadd.f32 %v1932, %v2047
      %v2145 = vadd.f32 %v1933, %v2049
      %v2146 = vadd.f32 %v1934, %v2051
      %v2147 = vadd.f32 %v1935, %v2050
      %v2148 = vadd.f32 %v1936, %v2052
      %v2149 = vadd.f32 %v1937, %v2054
      %v2150 = vadd.f32 %v1938, %v2053
      %v2151 = vadd.f32 %v1939, %v2055
      %v2152 = vadd.f32 %v1940, %v2057
      %v2153 = vadd.f32 %v1941, %v2056
      %v2154 = vadd.f32 %v1942, %v2058
      %v2155 = vadd.f32 %v1943, %v2060
      %v2156 = vadd.f32 %v1944, %v2059
      %v2157 = vadd.f32 %v1945, %v2061
      %v2158 = vadd.f32 %v1946, %v2063
      %v2159 = vadd.f32 %v1947, %v2062
      %v2160 = vadd.f32 %v1948, %v2064
      %v2161 = vadd.f32 %v1949, %v2066
      %v2162 = vadd.f32 %v1950, %v2065
      %v2163 = vadd.f32 %v1951, %v2067
      %v2164 = vadd.f32 %v1952, %v2069
      %v2165 = vadd.f32 %v1953, %v2068
      %v2166 = vadd.f32 %v1954, %v2070
      %v2167 = vadd.f32 %v1955, %v2072
      %v2168 = vadd.f32 %v1956, %v2071
      %v2169 = vadd.f32 %v1957, %v2073
      %v2170 = vadd.f32 %v1958, %v2075
      %v2171 = vadd.f32 %v1959, %v2074
      %v2172 = vadd.f32 %v1960, %v2076
      %v2173 = vadd.f32 %v1961, %v2078
      %v2174 = vadd.f32 %v1962, %v2077
      %v2175 = vadd.f32 %v1963, %v2079
      %v2176 = vadd.f32 %v1964, %v2081
      %v2177 = vadd.f32 %v1965, %v2080
      %v2178 = vadd.f32 %v1966, %v2082
      %v2179 = vadd.f32 %v1967, %v2084
      %v2180 = vadd.f32 %v1968, %v2083
      %v2181 = vlaneseq
      %v2182 = vshrl.u32 %v2181, 7
      %v2183 = vsub.s32 2, %v2182
      %v2184 = vrot.slane %v1205, %v2183
      %v2185 = vmul.f32 %v1212, %v2184
      %v2186 = vmul.f32 %v1213, %v2184
      %v2187 = vmul.f32 %v1214, %v2184
      %v2188 = vmul.f32 %v1216, %v2184
      %v2189 = vmul.f32 %v1217, %v2184
      %v2190 = vmul.f32 %v1218, %v2184
      %v2191 = vmul.f32 %v1220, %v2184
      %v2192 = vmul.f32 %v1221, %v2184
      %v2193 = vmul.f32 %v1222, %v2184
      %v2194 = vmul.f32 %v1224, %v2184
      %v2195 = vmul.f32 %v1225, %v2184
      %v2196 = vmul.f32 %v1226, %v2184
      %v2197 = vmul.f32 %v1228, %v2184
      %v2198 = vmul.f32 %v1229, %v2184
      %v2199 = vmul.f32 %v1230, %v2184
      %v2200 = vmul.f32 %v1232, %v2184
      %v2201 = vmul.f32 %v1233, %v2184
      %v2202 = vmul.f32 %v1234, %v2184
      %v2203 = vmul.f32 %v1236, %v2184
      %v2204 = vmul.f32 %v1237, %v2184
      %v2205 = vmul.f32 %v1238, %v2184
      %v2206 = vmul.f32 %v1240, %v2184
      %v2207 = vmul.f32 %v1241, %v2184
      %v2208 = vmul.f32 %v1242, %v2184
      %v2209 = vmul.f32 %v1244, %v2184
      %v2210 = vmul.f32 %v1245, %v2184
      %v2211 = vmul.f32 %v1246, %v2184
      %v2212 = vmul.f32 %v1248, %v2184
      %v2213 = vmul.f32 %v1249, %v2184
      %v2214 = vmul.f32 %v1250, %v2184
      %v2215 = vmul.f32 %v1252, %v2184
      %v2216 = vmul.f32 %v1253, %v2184
      %v2217 = vmul.f32 %v1254, %v2184
      %v2218 = vmul.f32 %v1256, %v2184
      %v2219 = vmul.f32 %v1257, %v2184
      %v2220 = vmul.f32 %v1258, %v2184
      %v2221 = vmul.f32 %v1260, %v2184
      %v2222 = vmul.f32 %v1261, %v2184
      %v2223 = vmul.f32 %v1262, %v2184
      %v2224 = vmul.f32 %v1264, %v2184
      %v2225 = vmul.f32 %v1265, %v2184
      %v2226 = vmul.f32 %v1266, %v2184
      %v2227 = vmul.f32 %v1268, %v2184
      %v2228 = vmul.f32 %v1269, %v2184
      %v2229 = vmul.f32 %v1270, %v2184
      %v2230 = vmul.f32 %v1272, %v2184
      %v2231 = vmul.f32 %v1273, %v2184
      %v2232 = vmul.f32 %v1274, %v2184
      %v2281 = vrot.slane %v2185, 2
      %v2282 = vrot.slane %v2186, 2
      %v2283 = vsel %vm1692, %v2281, %v2282
      %v2284 = vrot.slane %v2187, 2
      %v2285 = vsel %vm1692, %v2282, %v2284
      %v2286 = vrot.slane %v2188, 2
      %v2287 = vrot.slane %v2189, 2
      %v2288 = vsel %vm1692, %v2286, %v2287
      %v2289 = vrot.slane %v2190, 2
      %v2290 = vsel %vm1692, %v2287, %v2289
      %v2291 = vrot.slane %v2191, 2
      %v2292 = vrot.slane %v2192, 2
      %v2293 = vsel %vm1692, %v2291, %v2292
      %v2294 = vrot.slane %v2193, 2
      %v2295 = vsel %vm1692, %v2292, %v2294
      %v2296 = vrot.slane %v2194, 2
      %v2297 = vrot.slane %v2195, 2
      %v2298 = vsel %vm1692, %v2296, %v2297
      %v2299 = vrot.slane %v2196, 2
      %v2300 = vsel %vm1692, %v2297, %v2299
      %v2301 = vrot.slane %v2197, 2
      %v2302 = vrot.slane %v2198, 2
      %v2303 = vsel %vm1692, %v2301, %v2302
      %v2304 = vrot.slane %v2199, 2
      %v2305 = vsel %vm1692, %v2302, %v2304
      %v2306 = vrot.slane %v2200, 2
      %v2307 = vrot.slane %v2201, 2
      %v2308 = vsel %vm1692, %v2306, %v2307
      %v2309 = vrot.slane %v2202, 2
      %v2310 = vsel %vm1692, %v2307, %v2309
      %v2311 = vrot.slane %v2203, 2
      %v2312 = vrot.slane %v2204, 2
      %v2313 = vsel %vm1692, %v2311, %v2312
      %v2314 = vrot.slane %v2205, 2
      %v2315 = vsel %vm1692, %v2312, %v2314
      %v2316 = vrot.slane %v2206, 2
      %v2317 = vrot.slane %v2207, 2
      %v2318 = vsel %vm1692, %v2316, %v2317
      %v2319 = vrot.slane %v2208, 2
      %v2320 = vsel %vm1692, %v2317, %v2319
      %v2321 = vrot.slane %v2209, 2
      %v2322 = vrot.slane %v2210, 2
      %v2323 = vsel %vm1692, %v2321, %v2322
      %v2324 = vrot.slane %v2211, 2
      %v2325 = vsel %vm1692, %v2322, %v2324
      %v2326 = vrot.slane %v2212, 2
      %v2327 = vrot.slane %v2213, 2
      %v2328 = vsel %vm1692, %v2326, %v2327
      %v2329 = vrot.slane %v2214, 2
      %v2330 = vsel %vm1692, %v2327, %v2329
      %v2331 = vrot.slane %v2215, 2
      %v2332 = vrot.slane %v2216, 2
      %v2333 = vsel %vm1692, %v2331, %v2332
      %v2334 = vrot.slane %v2217, 2
      %v2335 = vsel %vm1692, %v2332, %v2334
      %v2336 = vrot.slane %v2218, 2
      %v2337 = vrot.slane %v2219, 2
      %v2338 = vsel %vm1692, %v2336, %v2337
      %v2339 = vrot.slane %v2220, 2
      %v2340 = vsel %vm1692, %v2337, %v2339
      %v2341 = vrot.slane %v2221, 2
      %v2342 = vrot.slane %v2222, 2
      %v2343 = vsel %vm1692, %v2341, %v2342
      %v2344 = vrot.slane %v2223, 2
      %v2345 = vsel %vm1692, %v2342, %v2344
      %v2346 = vrot.slane %v2224, 2
      %v2347 = vrot.slane %v2225, 2
      %v2348 = vsel %vm1692, %v2346, %v2347
      %v2349 = vrot.slane %v2226, 2
      %v2350 = vsel %vm1692, %v2347, %v2349
      %v2351 = vrot.slane %v2227, 2
      %v2352 = vrot.slane %v2228, 2
      %v2353 = vsel %vm1692, %v2351, %v2352
      %v2354 = vrot.slane %v2229, 2
      %v2355 = vsel %vm1692, %v2352, %v2354
      %v2356 = vrot.slane %v2230, 2
      %v2357 = vrot.slane %v2231, 2
      %v2358 = vsel %vm1692, %v2356, %v2357
      %v2359 = vrot.slane %v2232, 2
      %v2360 = vsel %vm1692, %v2357, %v2359
      %v2409 = vadd.f32 %v2133, %v2281
      %v2410 = vadd.f32 %v2134, %v2283
      %v2411 = vadd.f32 %v2135, %v2285
      %v2412 = vadd.f32 %v2136, %v2286
      %v2413 = vadd.f32 %v2137, %v2288
      %v2414 = vadd.f32 %v2138, %v2290
      %v2415 = vadd.f32 %v2139, %v2291
      %v2416 = vadd.f32 %v2140, %v2293
      %v2417 = vadd.f32 %v2141, %v2295
      %v2418 = vadd.f32 %v2142, %v2296
      %v2419 = vadd.f32 %v2143, %v2298
      %v2420 = vadd.f32 %v2144, %v2300
      %v2421 = vadd.f32 %v2145, %v2301
      %v2422 = vadd.f32 %v2146, %v2303
      %v2423 = vadd.f32 %v2147, %v2305
      %v2424 = vadd.f32 %v2148, %v2306
      %v2425 = vadd.f32 %v2149, %v2308
      %v2426 = vadd.f32 %v2150, %v2310
      %v2427 = vadd.f32 %v2151, %v2311
      %v2428 = vadd.f32 %v2152, %v2313
      %v2429 = vadd.f32 %v2153, %v2315
      %v2430 = vadd.f32 %v2154, %v2316
      %v2431 = vadd.f32 %v2155, %v2318
      %v2432 = vadd.f32 %v2156, %v2320
      %v2433 = vadd.f32 %v2157, %v2321
      %v2434 = vadd.f32 %v2158, %v2323
      %v2435 = vadd.f32 %v2159, %v2325
      %v2436 = vadd.f32 %v2160, %v2326
      %v2437 = vadd.f32 %v2161, %v2328
      %v2438 = vadd.f32 %v2162, %v2330
      %v2439 = vadd.f32 %v2163, %v2331
      %v2440 = vadd.f32 %v2164, %v2333
      %v2441 = vadd.f32 %v2165, %v2335
      %v2442 = vadd.f32 %v2166, %v2336
      %v2443 = vadd.f32 %v2167, %v2338
      %v2444 = vadd.f32 %v2168, %v2340
      %v2445 = vadd.f32 %v2169, %v2341
      %v2446 = vadd.f32 %v2170, %v2343
      %v2447 = vadd.f32 %v2171, %v2345
      %v2448 = vadd.f32 %v2172, %v2346
      %v2449 = vadd.f32 %v2173, %v2348
      %v2450 = vadd.f32 %v2174, %v2350
      %v2451 = vadd.f32 %v2175, %v2351
      %v2452 = vadd.f32 %v2176, %v2353
      %v2453 = vadd.f32 %v2177, %v2355
      %v2454 = vadd.f32 %v2178, %v2356
      %v2455 = vadd.f32 %v2179, %v2358
      %v2456 = vadd.f32 %v2180, %v2360
      %v2457 = vlaneseq
      %v2458 = vshrl.u32 %v2457, 7
      %v2459 = vsub.s32 0, %v2458
      %v2460 = vrot.slane %v1206, %v2459
      %v2461 = vmul.f32 %v1215, %v2460
      %v2462 = vmul.f32 %v1216, %v2460
      %v2463 = vmul.f32 %v1217, %v2460
      %v2464 = vmul.f32 %v1219, %v2460
      %v2465 = vmul.f32 %v1220, %v2460
      %v2466 = vmul.f32 %v1221, %v2460
      %v2467 = vmul.f32 %v1223, %v2460
      %v2468 = vmul.f32 %v1224, %v2460
      %v2469 = vmul.f32 %v1225, %v2460
      %v2470 = vmul.f32 %v1227, %v2460
      %v2471 = vmul.f32 %v1228, %v2460
      %v2472 = vmul.f32 %v1229, %v2460
      %v2473 = vmul.f32 %v1231, %v2460
      %v2474 = vmul.f32 %v1232, %v2460
      %v2475 = vmul.f32 %v1233, %v2460
      %v2476 = vmul.f32 %v1235, %v2460
      %v2477 = vmul.f32 %v1236, %v2460
      %v2478 = vmul.f32 %v1237, %v2460
      %v2479 = vmul.f32 %v1239, %v2460
      %v2480 = vmul.f32 %v1240, %v2460
      %v2481 = vmul.f32 %v1241, %v2460
      %v2482 = vmul.f32 %v1243, %v2460
      %v2483 = vmul.f32 %v1244, %v2460
      %v2484 = vmul.f32 %v1245, %v2460
      %v2485 = vmul.f32 %v1247, %v2460
      %v2486 = vmul.f32 %v1248, %v2460
      %v2487 = vmul.f32 %v1249, %v2460
      %v2488 = vmul.f32 %v1251, %v2460
      %v2489 = vmul.f32 %v1252, %v2460
      %v2490 = vmul.f32 %v1253, %v2460
      %v2491 = vmul.f32 %v1255, %v2460
      %v2492 = vmul.f32 %v1256, %v2460
      %v2493 = vmul.f32 %v1257, %v2460
      %v2494 = vmul.f32 %v1259, %v2460
      %v2495 = vmul.f32 %v1260, %v2460
      %v2496 = vmul.f32 %v1261, %v2460
      %v2497 = vmul.f32 %v1263, %v2460
      %v2498 = vmul.f32 %v1264, %v2460
      %v2499 = vmul.f32 %v1265, %v2460
      %v2500 = vmul.f32 %v1267, %v2460
      %v2501 = vmul.f32 %v1268, %v2460
      %v2502 = vmul.f32 %v1269, %v2460
      %v2503 = vmul.f32 %v1271, %v2460
      %v2504 = vmul.f32 %v1272, %v2460
      %v2505 = vmul.f32 %v1273, %v2460
      %v2506 = vmul.f32 %v1275, %v2460
      %v2507 = vmul.f32 %v1276, %v2460
      %v2508 = vmul.f32 %v1277, %v2460
      %v2509 = vadd.f32 %v2409, %v2461
      %v2510 = vadd.f32 %v2410, %v2462
      %v2511 = vadd.f32 %v2411, %v2463
      %v2512 = vadd.f32 %v2412, %v2464
      %v2513 = vadd.f32 %v2413, %v2465
      %v2514 = vadd.f32 %v2414, %v2466
      %v2515 = vadd.f32 %v2415, %v2467
      %v2516 = vadd.f32 %v2416, %v2468
      %v2517 = vadd.f32 %v2417, %v2469
      %v2518 = vadd.f32 %v2418, %v2470
      %v2519 = vadd.f32 %v2419, %v2471
      %v2520 = vadd.f32 %v2420, %v2472
      %v2521 = vadd.f32 %v2421, %v2473
      %v2522 = vadd.f32 %v2422, %v2474
      %v2523 = vadd.f32 %v2423, %v2475
      %v2524 = vadd.f32 %v2424, %v2476
      %v2525 = vadd.f32 %v2425, %v2477
      %v2526 = vadd.f32 %v2426, %v2478
      %v2527 = vadd.f32 %v2427, %v2479
      %v2528 = vadd.f32 %v2428, %v2480
      %v2529 = vadd.f32 %v2429, %v2481
      %v2530 = vadd.f32 %v2430, %v2482
      %v2531 = vadd.f32 %v2431, %v2483
      %v2532 = vadd.f32 %v2432, %v2484
      %v2533 = vadd.f32 %v2433, %v2485
      %v2534 = vadd.f32 %v2434, %v2486
      %v2535 = vadd.f32 %v2435, %v2487
      %v2536 = vadd.f32 %v2436, %v2488
      %v2537 = vadd.f32 %v2437, %v2489
      %v2538 = vadd.f32 %v2438, %v2490
      %v2539 = vadd.f32 %v2439, %v2491
      %v2540 = vadd.f32 %v2440, %v2492
      %v2541 = vadd.f32 %v2441, %v2493
      %v2542 = vadd.f32 %v2442, %v2494
      %v2543 = vadd.f32 %v2443, %v2495
      %v2544 = vadd.f32 %v2444, %v2496
      %v2545 = vadd.f32 %v2445, %v2497
      %v2546 = vadd.f32 %v2446, %v2498
      %v2547 = vadd.f32 %v2447, %v2499
      %v2548 = vadd.f32 %v2448, %v2500
      %v2549 = vadd.f32 %v2449, %v2501
      %v2550 = vadd.f32 %v2450, %v2502
      %v2551 = vadd.f32 %v2451, %v2503
      %v2552 = vadd.f32 %v2452, %v2504
      %v2553 = vadd.f32 %v2453, %v2505
      %v2554 = vadd.f32 %v2454, %v2506
      %v2555 = vadd.f32 %v2455, %v2507
      %v2556 = vadd.f32 %v2456, %v2508
      %v2557 = vlaneseq
      %v2558 = vshrl.u32 %v2557, 7
      %v2559 = vsub.s32 1, %v2558
      %v2560 = vrot.slane %v1206, %v2559
      %v2561 = vmul.f32 %v1216, %v2560
      %v2562 = vmul.f32 %v1217, %v2560
      %v2563 = vmul.f32 %v1220, %v2560
      %v2564 = vmul.f32 %v1221, %v2560
      %v2565 = vmul.f32 %v1224, %v2560
      %v2566 = vmul.f32 %v1225, %v2560
      %v2567 = vmul.f32 %v1228, %v2560
      %v2568 = vmul.f32 %v1229, %v2560
      %v2569 = vmul.f32 %v1232, %v2560
      %v2570 = vmul.f32 %v1233, %v2560
      %v2571 = vmul.f32 %v1236, %v2560
      %v2572 = vmul.f32 %v1237, %v2560
      %v2573 = vmul.f32 %v1240, %v2560
      %v2574 = vmul.f32 %v1241, %v2560
      %v2575 = vmul.f32 %v1244, %v2560
      %v2576 = vmul.f32 %v1245, %v2560
      %v2577 = vmul.f32 %v1248, %v2560
      %v2578 = vmul.f32 %v1249, %v2560
      %v2579 = vmul.f32 %v1252, %v2560
      %v2580 = vmul.f32 %v1253, %v2560
      %v2581 = vmul.f32 %v1256, %v2560
      %v2582 = vmul.f32 %v1257, %v2560
      %v2583 = vmul.f32 %v1260, %v2560
      %v2584 = vmul.f32 %v1261, %v2560
      %v2585 = vmul.f32 %v1264, %v2560
      %v2586 = vmul.f32 %v1265, %v2560
      %v2587 = vmul.f32 %v1268, %v2560
      %v2588 = vmul.f32 %v1269, %v2560
      %v2589 = vmul.f32 %v1272, %v2560
      %v2590 = vmul.f32 %v1273, %v2560
      %v2591 = vmul.f32 %v1276, %v2560
      %v2592 = vmul.f32 %v1277, %v2560
      %v2625 = vrot.slane %v2561, 1
      %v2626 = vrot.slane %v2562, 1
      %v2627 = vsel %vm1447, %v2625, %v2626
      %v2628 = vrot.slane %v2563, 1
      %v2629 = vrot.slane %v2564, 1
      %v2630 = vsel %vm1447, %v2628, %v2629
      %v2631 = vrot.slane %v2565, 1
      %v2632 = vrot.slane %v2566, 1
      %v2633 = vsel %vm1447, %v2631, %v2632
      %v2634 = vrot.slane %v2567, 1
      %v2635 = vrot.slane %v2568, 1
      %v2636 = vsel %vm1447, %v2634, %v2635
      %v2637 = vrot.slane %v2569, 1
      %v2638 = vrot.slane %v2570, 1
      %v2639 = vsel %vm1447, %v2637, %v2638
      %v2640 = vrot.slane %v2571, 1
      %v2641 = vrot.slane %v2572, 1
      %v2642 = vsel %vm1447, %v2640, %v2641
      %v2643 = vrot.slane %v2573, 1
      %v2644 = vrot.slane %v2574, 1
      %v2645 = vsel %vm1447, %v2643, %v2644
      %v2646 = vrot.slane %v2575, 1
      %v2647 = vrot.slane %v2576, 1
      %v2648 = vsel %vm1447, %v2646, %v2647
      %v2649 = vrot.slane %v2577, 1
      %v2650 = vrot.slane %v2578, 1
      %v2651 = vsel %vm1447, %v2649, %v2650
      %v2652 = vrot.slane %v2579, 1
      %v2653 = vrot.slane %v2580, 1
      %v2654 = vsel %vm1447, %v2652, %v2653
      %v2655 = vrot.slane %v2581, 1
      %v2656 = vrot.slane %v2582, 1
      %v2657 = vsel %vm1447, %v2655, %v2656
      %v2658 = vrot.slane %v2583, 1
      %v2659 = vrot.slane %v2584, 1
      %v2660 = vsel %vm1447, %v2658, %v2659
      %v2661 = vrot.slane %v2585, 1
      %v2662 = vrot.slane %v2586, 1
      %v2663 = vsel %vm1447, %v2661, %v2662
      %v2664 = vrot.slane %v2587, 1
      %v2665 = vrot.slane %v2588, 1
      %v2666 = vsel %vm1447, %v2664, %v2665
      %v2667 = vrot.slane %v2589, 1
      %v2668 = vrot.slane %v2590, 1
      %v2669 = vsel %vm1447, %v2667, %v2668
      %v2670 = vrot.slane %v2591, 1
      %v2671 = vrot.slane %v2592, 1
      %v2672 = vsel %vm1447, %v2670, %v2671
      %v2721 = vadd.f32 %v2509, %v2625
      %v2722 = vadd.f32 %v2510, %v2627
      %v2723 = vadd.f32 %v2511, %v2626
      %v2724 = vadd.f32 %v2512, %v2628
      %v2725 = vadd.f32 %v2513, %v2630
      %v2726 = vadd.f32 %v2514, %v2629
      %v2727 = vadd.f32 %v2515, %v2631
      %v2728 = vadd.f32 %v2516, %v2633
      %v2729 = vadd.f32 %v2517, %v2632
      %v2730 = vadd.f32 %v2518, %v2634
      %v2731 = vadd.f32 %v2519, %v2636
      %v2732 = vadd.f32 %v2520, %v2635
      %v2733 = vadd.f32 %v2521, %v2637
      %v2734 = vadd.f32 %v2522, %v2639
      %v2735 = vadd.f32 %v2523, %v2638
      %v2736 = vadd.f32 %v2524, %v2640
      %v2737 = vadd.f32 %v2525, %v2642
      %v2738 = vadd.f32 %v2526, %v2641
      %v2739 = vadd.f32 %v2527, %v2643
      %v2740 = vadd.f32 %v2528, %v2645
      %v2741 = vadd.f32 %v2529, %v2644
      %v2742 = vadd.f32 %v2530, %v2646
      %v2743 = vadd.f32 %v2531, %v2648
      %v2744 = vadd.f32 %v2532, %v2647
      %v2745 = vadd.f32 %v2533, %v2649
      %v2746 = vadd.f32 %v2534, %v2651
      %v2747 = vadd.f32 %v2535, %v2650
      %v2748 = vadd.f32 %v2536, %v2652
      %v2749 = vadd.f32 %v2537, %v2654
      %v2750 = vadd.f32 %v2538, %v2653
      %v2751 = vadd.f32 %v2539, %v2655
      %v2752 = vadd.f32 %v2540, %v2657
      %v2753 = vadd.f32 %v2541, %v2656
      %v2754 = vadd.f32 %v2542, %v2658
      %v2755 = vadd.f32 %v2543, %v2660
      %v2756 = vadd.f32 %v2544, %v2659
      %v2757 = vadd.f32 %v2545, %v2661
      %v2758 = vadd.f32 %v2546, %v2663
      %v2759 = vadd.f32 %v2547, %v2662
      %v2760 = vadd.f32 %v2548, %v2664
      %v2761 = vadd.f32 %v2549, %v2666
      %v2762 = vadd.f32 %v2550, %v2665
      %v2763 = vadd.f32 %v2551, %v2667
      %v2764 = vadd.f32 %v2552, %v2669
      %v2765 = vadd.f32 %v2553, %v2668
      %v2766 = vadd.f32 %v2554, %v2670
      %v2767 = vadd.f32 %v2555, %v2672
      %v2768 = vadd.f32 %v2556, %v2671
      %v2769 = vlaneseq
      %v2770 = vshrl.u32 %v2769, 7
      %v2771 = vsub.s32 2, %v2770
      %v2772 = vrot.slane %v1206, %v2771
      %v2773 = vmul.f32 %v1216, %v2772
      %v2774 = vmul.f32 %v1217, %v2772
      %v2775 = vmul.f32 %v1218, %v2772
      %v2776 = vmul.f32 %v1220, %v2772
      %v2777 = vmul.f32 %v1221, %v2772
      %v2778 = vmul.f32 %v1222, %v2772
      %v2779 = vmul.f32 %v1224, %v2772
      %v2780 = vmul.f32 %v1225, %v2772
      %v2781 = vmul.f32 %v1226, %v2772
      %v2782 = vmul.f32 %v1228, %v2772
      %v2783 = vmul.f32 %v1229, %v2772
      %v2784 = vmul.f32 %v1230, %v2772
      %v2785 = vmul.f32 %v1232, %v2772
      %v2786 = vmul.f32 %v1233, %v2772
      %v2787 = vmul.f32 %v1234, %v2772
      %v2788 = vmul.f32 %v1236, %v2772
      %v2789 = vmul.f32 %v1237, %v2772
      %v2790 = vmul.f32 %v1238, %v2772
      %v2791 = vmul.f32 %v1240, %v2772
      %v2792 = vmul.f32 %v1241, %v2772
      %v2793 = vmul.f32 %v1242, %v2772
      %v2794 = vmul.f32 %v1244, %v2772
      %v2795 = vmul.f32 %v1245, %v2772
      %v2796 = vmul.f32 %v1246, %v2772
      %v2797 = vmul.f32 %v1248, %v2772
      %v2798 = vmul.f32 %v1249, %v2772
      %v2799 = vmul.f32 %v1250, %v2772
      %v2800 = vmul.f32 %v1252, %v2772
      %v2801 = vmul.f32 %v1253, %v2772
      %v2802 = vmul.f32 %v1254, %v2772
      %v2803 = vmul.f32 %v1256, %v2772
      %v2804 = vmul.f32 %v1257, %v2772
      %v2805 = vmul.f32 %v1258, %v2772
      %v2806 = vmul.f32 %v1260, %v2772
      %v2807 = vmul.f32 %v1261, %v2772
      %v2808 = vmul.f32 %v1262, %v2772
      %v2809 = vmul.f32 %v1264, %v2772
      %v2810 = vmul.f32 %v1265, %v2772
      %v2811 = vmul.f32 %v1266, %v2772
      %v2812 = vmul.f32 %v1268, %v2772
      %v2813 = vmul.f32 %v1269, %v2772
      %v2814 = vmul.f32 %v1270, %v2772
      %v2815 = vmul.f32 %v1272, %v2772
      %v2816 = vmul.f32 %v1273, %v2772
      %v2817 = vmul.f32 %v1274, %v2772
      %v2818 = vmul.f32 %v1276, %v2772
      %v2819 = vmul.f32 %v1277, %v2772
      %v2820 = vmul.f32 %v1278, %v2772
      %v2869 = vrot.slane %v2773, 2
      %v2870 = vrot.slane %v2774, 2
      %v2871 = vsel %vm1692, %v2869, %v2870
      %v2872 = vrot.slane %v2775, 2
      %v2873 = vsel %vm1692, %v2870, %v2872
      %v2874 = vrot.slane %v2776, 2
      %v2875 = vrot.slane %v2777, 2
      %v2876 = vsel %vm1692, %v2874, %v2875
      %v2877 = vrot.slane %v2778, 2
      %v2878 = vsel %vm1692, %v2875, %v2877
      %v2879 = vrot.slane %v2779, 2
      %v2880 = vrot.slane %v2780, 2
      %v2881 = vsel %vm1692, %v2879, %v2880
      %v2882 = vrot.slane %v2781, 2
      %v2883 = vsel %vm1692, %v2880, %v2882
      %v2884 = vrot.slane %v2782, 2
      %v2885 = vrot.slane %v2783, 2
      %v2886 = vsel %vm1692, %v2884, %v2885
      %v2887 = vrot.slane %v2784, 2
      %v2888 = vsel %vm1692, %v2885, %v2887
      %v2889 = vrot.slane %v2785, 2
      %v2890 = vrot.slane %v2786, 2
      %v2891 = vsel %vm1692, %v2889, %v2890
      %v2892 = vrot.slane %v2787, 2
      %v2893 = vsel %vm1692, %v2890, %v2892
      %v2894 = vrot.slane %v2788, 2
      %v2895 = vrot.slane %v2789, 2
      %v2896 = vsel %vm1692, %v2894, %v2895
      %v2897 = vrot.slane %v2790, 2
      %v2898 = vsel %vm1692, %v2895, %v2897
      %v2899 = vrot.slane %v2791, 2
      %v2900 = vrot.slane %v2792, 2
      %v2901 = vsel %vm1692, %v2899, %v2900
      %v2902 = vrot.slane %v2793, 2
      %v2903 = vsel %vm1692, %v2900, %v2902
      %v2904 = vrot.slane %v2794, 2
      %v2905 = vrot.slane %v2795, 2
      %v2906 = vsel %vm1692, %v2904, %v2905
      %v2907 = vrot.slane %v2796, 2
      %v2908 = vsel %vm1692, %v2905, %v2907
      %v2909 = vrot.slane %v2797, 2
      %v2910 = vrot.slane %v2798, 2
      %v2911 = vsel %vm1692, %v2909, %v2910
      %v2912 = vrot.slane %v2799, 2
      %v2913 = vsel %vm1692, %v2910, %v2912
      %v2914 = vrot.slane %v2800, 2
      %v2915 = vrot.slane %v2801, 2
      %v2916 = vsel %vm1692, %v2914, %v2915
      %v2917 = vrot.slane %v2802, 2
      %v2918 = vsel %vm1692, %v2915, %v2917
      %v2919 = vrot.slane %v2803, 2
      %v2920 = vrot.slane %v2804, 2
      %v2921 = vsel %vm1692, %v2919, %v2920
      %v2922 = vrot.slane %v2805, 2
      %v2923 = vsel %vm1692, %v2920, %v2922
      %v2924 = vrot.slane %v2806, 2
      %v2925 = vrot.slane %v2807, 2
      %v2926 = vsel %vm1692, %v2924, %v2925
      %v2927 = vrot.slane %v2808, 2
      %v2928 = vsel %vm1692, %v2925, %v2927
      %v2929 = vrot.slane %v2809, 2
      %v2930 = vrot.slane %v2810, 2
      %v2931 = vsel %vm1692, %v2929, %v2930
      %v2932 = vrot.slane %v2811, 2
      %v2933 = vsel %vm1692, %v2930, %v2932
      %v2934 = vrot.slane %v2812, 2
      %v2935 = vrot.slane %v2813, 2
      %v2936 = vsel %vm1692, %v2934, %v2935
      %v2937 = vrot.slane %v2814, 2
      %v2938 = vsel %vm1692, %v2935, %v2937
      %v2939 = vrot.slane %v2815, 2
      %v2940 = vrot.slane %v2816, 2
      %v2941 = vsel %vm1692, %v2939, %v2940
      %v2942 = vrot.slane %v2817, 2
      %v2943 = vsel %vm1692, %v2940, %v2942
      %v2944 = vrot.slane %v2818, 2
      %v2945 = vrot.slane %v2819, 2
      %v2946 = vsel %vm1692, %v2944, %v2945
      %v2947 = vrot.slane %v2820, 2
      %v2948 = vsel %vm1692, %v2945, %v2947
      %v2997 = vadd.f32 %v2721, %v2869
      %v2998 = vadd.f32 %v2722, %v2871
      %v2999 = vadd.f32 %v2723, %v2873
      %v3000 = vadd.f32 %v2724, %v2874
      %v3001 = vadd.f32 %v2725, %v2876
      %v3002 = vadd.f32 %v2726, %v2878
      %v3003 = vadd.f32 %v2727, %v2879
      %v3004 = vadd.f32 %v2728, %v2881
      %v3005 = vadd.f32 %v2729, %v2883
      %v3006 = vadd.f32 %v2730, %v2884
      %v3007 = vadd.f32 %v2731, %v2886
      %v3008 = vadd.f32 %v2732, %v2888
      %v3009 = vadd.f32 %v2733, %v2889
      %v3010 = vadd.f32 %v2734, %v2891
      %v3011 = vadd.f32 %v2735, %v2893
      %v3012 = vadd.f32 %v2736, %v2894
      %v3013 = vadd.f32 %v2737, %v2896
      %v3014 = vadd.f32 %v2738, %v2898
      %v3015 = vadd.f32 %v2739, %v2899
      %v3016 = vadd.f32 %v2740, %v2901
      %v3017 = vadd.f32 %v2741, %v2903
      %v3018 = vadd.f32 %v2742, %v2904
      %v3019 = vadd.f32 %v2743, %v2906
      %v3020 = vadd.f32 %v2744, %v2908
      %v3021 = vadd.f32 %v2745, %v2909
      %v3022 = vadd.f32 %v2746, %v2911
      %v3023 = vadd.f32 %v2747, %v2913
      %v3024 = vadd.f32 %v2748, %v2914
      %v3025 = vadd.f32 %v2749, %v2916
      %v3026 = vadd.f32 %v2750, %v2918
      %v3027 = vadd.f32 %v2751, %v2919
      %v3028 = vadd.f32 %v2752, %v2921
      %v3029 = vadd.f32 %v2753, %v2923
      %v3030 = vadd.f32 %v2754, %v2924
      %v3031 = vadd.f32 %v2755, %v2926
      %v3032 = vadd.f32 %v2756, %v2928
      %v3033 = vadd.f32 %v2757, %v2929
      %v3034 = vadd.f32 %v2758, %v2931
      %v3035 = vadd.f32 %v2759, %v2933
      %v3036 = vadd.f32 %v2760, %v2934
      %v3037 = vadd.f32 %v2761, %v2936
      %v3038 = vadd.f32 %v2762, %v2938
      %v3039 = vadd.f32 %v2763, %v2939
      %v3040 = vadd.f32 %v2764, %v2941
      %v3041 = vadd.f32 %v2765, %v2943
      %v3042 = vadd.f32 %v2766, %v2944
      %v3043 = vadd.f32 %v2767, %v2946
      %v3044 = vadd.f32 %v2768, %v2948
      %v3045 = vld [vmem:[%s5] sm:$0x1]
      %v3047 = vlaneseq
      %v3048 = vshrl.u32 %v3047, 7
      %v3049 = vsub.s32 0, %v3048
      %v3050 = vrot.slane %v3045, %v3049
      %v3052 = vmul.f32 %v2997, %v3050
      %v3053 = vmul.f32 %v2998, %v3050
      %v3054 = vmul.f32 %v2999, %v3050
      %v3055 = vmul.f32 %v3000, %v3050
      %v3056 = vmul.f32 %v3001, %v3050
      %v3057 = vmul.f32 %v3002, %v3050
      %v3058 = vmul.f32 %v3003, %v3050
      %v3059 = vmul.f32 %v3004, %v3050
      %v3060 = vmul.f32 %v3005, %v3050
      %v3061 = vmul.f32 %v3006, %v3050
      %v3062 = vmul.f32 %v3007, %v3050
      %v3063 = vmul.f32 %v3008, %v3050
      %v3064 = vmul.f32 %v3009, %v3050
      %v3065 = vmul.f32 %v3010, %v3050
      %v3066 = vmul.f32 %v3011, %v3050
      %v3067 = vmul.f32 %v3012, %v3050
      %v3068 = vmul.f32 %v3013, %v3050
      %v3069 = vmul.f32 %v3014, %v3050
      %v3070 = vmul.f32 %v3015, %v3050
      %v3071 = vmul.f32 %v3016, %v3050
      %v3072 = vmul.f32 %v3017, %v3050
      %v3073 = vmul.f32 %v3018, %v3050
      %v3074 = vmul.f32 %v3019, %v3050
      %v3075 = vmul.f32 %v3020, %v3050
      %v3076 = vmul.f32 %v3021, %v3050
      %v3077 = vmul.f32 %v3022, %v3050
      %v3078 = vmul.f32 %v3023, %v3050
      %v3079 = vmul.f32 %v3024, %v3050
      %v3080 = vmul.f32 %v3025, %v3050
      %v3081 = vmul.f32 %v3026, %v3050
      %v3082 = vmul.f32 %v3027, %v3050
      %v3083 = vmul.f32 %v3028, %v3050
      %v3084 = vmul.f32 %v3029, %v3050
      %v3085 = vmul.f32 %v3030, %v3050
      %v3086 = vmul.f32 %v3031, %v3050
      %v3087 = vmul.f32 %v3032, %v3050
      %v3088 = vmul.f32 %v3033, %v3050
      %v3089 = vmul.f32 %v3034, %v3050
      %v3090 = vmul.f32 %v3035, %v3050
      %v3091 = vmul.f32 %v3036, %v3050
      %v3092 = vmul.f32 %v3037, %v3050
      %v3093 = vmul.f32 %v3038, %v3050
      %v3094 = vmul.f32 %v3039, %v3050
      %v3095 = vmul.f32 %v3040, %v3050
      %v3096 = vmul.f32 %v3041, %v3050
      %v3097 = vmul.f32 %v3042, %v3050
      %v3098 = vmul.f32 %v3043, %v3050
      %v3099 = vmul.f32 %v3044, %v3050
      %v3100 = vld [vmem:[%s6] sm:$0x1]
      %v3102 = vlaneseq
      %v3103 = vshrl.u32 %v3102, 7
      %v3104 = vsub.s32 0, %v3103
      %v3105 = vrot.slane %v3100, %v3104
      %v3107 = vadd.f32 %v3052, %v3105
      %v3108 = vadd.f32 %v3053, %v3105
      %v3109 = vadd.f32 %v3054, %v3105
      %v3110 = vadd.f32 %v3055, %v3105
      %v3111 = vadd.f32 %v3056, %v3105
      %v3112 = vadd.f32 %v3057, %v3105
      %v3113 = vadd.f32 %v3058, %v3105
      %v3114 = vadd.f32 %v3059, %v3105
      %v3115 = vadd.f32 %v3060, %v3105
      %v3116 = vadd.f32 %v3061, %v3105
      %v3117 = vadd.f32 %v3062, %v3105
      %v3118 = vadd.f32 %v3063, %v3105
      %v3119 = vadd.f32 %v3064, %v3105
      %v3120 = vadd.f32 %v3065, %v3105
      %v3121 = vadd.f32 %v3066, %v3105
      %v3122 = vadd.f32 %v3067, %v3105
      %v3123 = vadd.f32 %v3068, %v3105
      %v3124 = vadd.f32 %v3069, %v3105
      %v3125 = vadd.f32 %v3070, %v3105
      %v3126 = vadd.f32 %v3071, %v3105
      %v3127 = vadd.f32 %v3072, %v3105
      %v3128 = vadd.f32 %v3073, %v3105
      %v3129 = vadd.f32 %v3074, %v3105
      %v3130 = vadd.f32 %v3075, %v3105
      %v3131 = vadd.f32 %v3076, %v3105
      %v3132 = vadd.f32 %v3077, %v3105
      %v3133 = vadd.f32 %v3078, %v3105
      %v3134 = vadd.f32 %v3079, %v3105
      %v3135 = vadd.f32 %v3080, %v3105
      %v3136 = vadd.f32 %v3081, %v3105
      %v3137 = vadd.f32 %v3082, %v3105
      %v3138 = vadd.f32 %v3083, %v3105
      %v3139 = vadd.f32 %v3084, %v3105
      %v3140 = vadd.f32 %v3085, %v3105
      %v3141 = vadd.f32 %v3086, %v3105
      %v3142 = vadd.f32 %v3087, %v3105
      %v3143 = vadd.f32 %v3088, %v3105
      %v3144 = vadd.f32 %v3089, %v3105
      %v3145 = vadd.f32 %v3090, %v3105
      %v3146 = vadd.f32 %v3091, %v3105
      %v3147 = vadd.f32 %v3092, %v3105
      %v3148 = vadd.f32 %v3093, %v3105
      %v3149 = vadd.f32 %v3094, %v3105
      %v3150 = vadd.f32 %v3095, %v3105
      %v3151 = vadd.f32 %v3096, %v3105
      %v3152 = vadd.f32 %v3097, %v3105
      %v3153 = vadd.f32 %v3098, %v3105
      %v3154 = vadd.f32 %v3099, %v3105
      %v3155 = vxor.u32 %v3107, 2147483648
      %v3156 = vxor.u32 %v3108, 2147483648
      %v3157 = vxor.u32 %v3109, 2147483648
      %v3158 = vxor.u32 %v3110, 2147483648
      %v3159 = vxor.u32 %v3111, 2147483648
      %v3160 = vxor.u32 %v3112, 2147483648
      %v3161 = vxor.u32 %v3113, 2147483648
      %v3162 = vxor.u32 %v3114, 2147483648
      %v3163 = vxor.u32 %v3115, 2147483648
      %v3164 = vxor.u32 %v3116, 2147483648
      %v3165 = vxor.u32 %v3117, 2147483648
      %v3166 = vxor.u32 %v3118, 2147483648
      %v3167 = vxor.u32 %v3119, 2147483648
      %v3168 = vxor.u32 %v3120, 2147483648
      %v3169 = vxor.u32 %v3121, 2147483648
      %v3170 = vxor.u32 %v3122, 2147483648
      %v3171 = vxor.u32 %v3123, 2147483648
      %v3172 = vxor.u32 %v3124, 2147483648
      %v3173 = vxor.u32 %v3125, 2147483648
      %v3174 = vxor.u32 %v3126, 2147483648
      %v3175 = vxor.u32 %v3127, 2147483648
      %v3176 = vxor.u32 %v3128, 2147483648
      %v3177 = vxor.u32 %v3129, 2147483648
      %v3178 = vxor.u32 %v3130, 2147483648
      %v3179 = vxor.u32 %v3131, 2147483648
      %v3180 = vxor.u32 %v3132, 2147483648
      %v3181 = vxor.u32 %v3133, 2147483648
      %v3182 = vxor.u32 %v3134, 2147483648
      %v3183 = vxor.u32 %v3135, 2147483648
      %v3184 = vxor.u32 %v3136, 2147483648
      %v3185 = vxor.u32 %v3137, 2147483648
      %v3186 = vxor.u32 %v3138, 2147483648
      %v3187 = vxor.u32 %v3139, 2147483648
      %v3188 = vxor.u32 %v3140, 2147483648
      %v3189 = vxor.u32 %v3141, 2147483648
      %v3190 = vxor.u32 %v3142, 2147483648
      %v3191 = vxor.u32 %v3143, 2147483648
      %v3192 = vxor.u32 %v3144, 2147483648
      %v3193 = vxor.u32 %v3145, 2147483648
      %v3194 = vxor.u32 %v3146, 2147483648
      %v3195 = vxor.u32 %v3147, 2147483648
      %v3196 = vxor.u32 %v3148, 2147483648
      %v3197 = vxor.u32 %v3149, 2147483648
      %v3198 = vxor.u32 %v3150, 2147483648
      %v3199 = vxor.u32 %v3151, 2147483648
      %v3200 = vxor.u32 %v3152, 2147483648
      %v3201 = vxor.u32 %v3153, 2147483648
      %v3202 = vxor.u32 %v3154, 2147483648
      %v3203 = vmul.f32 %v3155, 1.442695
      %v3204 = vpow.pop %v3203
      %v3205 = vmul.f32 %v3156, 1.442695
      %v3206 = vpow.pop %v3205
      %v3207 = vmul.f32 %v3157, 1.442695
      %v3208 = vpow.pop %v3207
      %v3209 = vmul.f32 %v3158, 1.442695
      %v3210 = vpow.pop %v3209
      %v3211 = vmul.f32 %v3159, 1.442695
      %v3212 = vpow.pop %v3211
      %v3213 = vmul.f32 %v3160, 1.442695
      %v3214 = vpow.pop %v3213
      %v3215 = vmul.f32 %v3161, 1.442695
      %v3216 = vpow.pop %v3215
      %v3217 = vmul.f32 %v3162, 1.442695
      %v3218 = vpow.pop %v3217
      %v3219 = vmul.f32 %v3163, 1.442695
      %v3220 = vpow.pop %v3219
      %v3221 = vmul.f32 %v3164, 1.442695
      %v3222 = vpow.pop %v3221
      %v3223 = vmul.f32 %v3165, 1.442695
      %v3224 = vpow.pop %v3223
      %v3225 = vmul.f32 %v3166, 1.442695
      %v3226 = vpow.pop %v3225
      %v3227 = vmul.f32 %v3167, 1.442695
      %v3228 = vpow.pop %v3227
      %v3229 = vmul.f32 %v3168, 1.442695
      %v3230 = vpow.pop %v3229
      %v3231 = vmul.f32 %v3169, 1.442695
      %v3232 = vpow.pop %v3231
      %v3233 = vmul.f32 %v3170, 1.442695
      %v3234 = vpow.pop %v3233
      %v3235 = vmul.f32 %v3171, 1.442695
      %v3236 = vpow.pop %v3235
      %v3237 = vmul.f32 %v3172, 1.442695
      %v3238 = vpow.pop %v3237
      %v3239 = vmul.f32 %v3173, 1.442695
      %v3240 = vpow.pop %v3239
      %v3241 = vmul.f32 %v3174, 1.442695
      %v3242 = vpow.pop %v3241
      %v3243 = vmul.f32 %v3175, 1.442695
      %v3244 = vpow.pop %v3243
      %v3245 = vmul.f32 %v3176, 1.442695
      %v3246 = vpow.pop %v3245
      %v3247 = vmul.f32 %v3177, 1.442695
      %v3248 = vpow.pop %v3247
      %v3249 = vmul.f32 %v3178, 1.442695
      %v3250 = vpow.pop %v3249
      %v3251 = vmul.f32 %v3179, 1.442695
      %v3252 = vpow.pop %v3251
      %v3253 = vmul.f32 %v3180, 1.442695
      %v3254 = vpow.pop %v3253
      %v3255 = vmul.f32 %v3181, 1.442695
      %v3256 = vpow.pop %v3255
      %v3257 = vmul.f32 %v3182, 1.442695
      %v3258 = vpow.pop %v3257
      %v3259 = vmul.f32 %v3183, 1.442695
      %v3260 = vpow.pop %v3259
      %v3261 = vmul.f32 %v3184, 1.442695
      %v3262 = vpow.pop %v3261
      %v3263 = vmul.f32 %v3185, 1.442695
      %v3264 = vpow.pop %v3263
      %v3265 = vmul.f32 %v3186, 1.442695
      %v3266 = vpow.pop %v3265
      %v3267 = vmul.f32 %v3187, 1.442695
      %v3268 = vpow.pop %v3267
      %v3269 = vmul.f32 %v3188, 1.442695
      %v3270 = vpow.pop %v3269
      %v3271 = vmul.f32 %v3189, 1.442695
      %v3272 = vpow.pop %v3271
      %v3273 = vmul.f32 %v3190, 1.442695
      %v3274 = vpow.pop %v3273
      %v3275 = vmul.f32 %v3191, 1.442695
      %v3276 = vpow.pop %v3275
      %v3277 = vmul.f32 %v3192, 1.442695
      %v3278 = vpow.pop %v3277
      %v3279 = vmul.f32 %v3193, 1.442695
      %v3280 = vpow.pop %v3279
      %v3281 = vmul.f32 %v3194, 1.442695
      %v3282 = vpow.pop %v3281
      %v3283 = vmul.f32 %v3195, 1.442695
      %v3284 = vpow.pop %v3283
      %v3285 = vmul.f32 %v3196, 1.442695
      %v3286 = vpow.pop %v3285
      %v3287 = vmul.f32 %v3197, 1.442695
      %v3288 = vpow.pop %v3287
      %v3289 = vmul.f32 %v3198, 1.442695
      %v3290 = vpow.pop %v3289
      %v3291 = vmul.f32 %v3199, 1.442695
      %v3292 = vpow.pop %v3291
      %v3293 = vmul.f32 %v3200, 1.442695
      %v3294 = vpow.pop %v3293
      %v3295 = vmul.f32 %v3201, 1.442695
      %v3296 = vpow.pop %v3295
      %v3297 = vmul.f32 %v3202, 1.442695
      %v3298 = vpow.pop %v3297
      %v3299 = vadd.f32 %v3204, 1.0
      %v3300 = vadd.f32 %v3206, 1.0
      %v3301 = vadd.f32 %v3208, 1.0
      %v3302 = vadd.f32 %v3210, 1.0
      %v3303 = vadd.f32 %v3212, 1.0
      %v3304 = vadd.f32 %v3214, 1.0
      %v3305 = vadd.f32 %v3216, 1.0
      %v3306 = vadd.f32 %v3218, 1.0
      %v3307 = vadd.f32 %v3220, 1.0
      %v3308 = vadd.f32 %v3222, 1.0
      %v3309 = vadd.f32 %v3224, 1.0
      %v3310 = vadd.f32 %v3226, 1.0
      %v3311 = vadd.f32 %v3228, 1.0
      %v3312 = vadd.f32 %v3230, 1.0
      %v3313 = vadd.f32 %v3232, 1.0
      %v3314 = vadd.f32 %v3234, 1.0
      %v3315 = vadd.f32 %v3236, 1.0
      %v3316 = vadd.f32 %v3238, 1.0
      %v3317 = vadd.f32 %v3240, 1.0
      %v3318 = vadd.f32 %v3242, 1.0
      %v3319 = vadd.f32 %v3244, 1.0
      %v3320 = vadd.f32 %v3246, 1.0
      %v3321 = vadd.f32 %v3248, 1.0
      %v3322 = vadd.f32 %v3250, 1.0
      %v3323 = vadd.f32 %v3252, 1.0
      %v3324 = vadd.f32 %v3254, 1.0
      %v3325 = vadd.f32 %v3256, 1.0
      %v3326 = vadd.f32 %v3258, 1.0
      %v3327 = vadd.f32 %v3260, 1.0
      %v3328 = vadd.f32 %v3262, 1.0
      %v3329 = vadd.f32 %v3264, 1.0
      %v3330 = vadd.f32 %v3266, 1.0
      %v3331 = vadd.f32 %v3268, 1.0
      %v3332 = vadd.f32 %v3270, 1.0
      %v3333 = vadd.f32 %v3272, 1.0
      %v3334 = vadd.f32 %v3274, 1.0
      %v3335 = vadd.f32 %v3276, 1.0
      %v3336 = vadd.f32 %v3278, 1.0
      %v3337 = vadd.f32 %v3280, 1.0
      %v3338 = vadd.f32 %v3282, 1.0
      %v3339 = vadd.f32 %v3284, 1.0
      %v3340 = vadd.f32 %v3286, 1.0
      %v3341 = vadd.f32 %v3288, 1.0
      %v3342 = vadd.f32 %v3290, 1.0
      %v3343 = vadd.f32 %v3292, 1.0
      %v3344 = vadd.f32 %v3294, 1.0
      %v3345 = vadd.f32 %v3296, 1.0
      %v3346 = vadd.f32 %v3298, 1.0
      %v3347 = vrcp.pop %v3299
      %v3348 = vmul.f32 1.0, %v3347
      %v3349 = vrcp.pop %v3300
      %v3350 = vmul.f32 1.0, %v3349
      %v3351 = vrcp.pop %v3301
      %v3352 = vmul.f32 1.0, %v3351
      %v3353 = vrcp.pop %v3302
      %v3354 = vmul.f32 1.0, %v3353
      %v3355 = vrcp.pop %v3303
      %v3356 = vmul.f32 1.0, %v3355
      %v3357 = vrcp.pop %v3304
      %v3358 = vmul.f32 1.0, %v3357
      %v3359 = vrcp.pop %v3305
      %v3360 = vmul.f32 1.0, %v3359
      %v3361 = vrcp.pop %v3306
      %v3362 = vmul.f32 1.0, %v3361
      %v3363 = vrcp.pop %v3307
      %v3364 = vmul.f32 1.0, %v3363
      %v3365 = vrcp.pop %v3308
      %v3366 = vmul.f32 1.0, %v3365
      %v3367 = vrcp.pop %v3309
      %v3368 = vmul.f32 1.0, %v3367
      %v3369 = vrcp.pop %v3310
      %v3370 = vmul.f32 1.0, %v3369
      %v3371 = vrcp.pop %v3311
      %v3372 = vmul.f32 1.0, %v3371
      %v3373 = vrcp.pop %v3312
      %v3374 = vmul.f32 1.0, %v3373
      %v3375 = vrcp.pop %v3313
      %v3376 = vmul.f32 1.0, %v3375
      %v3377 = vrcp.pop %v3314
      %v3378 = vmul.f32 1.0, %v3377
      %v3379 = vrcp.pop %v3315
      %v3380 = vmul.f32 1.0, %v3379
      %v3381 = vrcp.pop %v3316
      %v3382 = vmul.f32 1.0, %v3381
      %v3383 = vrcp.pop %v3317
      %v3384 = vmul.f32 1.0, %v3383
      %v3385 = vrcp.pop %v3318
      %v3386 = vmul.f32 1.0, %v3385
      %v3387 = vrcp.pop %v3319
      %v3388 = vmul.f32 1.0, %v3387
      %v3389 = vrcp.pop %v3320
      %v3390 = vmul.f32 1.0, %v3389
      %v3391 = vrcp.pop %v3321
      %v3392 = vmul.f32 1.0, %v3391
      %v3393 = vrcp.pop %v3322
      %v3394 = vmul.f32 1.0, %v3393
      %v3395 = vrcp.pop %v3323
      %v3396 = vmul.f32 1.0, %v3395
      %v3397 = vrcp.pop %v3324
      %v3398 = vmul.f32 1.0, %v3397
      %v3399 = vrcp.pop %v3325
      %v3400 = vmul.f32 1.0, %v3399
      %v3401 = vrcp.pop %v3326
      %v3402 = vmul.f32 1.0, %v3401
      %v3403 = vrcp.pop %v3327
      %v3404 = vmul.f32 1.0, %v3403
      %v3405 = vrcp.pop %v3328
      %v3406 = vmul.f32 1.0, %v3405
      %v3407 = vrcp.pop %v3329
      %v3408 = vmul.f32 1.0, %v3407
      %v3409 = vrcp.pop %v3330
      %v3410 = vmul.f32 1.0, %v3409
      %v3411 = vrcp.pop %v3331
      %v3412 = vmul.f32 1.0, %v3411
      %v3413 = vrcp.pop %v3332
      %v3414 = vmul.f32 1.0, %v3413
      %v3415 = vrcp.pop %v3333
      %v3416 = vmul.f32 1.0, %v3415
      %v3417 = vrcp.pop %v3334
      %v3418 = vmul.f32 1.0, %v3417
      %v3419 = vrcp.pop %v3335
      %v3420 = vmul.f32 1.0, %v3419
      %v3421 = vrcp.pop %v3336
      %v3422 = vmul.f32 1.0, %v3421
      %v3423 = vrcp.pop %v3337
      %v3424 = vmul.f32 1.0, %v3423
      %v3425 = vrcp.pop %v3338
      %v3426 = vmul.f32 1.0, %v3425
      %v3427 = vrcp.pop %v3339
      %v3428 = vmul.f32 1.0, %v3427
      %v3429 = vrcp.pop %v3340
      %v3430 = vmul.f32 1.0, %v3429
      %v3431 = vrcp.pop %v3341
      %v3432 = vmul.f32 1.0, %v3431
      %v3433 = vrcp.pop %v3342
      %v3434 = vmul.f32 1.0, %v3433
      %v3435 = vrcp.pop %v3343
      %v3436 = vmul.f32 1.0, %v3435
      %v3437 = vrcp.pop %v3344
      %v3438 = vmul.f32 1.0, %v3437
      %v3439 = vrcp.pop %v3345
      %v3440 = vmul.f32 1.0, %v3439
      %v3441 = vrcp.pop %v3346
      %v3442 = vmul.f32 1.0, %v3441
      %v3443 = vmul.f32 %v3107, %v3348
      %v3444 = vmul.f32 %v3108, %v3350
      %v3445 = vmul.f32 %v3109, %v3352
      %v3446 = vmul.f32 %v3110, %v3354
      %v3447 = vmul.f32 %v3111, %v3356
      %v3448 = vmul.f32 %v3112, %v3358
      %v3449 = vmul.f32 %v3113, %v3360
      %v3450 = vmul.f32 %v3114, %v3362
      %v3451 = vmul.f32 %v3115, %v3364
      %v3452 = vmul.f32 %v3116, %v3366
      %v3453 = vmul.f32 %v3117, %v3368
      %v3454 = vmul.f32 %v3118, %v3370
      %v3455 = vmul.f32 %v3119, %v3372
      %v3456 = vmul.f32 %v3120, %v3374
      %v3457 = vmul.f32 %v3121, %v3376
      %v3458 = vmul.f32 %v3122, %v3378
      %v3459 = vmul.f32 %v3123, %v3380
      %v3460 = vmul.f32 %v3124, %v3382
      %v3461 = vmul.f32 %v3125, %v3384
      %v3462 = vmul.f32 %v3126, %v3386
      %v3463 = vmul.f32 %v3127, %v3388
      %v3464 = vmul.f32 %v3128, %v3390
      %v3465 = vmul.f32 %v3129, %v3392
      %v3466 = vmul.f32 %v3130, %v3394
      %v3467 = vmul.f32 %v3131, %v3396
      %v3468 = vmul.f32 %v3132, %v3398
      %v3469 = vmul.f32 %v3133, %v3400
      %v3470 = vmul.f32 %v3134, %v3402
      %v3471 = vmul.f32 %v3135, %v3404
      %v3472 = vmul.f32 %v3136, %v3406
      %v3473 = vmul.f32 %v3137, %v3408
      %v3474 = vmul.f32 %v3138, %v3410
      %v3475 = vmul.f32 %v3139, %v3412
      %v3476 = vmul.f32 %v3140, %v3414
      %v3477 = vmul.f32 %v3141, %v3416
      %v3478 = vmul.f32 %v3142, %v3418
      %v3479 = vmul.f32 %v3143, %v3420
      %v3480 = vmul.f32 %v3144, %v3422
      %v3481 = vmul.f32 %v3145, %v3424
      %v3482 = vmul.f32 %v3146, %v3426
      %v3483 = vmul.f32 %v3147, %v3428
      %v3484 = vmul.f32 %v3148, %v3430
      %v3485 = vmul.f32 %v3149, %v3432
      %v3486 = vmul.f32 %v3150, %v3434
      %v3487 = vmul.f32 %v3151, %v3436
      %v3488 = vmul.f32 %v3152, %v3438
      %v3489 = vmul.f32 %v3153, %v3440
      %v3490 = vmul.f32 %v3154, %v3442
      %vm3491 = vcmask 261127
      %v3492 = vsel %vm3491, %v3443, 0.0
      %v3493 = vsel %vm3491, %v3446, 0.0
      %v3494 = vadd.f32 %v3492, %v3493
      %v3495 = vsel %vm3491, %v3449, 0.0
      %v3496 = vadd.f32 %v3494, %v3495
      %v3497 = vsel %vm3491, %v3452, 0.0
      %v3498 = vadd.f32 %v3496, %v3497
      %v3499 = vsel %vm3491, %v3455, 0.0
      %v3500 = vadd.f32 %v3498, %v3499
      %v3501 = vsel %vm3491, %v3458, 0.0
      %v3502 = vadd.f32 %v3500, %v3501
      %v3503 = vsel %vm3491, %v3461, 0.0
      %v3504 = vadd.f32 %v3502, %v3503
      %v3505 = vsel %vm3491, %v3464, 0.0
      %v3506 = vadd.f32 %v3504, %v3505
      %v3507 = vsel %vm3491, %v3467, 0.0
      %v3508 = vadd.f32 %v3506, %v3507
      %v3509 = vsel %vm3491, %v3470, 0.0
      %v3510 = vadd.f32 %v3508, %v3509
      %v3511 = vsel %vm3491, %v3473, 0.0
      %v3512 = vadd.f32 %v3510, %v3511
      %v3513 = vsel %vm3491, %v3476, 0.0
      %v3514 = vadd.f32 %v3512, %v3513
      %v3515 = vsel %vm3491, %v3479, 0.0
      %v3516 = vadd.f32 %v3514, %v3515
      %v3517 = vsel %vm3491, %v3482, 0.0
      %v3518 = vadd.f32 %v3516, %v3517
      %v3519 = vsel %vm3491, %v3485, 0.0
      %v3520 = vadd.f32 %v3518, %v3519
      %v3521 = vsel %vm3491, %v3488, 0.0
      %v3522 = vadd.f32 %v3520, %v3521
      %v3523 = vsel %vm468, %v3444, 0.0
      %v3524 = vsel %vm468, %v3447, 0.0
      %v3525 = vadd.f32 %v3523, %v3524
      %v3526 = vsel %vm468, %v3450, 0.0
      %v3527 = vadd.f32 %v3525, %v3526
      %v3528 = vsel %vm468, %v3453, 0.0
      %v3529 = vadd.f32 %v3527, %v3528
      %v3530 = vsel %vm468, %v3456, 0.0
      %v3531 = vadd.f32 %v3529, %v3530
      %v3532 = vsel %vm468, %v3459, 0.0
      %v3533 = vadd.f32 %v3531, %v3532
      %v3534 = vsel %vm468, %v3462, 0.0
      %v3535 = vadd.f32 %v3533, %v3534
      %v3536 = vsel %vm468, %v3465, 0.0
      %v3537 = vadd.f32 %v3535, %v3536
      %v3538 = vsel %vm468, %v3468, 0.0
      %v3539 = vadd.f32 %v3537, %v3538
      %v3540 = vsel %vm468, %v3471, 0.0
      %v3541 = vadd.f32 %v3539, %v3540
      %v3542 = vsel %vm468, %v3474, 0.0
      %v3543 = vadd.f32 %v3541, %v3542
      %v3544 = vsel %vm468, %v3477, 0.0
      %v3545 = vadd.f32 %v3543, %v3544
      %v3546 = vsel %vm468, %v3480, 0.0
      %v3547 = vadd.f32 %v3545, %v3546
      %v3548 = vsel %vm468, %v3483, 0.0
      %v3549 = vadd.f32 %v3547, %v3548
      %v3550 = vsel %vm468, %v3486, 0.0
      %v3551 = vadd.f32 %v3549, %v3550
      %v3552 = vsel %vm468, %v3489, 0.0
      %v3553 = vadd.f32 %v3551, %v3552
      %vm3554 = vcmask 260096
      %v3555 = vsel %vm3554, %v3445, 0.0
      %v3556 = vsel %vm3554, %v3448, 0.0
      %v3557 = vadd.f32 %v3555, %v3556
      %v3558 = vsel %vm3554, %v3451, 0.0
      %v3559 = vadd.f32 %v3557, %v3558
      %v3560 = vsel %vm3554, %v3454, 0.0
      %v3561 = vadd.f32 %v3559, %v3560
      %v3562 = vsel %vm3554, %v3457, 0.0
      %v3563 = vadd.f32 %v3561, %v3562
      %v3564 = vsel %vm3554, %v3460, 0.0
      %v3565 = vadd.f32 %v3563, %v3564
      %v3566 = vsel %vm3554, %v3463, 0.0
      %v3567 = vadd.f32 %v3565, %v3566
      %v3568 = vsel %vm3554, %v3466, 0.0
      %v3569 = vadd.f32 %v3567, %v3568
      %v3570 = vsel %vm3554, %v3469, 0.0
      %v3571 = vadd.f32 %v3569, %v3570
      %v3572 = vsel %vm3554, %v3472, 0.0
      %v3573 = vadd.f32 %v3571, %v3572
      %v3574 = vsel %vm3554, %v3475, 0.0
      %v3575 = vadd.f32 %v3573, %v3574
      %v3576 = vsel %vm3554, %v3478, 0.0
      %v3577 = vadd.f32 %v3575, %v3576
      %v3578 = vsel %vm3554, %v3481, 0.0
      %v3579 = vadd.f32 %v3577, %v3578
      %v3580 = vsel %vm3554, %v3484, 0.0
      %v3581 = vadd.f32 %v3579, %v3580
      %v3582 = vsel %vm3554, %v3487, 0.0
      %v3583 = vadd.f32 %v3581, %v3582
      %v3584 = vsel %vm3554, %v3490, 0.0
      %v3585 = vadd.f32 %v3583, %v3584
      %vm3589 = vcmask 1040384
      %v3590 = vrot.slane %v3522, 7
      %v3591 = vrot.slane %v3553, 7
      %v3592 = vsel %vm3589, %v3590, %v3591
      %v3593 = vrot.slane %v3585, 7
      %v3594 = vsel %vm3589, %v3591, %v3593
      %v3597 = vsel %vm468, %v3592, 0.0
      %v3598 = vsel %vm468, %v3594, 0.0
      %v3599 = vadd.f32 %v3597, %v3598
      %v3600 = vrot.slane %v3599, 4
      %v3601 = vadd.f32 %v3599, %v3600
      %v3602 = vrot.slane %v3601, 2
      %v3603 = vadd.f32 %v3601, %v3602
      %v3604 = vrot.slane %v3603, 1
      %v3605 = vadd.f32 %v3603, %v3604
      %v3606 = vmul.f32 %v3605, 0.00390625
      %v3607 = vld [vmem:[%s7] sm:$0xff]
      %v3608 = vld [vmem:[%s7 + $0x8] sm:$0xff]
      %v3609 = vld [vmem:[%s7 + $0x10] sm:$0xff]
      %v3610 = vld [vmem:[%s7 + $0x18] sm:$0xff]
      %v3611 = vld [vmem:[%s8] sm:$0x1]
      %v3613 = vsel %vm468, %v3606, 0
      %3615 = vmatprep.subr.mxu0 0.0
      %3616 = vmatpush1.msra.mxu0 %v3607
      %3617 = vmatprep.subr.mxu0 0.0
      %3618 = vmatpush1.msra.mxu0 %v3608
      %3619 = vmatprep.subr.mxu0 0.0
      %3620 = vmatpush1.msra.mxu0 %v3609
      %3621 = vmatprep.subr.mxu0 0.0
      %3622 = vmatpush1.msra.mxu0 %v3610
      %3623 = vmatprep.subr.mxu0 0.0
      %3624 = vmatpush1.msra.mxu0 0.0
      %3625 = vmatprep.subr.mxu0 0.0
      %3626 = vmatpush1.msra.mxu0 0.0
      %3627 = vmatprep.subr.mxu0 0.0
      %3628 = vmatpush1.msra.mxu0 0.0
      %3629 = vmatprep.subr.mxu0 0.0
      %3630 = vmatpush1.msra.mxu0 0.0
      %3631 = vmatprep.subr.mxu0 0.0
      %3632 = vmatpush1.msra.mxu0 0.0
      %3633 = vmatprep.subr.mxu0 0.0
      %3634 = vmatpush1.msra.mxu0 0.0
      %3635 = vmatprep.subr.mxu0 0.0
      %3636 = vmatpush1.msra.mxu0 0.0
      %3637 = vmatprep.subr.mxu0 0.0
      %3638 = vmatpush1.msra.mxu0 0.0
      %3639 = vmatprep.subr.mxu0 0.0
      %3640 = vmatpush1.msra.mxu0 0.0
      %3641 = vmatprep.subr.mxu0 0.0
      %3642 = vmatpush1.msra.mxu0 0.0
      %3643 = vmatprep.subr.mxu0 0.0
      %3644 = vmatpush1.msra.mxu0 0.0
      %3645 = vmatprep.subr.mxu0 0.0
      %3646 = vmatpush1.msra.mxu0 0.0
      %3647 = vmatprep.subr.mxu0 0.0
      %3648 = vmatpush1.msra.mxu0 0.0
      %3649 = vmatprep.subr.mxu0 0.0
      %3650 = vmatpush1.msra.mxu0 0.0
      %3651 = vmatprep.subr.mxu0 0.0
      %3652 = vmatpush1.msra.mxu0 0.0
      %3653 = vmatprep.subr.mxu0 0.0
      %3654 = vmatpush1.msra.mxu0 0.0
      %3655 = vmatprep.subr.mxu0 0.0
      %3656 = vmatpush1.msra.mxu0 0.0
      %3657 = vmatprep.subr.mxu0 0.0
      %3658 = vmatpush1.msra.mxu0 0.0
      %3659 = vmatprep.subr.mxu0 0.0
      %3660 = vmatpush1.msra.mxu0 0.0
      %3661 = vmatprep.subr.mxu0 0.0
      %3662 = vmatpush1.msra.mxu0 0.0
      %3663 = vmatprep.subr.mxu0 0.0
      %3664 = vmatpush1.msra.mxu0 0.0
      %3665 = vmatprep.subr.mxu0 0.0
      %3666 = vmatpush1.msra.mxu0 0.0
      %3667 = vmatprep.subr.mxu0 0.0
      %3668 = vmatpush1.msra.mxu0 0.0
      %3669 = vmatprep.subr.mxu0 0.0
      %3670 = vmatpush1.msra.mxu0 0.0
      %3671 = vmatprep.subr.mxu0 0.0
      %3672 = vmatpush1.msra.mxu0 0.0
      %3673 = vmatprep.subr.mxu0 0.0
      %3674 = vmatpush1.msra.mxu0 0.0
      %3675 = vmatprep.subr.mxu0 0.0
      %3676 = vmatpush1.msra.mxu0 0.0
      %3677 = vmatprep.subr.mxu0 0.0
      %3678 = vmatpush1.msra.mxu0 0.0
      %3679 = vmatprep.mubr.f32.mxu0 0.0
      %3680 = vmatmul.mubr.f32.gmra.mrb[0].mxu0 %v3613
      %v3681 = vpop.f32.mrb[0].mxu0
      %v3682 = vadd.f32 %v3611, %v3681
      %v3683 = vpop.f32.mrb[0].mxu0
      %3684 = vdwg.mxu0
      %v3685 = vxor.u32 %v3682, 2147483648
      %v3686 = vmul.f32 %v3685, 1.442695
      %v3687 = vpow.pop %v3686
      %v3688 = vadd.f32 %v3687, 1.0
      %v3689 = vrcp.pop %v3688
      %v3690 = vmul.f32 1.0, %v3689
      %v3691 = vmul.f32 %v3682, %v3690
      %v3692 = vld [vmem:[%s9] sm:$0x3]
      %v3693 = vld [vmem:[%s10] sm:$0x1]
      %vm3694 = vcmask 15360
      %v3696 = vsel %vm3694, %v3691, 0
      %vm3698 = vcmask 1041408
      %v3700 = vsel %vm3698, %v3692, 0
      %3702 = vmatprep.subr.mxu0 0.0
      %3703 = vmatpush1.msra.mxu0 %v3700
      %3704 = vmatprep.subr.mxu0 0.0
      %3705 = vmatpush1.msra.mxu0 0.0
      %3706 = vmatprep.subr.mxu0 0.0
      %3707 = vmatpush1.msra.mxu0 0.0
      %3708 = vmatprep.subr.mxu0 0.0
      %3709 = vmatpush1.msra.mxu0 0.0
      %3710 = vmatprep.subr.mxu0 0.0
      %3711 = vmatpush1.msra.mxu0 0.0
      %3712 = vmatprep.subr.mxu0 0.0
      %3713 = vmatpush1.msra.mxu0 0.0
      %3714 = vmatprep.subr.mxu0 0.0
      %3715 = vmatpush1.msra.mxu0 0.0
      %3716 = vmatprep.subr.mxu0 0.0
      %3717 = vmatpush1.msra.mxu0 0.0
      %3718 = vmatprep.subr.mxu0 0.0
      %3719 = vmatpush1.msra.mxu0 0.0
      %3720 = vmatprep.subr.mxu0 0.0
      %3721 = vmatpush1.msra.mxu0 0.0
      %3722 = vmatprep.subr.mxu0 0.0
      %3723 = vmatpush1.msra.mxu0 0.0
      %3724 = vmatprep.subr.mxu0 0.0
      %3725 = vmatpush1.msra.mxu0 0.0
      %3726 = vmatprep.subr.mxu0 0.0
      %3727 = vmatpush1.msra.mxu0 0.0
      %3728 = vmatprep.subr.mxu0 0.0
      %3729 = vmatpush1.msra.mxu0 0.0
      %3730 = vmatprep.subr.mxu0 0.0
      %3731 = vmatpush1.msra.mxu0 0.0
      %3732 = vmatprep.subr.mxu0 0.0
      %3733 = vmatpush1.msra.mxu0 0.0
      %3734 = vmatprep.subr.mxu0 0.0
      %3735 = vmatpush1.msra.mxu0 0.0
      %3736 = vmatprep.subr.mxu0 0.0
      %3737 = vmatpush1.msra.mxu0 0.0
      %3738 = vmatprep.subr.mxu0 0.0
      %3739 = vmatpush1.msra.mxu0 0.0
      %3740 = vmatprep.subr.mxu0 0.0
      %3741 = vmatpush1.msra.mxu0 0.0
      %3742 = vmatprep.subr.mxu0 0.0
      %3743 = vmatpush1.msra.mxu0 0.0
      %3744 = vmatprep.subr.mxu0 0.0
      %3745 = vmatpush1.msra.mxu0 0.0
      %3746 = vmatprep.subr.mxu0 0.0
      %3747 = vmatpush1.msra.mxu0 0.0
      %3748 = vmatprep.subr.mxu0 0.0
      %3749 = vmatpush1.msra.mxu0 0.0
      %3750 = vmatprep.subr.mxu0 0.0
      %3751 = vmatpush1.msra.mxu0 0.0
      %3752 = vmatprep.subr.mxu0 0.0
      %3753 = vmatpush1.msra.mxu0 0.0
      %3754 = vmatprep.subr.mxu0 0.0
      %3755 = vmatpush1.msra.mxu0 0.0
      %3756 = vmatprep.subr.mxu0 0.0
      %3757 = vmatpush1.msra.mxu0 0.0
      %3758 = vmatprep.subr.mxu0 0.0
      %3759 = vmatpush1.msra.mxu0 0.0
      %3760 = vmatprep.subr.mxu0 0.0
      %3761 = vmatpush1.msra.mxu0 0.0
      %3762 = vmatprep.subr.mxu0 0.0
      %3763 = vmatpush1.msra.mxu0 0.0
      %3764 = vmatprep.subr.mxu0 0.0
      %3765 = vmatpush1.msra.mxu0 0.0
      %3766 = vmatprep.mubr.f32.mxu0 0.0
      %3767 = vmatmul.mubr.f32.gmra.mrb[0].mxu0 %v3696
      %v3768 = vpop.f32.mrb[0].mxu0
      %v3769 = vadd.f32 %v3693, %v3768
      %v3770 = vpop.f32.mrb[0].mxu0
      %3771 = vdwg.mxu0
      %v3772 = vxor.u32 %v3769, 2147483648
      %v3773 = vmul.f32 %v3772, 1.442695
      %v3774 = vpow.pop %v3773
      %v3775 = vadd.f32 %v3774, 1.0
      %v3776 = vrcp.pop %v3775
      %v3777 = vmul.f32 1.0, %v3776
      %v3778 = vlaneseq
      %v3779 = vshrl.u32 %v3778, 7
      %v3780 = vsub.s32 0, %v3779
      %v3781 = vrot.slane %v3777, %v3780
      %v3782 = vmul.f32 %v3443, %v3781
      %v3783 = vmul.f32 %v3444, %v3781
      %v3784 = vmul.f32 %v3445, %v3781
      %v3785 = vmul.f32 %v3446, %v3781
      %v3786 = vmul.f32 %v3447, %v3781
      %v3787 = vmul.f32 %v3448, %v3781
      %v3788 = vmul.f32 %v3449, %v3781
      %v3789 = vmul.f32 %v3450, %v3781
      %v3790 = vmul.f32 %v3451, %v3781
      %v3791 = vmul.f32 %v3452, %v3781
      %v3792 = vmul.f32 %v3453, %v3781
      %v3793 = vmul.f32 %v3454, %v3781
      %v3794 = vmul.f32 %v3455, %v3781
      %v3795 = vmul.f32 %v3456, %v3781
      %v3796 = vmul.f32 %v3457, %v3781
      %v3797 = vmul.f32 %v3458, %v3781
      %v3798 = vmul.f32 %v3459, %v3781
      %v3799 = vmul.f32 %v3460, %v3781
      %v3800 = vmul.f32 %v3461, %v3781
      %v3801 = vmul.f32 %v3462, %v3781
      %v3802 = vmul.f32 %v3463, %v3781
      %v3803 = vmul.f32 %v3464, %v3781
      %v3804 = vmul.f32 %v3465, %v3781
      %v3805 = vmul.f32 %v3466, %v3781
      %v3806 = vmul.f32 %v3467, %v3781
      %v3807 = vmul.f32 %v3468, %v3781
      %v3808 = vmul.f32 %v3469, %v3781
      %v3809 = vmul.f32 %v3470, %v3781
      %v3810 = vmul.f32 %v3471, %v3781
      %v3811 = vmul.f32 %v3472, %v3781
      %v3812 = vmul.f32 %v3473, %v3781
      %v3813 = vmul.f32 %v3474, %v3781
      %v3814 = vmul.f32 %v3475, %v3781
      %v3815 = vmul.f32 %v3476, %v3781
      %v3816 = vmul.f32 %v3477, %v3781
      %v3817 = vmul.f32 %v3478, %v3781
      %v3818 = vmul.f32 %v3479, %v3781
      %v3819 = vmul.f32 %v3480, %v3781
      %v3820 = vmul.f32 %v3481, %v3781
      %v3821 = vmul.f32 %v3482, %v3781
      %v3822 = vmul.f32 %v3483, %v3781
      %v3823 = vmul.f32 %v3484, %v3781
      %v3824 = vmul.f32 %v3485, %v3781
      %v3825 = vmul.f32 %v3486, %v3781
      %v3826 = vmul.f32 %v3487, %v3781
      %v3827 = vmul.f32 %v3488, %v3781
      %v3828 = vmul.f32 %v3489, %v3781
      %v3829 = vmul.f32 %v3490, %v3781
      %v3878 = vrot.slane %v3782, 7
      %v3879 = vrot.slane %v3783, 7
      %v3880 = vsel %vm3589, %v3878, %v3879
      %v3881 = vrot.slane %v3784, 7
      %v3882 = vsel %vm3589, %v3879, %v3881
      %v3883 = vrot.slane %v3785, 7
      %v3884 = vrot.slane %v3786, 7
      %v3885 = vsel %vm3589, %v3883, %v3884
      %v3886 = vrot.slane %v3787, 7
      %v3887 = vsel %vm3589, %v3884, %v3886
      %v3888 = vrot.slane %v3788, 7
      %v3889 = vrot.slane %v3789, 7
      %v3890 = vsel %vm3589, %v3888, %v3889
      %v3891 = vrot.slane %v3790, 7
      %v3892 = vsel %vm3589, %v3889, %v3891
      %v3893 = vrot.slane %v3791, 7
      %v3894 = vrot.slane %v3792, 7
      %v3895 = vsel %vm3589, %v3893, %v3894
      %v3896 = vrot.slane %v3793, 7
      %v3897 = vsel %vm3589, %v3894, %v3896
      %v3898 = vrot.slane %v3794, 7
      %v3899 = vrot.slane %v3795, 7
      %v3900 = vsel %vm3589, %v3898, %v3899
      %v3901 = vrot.slane %v3796, 7
      %v3902 = vsel %vm3589, %v3899, %v3901
      %v3903 = vrot.slane %v3797, 7
      %v3904 = vrot.slane %v3798, 7
      %v3905 = vsel %vm3589, %v3903, %v3904
      %v3906 = vrot.slane %v3799, 7
      %v3907 = vsel %vm3589, %v3904, %v3906
      %v3908 = vrot.slane %v3800, 7
      %v3909 = vrot.slane %v3801, 7
      %v3910 = vsel %vm3589, %v3908, %v3909
      %v3911 = vrot.slane %v3802, 7
      %v3912 = vsel %vm3589, %v3909, %v3911
      %v3913 = vrot.slane %v3803, 7
      %v3914 = vrot.slane %v3804, 7
      %v3915 = vsel %vm3589, %v3913, %v3914
      %v3916 = vrot.slane %v3805, 7
      %v3917 = vsel %vm3589, %v3914, %v3916
      %v3918 = vrot.slane %v3806, 7
      %v3919 = vrot.slane %v3807, 7
      %v3920 = vsel %vm3589, %v3918, %v3919
      %v3921 = vrot.slane %v3808, 7
      %v3922 = vsel %vm3589, %v3919, %v3921
      %v3923 = vrot.slane %v3809, 7
      %v3924 = vrot.slane %v3810, 7
      %v3925 = vsel %vm3589, %v3923, %v3924
      %v3926 = vrot.slane %v3811, 7
      %v3927 = vsel %vm3589, %v3924, %v3926
      %v3928 = vrot.slane %v3812, 7
      %v3929 = vrot.slane %v3813, 7
      %v3930 = vsel %vm3589, %v3928, %v3929
      %v3931 = vrot.slane %v3814, 7
      %v3932 = vsel %vm3589, %v3929, %v3931
      %v3933 = vrot.slane %v3815, 7
      %v3934 = vrot.slane %v3816, 7
      %v3935 = vsel %vm3589, %v3933, %v3934
      %v3936 = vrot.slane %v3817, 7
      %v3937 = vsel %vm3589, %v3934, %v3936
      %v3938 = vrot.slane %v3818, 7
      %v3939 = vrot.slane %v3819, 7
      %v3940 = vsel %vm3589, %v3938, %v3939
      %v3941 = vrot.slane %v3820, 7
      %v3942 = vsel %vm3589, %v3939, %v3941
      %v3943 = vrot.slane %v3821, 7
      %v3944 = vrot.slane %v3822, 7
      %v3945 = vsel %vm3589, %v3943, %v3944
      %v3946 = vrot.slane %v3823, 7
      %v3947 = vsel %vm3589, %v3944, %v3946
      %v3948 = vrot.slane %v3824, 7
      %v3949 = vrot.slane %v3825, 7
      %v3950 = vsel %vm3589, %v3948, %v3949
      %v3951 = vrot.slane %v3826, 7
      %v3952 = vsel %vm3589, %v3949, %v3951
      %v3953 = vrot.slane %v3827, 7
      %v3954 = vrot.slane %v3828, 7
      %v3955 = vsel %vm3589, %v3953, %v3954
      %v3956 = vrot.slane %v3829, 7
      %v3957 = vsel %vm3589, %v3954, %v3956
      %v3958 = vld [vmem:[%s11] sm:$0xff]
      %v3959 = vld [vmem:[%s11 + $0x8] sm:$0xff]
      %v3960 = vld [vmem:[%s11 + $0x10] sm:$0xff]
      %v3961 = vld [vmem:[%s11 + $0x18] sm:$0xff]
      %v3962 = vsel %vm468, %v3880, 0
      %v3964 = vsel %vm468, %v3882, 0
      %v3966 = vsel %vm468, %v3885, 0
      %v3968 = vsel %vm468, %v3887, 0
      %v3970 = vsel %vm468, %v3890, 0
      %v3972 = vsel %vm468, %v3892, 0
      %v3974 = vsel %vm468, %v3895, 0
      %v3976 = vsel %vm468, %v3897, 0
      %v3978 = vsel %vm468, %v3900, 0
      %v3980 = vsel %vm468, %v3902, 0
      %v3982 = vsel %vm468, %v3905, 0
      %v3984 = vsel %vm468, %v3907, 0
      %v3986 = vsel %vm468, %v3910, 0
      %v3988 = vsel %vm468, %v3912, 0
      %v3990 = vsel %vm468, %v3915, 0
      %v3992 = vsel %vm468, %v3917, 0
      %v3994 = vsel %vm468, %v3920, 0
      %v3996 = vsel %vm468, %v3922, 0
      %v3998 = vsel %vm468, %v3925, 0
      %v4000 = vsel %vm468, %v3927, 0
      %v4002 = vsel %vm468, %v3930, 0
      %v4004 = vsel %vm468, %v3932, 0
      %v4006 = vsel %vm468, %v3935, 0
      %v4008 = vsel %vm468, %v3937, 0
      %v4010 = vsel %vm468, %v3940, 0
      %v4012 = vsel %vm468, %v3942, 0
      %v4014 = vsel %vm468, %v3945, 0
      %v4016 = vsel %vm468, %v3947, 0
      %v4018 = vsel %vm468, %v3950, 0
      %v4020 = vsel %vm468, %v3952, 0
      %v4022 = vsel %vm468, %v3955, 0
      %v4024 = vsel %vm468, %v3957, 0
      %4026 = vmatprep.subr.mxu0 0.0
      %4027 = vmatpush1.msra.mxu0 %v3958
      %4028 = vmatprep.subr.mxu0 0.0
      %4029 = vmatpush1.msra.mxu0 %v3959
      %4030 = vmatprep.subr.mxu0 0.0
      %4031 = vmatpush1.msra.mxu0 %v3960
      %4032 = vmatprep.subr.mxu0 0.0
      %4033 = vmatpush1.msra.mxu0 %v3961
      %4034 = vmatprep.subr.mxu0 0.0
      %4035 = vmatpush1.msra.mxu0 0.0
      %4036 = vmatprep.subr.mxu0 0.0
      %4037 = vmatpush1.msra.mxu0 0.0
      %4038 = vmatprep.subr.mxu0 0.0
      %4039 = vmatpush1.msra.mxu0 0.0
      %4040 = vmatprep.subr.mxu0 0.0
      %4041 = vmatpush1.msra.mxu0 0.0
      %4042 = vmatprep.subr.mxu0 0.0
      %4043 = vmatpush1.msra.mxu0 0.0
      %4044 = vmatprep.subr.mxu0 0.0
      %4045 = vmatpush1.msra.mxu0 0.0
      %4046 = vmatprep.subr.mxu0 0.0
      %4047 = vmatpush1.msra.mxu0 0.0
      %4048 = vmatprep.subr.mxu0 0.0
      %4049 = vmatpush1.msra.mxu0 0.0
      %4050 = vmatprep.subr.mxu0 0.0
      %4051 = vmatpush1.msra.mxu0 0.0
      %4052 = vmatprep.subr.mxu0 0.0
      %4053 = vmatpush1.msra.mxu0 0.0
      %4054 = vmatprep.subr.mxu0 0.0
      %4055 = vmatpush1.msra.mxu0 0.0
      %4056 = vmatprep.subr.mxu0 0.0
      %4057 = vmatpush1.msra.mxu0 0.0
      %4058 = vmatprep.subr.mxu0 0.0
      %4059 = vmatpush1.msra.mxu0 0.0
      %4060 = vmatprep.subr.mxu0 0.0
      %4061 = vmatpush1.msra.mxu0 0.0
      %4062 = vmatprep.subr.mxu0 0.0
      %4063 = vmatpush1.msra.mxu0 0.0
      %4064 = vmatprep.subr.mxu0 0.0
      %4065 = vmatpush1.msra.mxu0 0.0
      %4066 = vmatprep.subr.mxu0 0.0
      %4067 = vmatpush1.msra.mxu0 0.0
      %4068 = vmatprep.subr.mxu0 0.0
      %4069 = vmatpush1.msra.mxu0 0.0
      %4070 = vmatprep.subr.mxu0 0.0
      %4071 = vmatpush1.msra.mxu0 0.0
      %4072 = vmatprep.subr.mxu0 0.0
      %4073 = vmatpush1.msra.mxu0 0.0
      %4074 = vmatprep.subr.mxu0 0.0
      %4075 = vmatpush1.msra.mxu0 0.0
      %4076 = vmatprep.subr.mxu0 0.0
      %4077 = vmatpush1.msra.mxu0 0.0
      %4078 = vmatprep.subr.mxu0 0.0
      %4079 = vmatpush1.msra.mxu0 0.0
      %4080 = vmatprep.subr.mxu0 0.0
      %4081 = vmatpush1.msra.mxu0 0.0
      %4082 = vmatprep.subr.mxu0 0.0
      %4083 = vmatpush1.msra.mxu0 0.0
      %4084 = vmatprep.subr.mxu0 0.0
      %4085 = vmatpush1.msra.mxu0 0.0
      %4086 = vmatprep.subr.mxu0 0.0
      %4087 = vmatpush1.msra.mxu0 0.0
      %4088 = vmatprep.subr.mxu0 0.0
      %4089 = vmatpush1.msra.mxu0 0.0
      %4090 = vmatprep.mubr.f32.mxu0 0.0
      %4091 = vmatmul.mubr.f32.gmra.mrb[0].mxu0 %v3962
      %v4092 = vpop.f32.mrb[0].mxu0
      %v4093 = vadd.f32 0.0, %v4092
      %v4094 = vpop.f32.mrb[0].mxu0
      %4095 = vmatprep.mubr.f32.mxu0 0.0
      %4096 = vmatmul.mubr.f32.gmra.mrb[0].mxu0 %v3964
      %v4097 = vpop.f32.mrb[0].mxu0
      %v4098 = vadd.f32 0.0, %v4097
      %v4099 = vpop.f32.mrb[0].mxu0
      %4100 = vmatprep.mubr.f32.mxu0 0.0
      %4101 = vmatmul.mubr.f32.gmra.mrb[0].mxu0 %v3966
      %v4102 = vpop.f32.mrb[0].mxu0
      %v4103 = vadd.f32 0.0, %v4102
      %v4104 = vpop.f32.mrb[0].mxu0
      %4105 = vmatprep.mubr.f32.mxu0 0.0
      %4106 = vmatmul.mubr.f32.gmra.mrb[0].mxu0 %v3968
      %v4107 = vpop.f32.mrb[0].mxu0
      %v4108 = vadd.f32 0.0, %v4107
      %v4109 = vpop.f32.mrb[0].mxu0
      %4110 = vmatprep.mubr.f32.mxu0 0.0
      %4111 = vmatmul.mubr.f32.gmra.mrb[0].mxu0 %v3970
      %v4112 = vpop.f32.mrb[0].mxu0
      %v4113 = vadd.f32 0.0, %v4112
      %v4114 = vpop.f32.mrb[0].mxu0
      %4115 = vmatprep.mubr.f32.mxu0 0.0
      %4116 = vmatmul.mubr.f32.gmra.mrb[0].mxu0 %v3972
      %v4117 = vpop.f32.mrb[0].mxu0
      %v4118 = vadd.f32 0.0, %v4117
      %v4119 = vpop.f32.mrb[0].mxu0
      %4120 = vmatprep.mubr.f32.mxu0 0.0
      %4121 = vmatmul.mubr.f32.gmra.mrb[0].mxu0 %v3974
      %v4122 = vpop.f32.mrb[0].mxu0
      %v4123 = vadd.f32 0.0, %v4122
      %v4124 = vpop.f32.mrb[0].mxu0
      %4125 = vmatprep.mubr.f32.mxu0 0.0
      %4126 = vmatmul.mubr.f32.gmra.mrb[0].mxu0 %v3976
      %v4127 = vpop.f32.mrb[0].mxu0
      %v4128 = vadd.f32 0.0, %v4127
      %v4129 = vpop.f32.mrb[0].mxu0
      %4130 = vmatprep.mubr.f32.mxu0 0.0
      %4131 = vmatmul.mubr.f32.gmra.mrb[0].mxu0 %v3978
      %v4132 = vpop.f32.mrb[0].mxu0
      %v4133 = vadd.f32 0.0, %v4132
      %v4134 = vpop.f32.mrb[0].mxu0
      %4135 = vmatprep.mubr.f32.mxu0 0.0
      %4136 = vmatmul.mubr.f32.gmra.mrb[0].mxu0 %v3980
      %v4137 = vpop.f32.mrb[0].mxu0
      %v4138 = vadd.f32 0.0, %v4137
      %v4139 = vpop.f32.mrb[0].mxu0
      %4140 = vmatprep.mubr.f32.mxu0 0.0
      %4141 = vmatmul.mubr.f32.gmra.mrb[0].mxu0 %v3982
      %v4142 = vpop.f32.mrb[0].mxu0
      %v4143 = vadd.f32 0.0, %v4142
      %v4144 = vpop.f32.mrb[0].mxu0
      %4145 = vmatprep.mubr.f32.mxu0 0.0
      %4146 = vmatmul.mubr.f32.gmra.mrb[0].mxu0 %v3984
      %v4147 = vpop.f32.mrb[0].mxu0
      %v4148 = vadd.f32 0.0, %v4147
      %v4149 = vpop.f32.mrb[0].mxu0
      %4150 = vmatprep.mubr.f32.mxu0 0.0
      %4151 = vmatmul.mubr.f32.gmra.mrb[0].mxu0 %v3986
      %v4152 = vpop.f32.mrb[0].mxu0
      %v4153 = vadd.f32 0.0, %v4152
      %v4154 = vpop.f32.mrb[0].mxu0
      %4155 = vmatprep.mubr.f32.mxu0 0.0
      %4156 = vmatmul.mubr.f32.gmra.mrb[0].mxu0 %v3988
      %v4157 = vpop.f32.mrb[0].mxu0
      %v4158 = vadd.f32 0.0, %v4157
      %v4159 = vpop.f32.mrb[0].mxu0
      %4160 = vmatprep.mubr.f32.mxu0 0.0
      %4161 = vmatmul.mubr.f32.gmra.mrb[0].mxu0 %v3990
      %v4162 = vpop.f32.mrb[0].mxu0
      %v4163 = vadd.f32 0.0, %v4162
      %v4164 = vpop.f32.mrb[0].mxu0
      %4165 = vmatprep.mubr.f32.mxu0 0.0
      %4166 = vmatmul.mubr.f32.gmra.mrb[0].mxu0 %v3992
      %v4167 = vpop.f32.mrb[0].mxu0
      %v4168 = vadd.f32 0.0, %v4167
      %v4169 = vpop.f32.mrb[0].mxu0
      %4170 = vmatprep.mubr.f32.mxu0 0.0
      %4171 = vmatmul.mubr.f32.gmra.mrb[0].mxu0 %v3994
      %v4172 = vpop.f32.mrb[0].mxu0
      %v4173 = vadd.f32 0.0, %v4172
      %v4174 = vpop.f32.mrb[0].mxu0
      %4175 = vmatprep.mubr.f32.mxu0 0.0
      %4176 = vmatmul.mubr.f32.gmra.mrb[0].mxu0 %v3996
      %v4177 = vpop.f32.mrb[0].mxu0
      %v4178 = vadd.f32 0.0, %v4177
      %v4179 = vpop.f32.mrb[0].mxu0
      %4180 = vmatprep.mubr.f32.mxu0 0.0
      %4181 = vmatmul.mubr.f32.gmra.mrb[0].mxu0 %v3998
      %v4182 = vpop.f32.mrb[0].mxu0
      %v4183 = vadd.f32 0.0, %v4182
      %v4184 = vpop.f32.mrb[0].mxu0
      %4185 = vmatprep.mubr.f32.mxu0 0.0
      %4186 = vmatmul.mubr.f32.gmra.mrb[0].mxu0 %v4000
      %v4187 = vpop.f32.mrb[0].mxu0
      %v4188 = vadd.f32 0.0, %v4187
      %v4189 = vpop.f32.mrb[0].mxu0
      %4190 = vmatprep.mubr.f32.mxu0 0.0
      %4191 = vmatmul.mubr.f32.gmra.mrb[0].mxu0 %v4002
      %v4192 = vpop.f32.mrb[0].mxu0
      %v4193 = vadd.f32 0.0, %v4192
      %v4194 = vpop.f32.mrb[0].mxu0
      %4195 = vmatprep.mubr.f32.mxu0 0.0
      %4196 = vmatmul.mubr.f32.gmra.mrb[0].mxu0 %v4004
      %v4197 = vpop.f32.mrb[0].mxu0
      %v4198 = vadd.f32 0.0, %v4197
      %v4199 = vpop.f32.mrb[0].mxu0
      %4200 = vmatprep.mubr.f32.mxu0 0.0
      %4201 = vmatmul.mubr.f32.gmra.mrb[0].mxu0 %v4006
      %v4202 = vpop.f32.mrb[0].mxu0
      %v4203 = vadd.f32 0.0, %v4202
      %v4204 = vpop.f32.mrb[0].mxu0
      %4205 = vmatprep.mubr.f32.mxu0 0.0
      %4206 = vmatmul.mubr.f32.gmra.mrb[0].mxu0 %v4008
      %v4207 = vpop.f32.mrb[0].mxu0
      %v4208 = vadd.f32 0.0, %v4207
      %v4209 = vpop.f32.mrb[0].mxu0
      %4210 = vmatprep.mubr.f32.mxu0 0.0
      %4211 = vmatmul.mubr.f32.gmra.mrb[0].mxu0 %v4010
      %v4212 = vpop.f32.mrb[0].mxu0
      %v4213 = vadd.f32 0.0, %v4212
      %v4214 = vpop.f32.mrb[0].mxu0
      %4215 = vmatprep.mubr.f32.mxu0 0.0
      %4216 = vmatmul.mubr.f32.gmra.mrb[0].mxu0 %v4012
      %v4217 = vpop.f32.mrb[0].mxu0
      %v4218 = vadd.f32 0.0, %v4217
      %v4219 = vpop.f32.mrb[0].mxu0
      %4220 = vmatprep.mubr.f32.mxu0 0.0
      %4221 = vmatmul.mubr.f32.gmra.mrb[0].mxu0 %v4014
      %v4222 = vpop.f32.mrb[0].mxu0
      %v4223 = vadd.f32 0.0, %v4222
      %v4224 = vpop.f32.mrb[0].mxu0
      %4225 = vmatprep.mubr.f32.mxu0 0.0
      %4226 = vmatmul.mubr.f32.gmra.mrb[0].mxu0 %v4016
      %v4227 = vpop.f32.mrb[0].mxu0
      %v4228 = vadd.f32 0.0, %v4227
      %v4229 = vpop.f32.mrb[0].mxu0
      %4230 = vmatprep.mubr.f32.mxu0 0.0
      %4231 = vmatmul.mubr.f32.gmra.mrb[0].mxu0 %v4018
      %v4232 = vpop.f32.mrb[0].mxu0
      %v4233 = vadd.f32 0.0, %v4232
      %v4234 = vpop.f32.mrb[0].mxu0
      %4235 = vmatprep.mubr.f32.mxu0 0.0
      %4236 = vmatmul.mubr.f32.gmra.mrb[0].mxu0 %v4020
      %v4237 = vpop.f32.mrb[0].mxu0
      %v4238 = vadd.f32 0.0, %v4237
      %v4239 = vpop.f32.mrb[0].mxu0
      %4240 = vmatprep.mubr.f32.mxu0 0.0
      %4241 = vmatmul.mubr.f32.gmra.mrb[0].mxu0 %v4022
      %v4242 = vpop.f32.mrb[0].mxu0
      %v4243 = vadd.f32 0.0, %v4242
      %v4244 = vpop.f32.mrb[0].mxu0
      %4245 = vmatprep.mubr.f32.mxu0 0.0
      %4246 = vmatmul.mubr.f32.gmra.mrb[0].mxu0 %v4024
      %v4247 = vpop.f32.mrb[0].mxu0
      %v4248 = vadd.f32 0.0, %v4247
      %v4249 = vpop.f32.mrb[0].mxu0
      %4250 = vdwg.mxu0
      %v4251 = vld [vmem:[%s12] sm:$0x1]
      %v4253 = vlaneseq
      %v4254 = vshrl.u32 %v4253, 7
      %v4255 = vsub.s32 0, %v4254
      %v4256 = vrot.slane %v4251, %v4255
      %v4258 = vmul.f32 %v4093, %v4256
      %v4259 = vmul.f32 %v4098, %v4256
      %v4260 = vmul.f32 %v4103, %v4256
      %v4261 = vmul.f32 %v4108, %v4256
      %v4262 = vmul.f32 %v4113, %v4256
      %v4263 = vmul.f32 %v4118, %v4256
      %v4264 = vmul.f32 %v4123, %v4256
      %v4265 = vmul.f32 %v4128, %v4256
      %v4266 = vmul.f32 %v4133, %v4256
      %v4267 = vmul.f32 %v4138, %v4256
      %v4268 = vmul.f32 %v4143, %v4256
      %v4269 = vmul.f32 %v4148, %v4256
      %v4270 = vmul.f32 %v4153, %v4256
      %v4271 = vmul.f32 %v4158, %v4256
      %v4272 = vmul.f32 %v4163, %v4256
      %v4273 = vmul.f32 %v4168, %v4256
      %v4274 = vmul.f32 %v4173, %v4256
      %v4275 = vmul.f32 %v4178, %v4256
      %v4276 = vmul.f32 %v4183, %v4256
      %v4277 = vmul.f32 %v4188, %v4256
      %v4278 = vmul.f32 %v4193, %v4256
      %v4279 = vmul.f32 %v4198, %v4256
      %v4280 = vmul.f32 %v4203, %v4256
      %v4281 = vmul.f32 %v4208, %v4256
      %v4282 = vmul.f32 %v4213, %v4256
      %v4283 = vmul.f32 %v4218, %v4256
      %v4284 = vmul.f32 %v4223, %v4256
      %v4285 = vmul.f32 %v4228, %v4256
      %v4286 = vmul.f32 %v4233, %v4256
      %v4287 = vmul.f32 %v4238, %v4256
      %v4288 = vmul.f32 %v4243, %v4256
      %v4289 = vmul.f32 %v4248, %v4256
      %v4290 = vld [vmem:[%s13] sm:$0x1]
      %v4292 = vlaneseq
      %v4293 = vshrl.u32 %v4292, 7
      %v4294 = vsub.s32 0, %v4293
      %v4295 = vrot.slane %v4290, %v4294
      %v4297 = vadd.f32 %v4258, %v4295
      %v4298 = vadd.f32 %v4259, %v4295
      %v4299 = vadd.f32 %v4260, %v4295
      %v4300 = vadd.f32 %v4261, %v4295
      %v4301 = vadd.f32 %v4262, %v4295
      %v4302 = vadd.f32 %v4263, %v4295
      %v4303 = vadd.f32 %v4264, %v4295
      %v4304 = vadd.f32 %v4265, %v4295
      %v4305 = vadd.f32 %v4266, %v4295
      %v4306 = vadd.f32 %v4267, %v4295
      %v4307 = vadd.f32 %v4268, %v4295
      %v4308 = vadd.f32 %v4269, %v4295
      %v4309 = vadd.f32 %v4270, %v4295
      %v4310 = vadd.f32 %v4271, %v4295
      %v4311 = vadd.f32 %v4272, %v4295
      %v4312 = vadd.f32 %v4273, %v4295
      %v4313 = vadd.f32 %v4274, %v4295
      %v4314 = vadd.f32 %v4275, %v4295
      %v4315 = vadd.f32 %v4276, %v4295
      %v4316 = vadd.f32 %v4277, %v4295
      %v4317 = vadd.f32 %v4278, %v4295
      %v4318 = vadd.f32 %v4279, %v4295
      %v4319 = vadd.f32 %v4280, %v4295
      %v4320 = vadd.f32 %v4281, %v4295
      %v4321 = vadd.f32 %v4282, %v4295
      %v4322 = vadd.f32 %v4283, %v4295
      %v4323 = vadd.f32 %v4284, %v4295
      %v4324 = vadd.f32 %v4285, %v4295
      %v4325 = vadd.f32 %v4286, %v4295
      %v4326 = vadd.f32 %v4287, %v4295
      %v4327 = vadd.f32 %v4288, %v4295
      %v4328 = vadd.f32 %v4289, %v4295
      %4329 = vst.msk [vmem:[%s467] sm:$0xff] %vm547, %v4297
      %4330 = vst.msk [vmem:[%s467 + $0x8] sm:$0xff] %vm547, %v4298
      %4331 = vst.msk [vmem:[%s467 + $0x10] sm:$0xff] %vm547, %v4299
      %4332 = vst.msk [vmem:[%s467 + $0x18] sm:$0xff] %vm547, %v4300
      %4333 = vst.msk [vmem:[%s467 + $0x20] sm:$0xff] %vm547, %v4301
      %4334 = vst.msk [vmem:[%s467 + $0x28] sm:$0xff] %vm547, %v4302
      %4335 = vst.msk [vmem:[%s467 + $0x30] sm:$0xff] %vm547, %v4303
      %4336 = vst.msk [vmem:[%s467 + $0x38] sm:$0xff] %vm547, %v4304
      %4337 = vst.msk [vmem:[%s467 + $0x40] sm:$0xff] %vm547, %v4305
      %4338 = vst.msk [vmem:[%s467 + $0x48] sm:$0xff] %vm547, %v4306
      %4339 = vst.msk [vmem:[%s467 + $0x50] sm:$0xff] %vm547, %v4307
      %4340 = vst.msk [vmem:[%s467 + $0x58] sm:$0xff] %vm547, %v4308
      %4341 = vst.msk [vmem:[%s467 + $0x60] sm:$0xff] %vm547, %v4309
      %4342 = vst.msk [vmem:[%s467 + $0x68] sm:$0xff] %vm547, %v4310
      %4343 = vst.msk [vmem:[%s467 + $0x70] sm:$0xff] %vm547, %v4311
      %4344 = vst.msk [vmem:[%s467 + $0x78] sm:$0xff] %vm547, %v4312
      %4345 = vst.msk [vmem:[%s467 + $0x80] sm:$0xff] %vm547, %v4313
      %4346 = vst.msk [vmem:[%s467 + $0x88] sm:$0xff] %vm547, %v4314
      %4347 = vst.msk [vmem:[%s467 + $0x90] sm:$0xff] %vm547, %v4315
      %4348 = vst.msk [vmem:[%s467 + $0x98] sm:$0xff] %vm547, %v4316
      %4349 = vst.msk [vmem:[%s467 + $0xa0] sm:$0xff] %vm547, %v4317
      %4350 = vst.msk [vmem:[%s467 + $0xa8] sm:$0xff] %vm547, %v4318
      %4351 = vst.msk [vmem:[%s467 + $0xb0] sm:$0xff] %vm547, %v4319
      %4352 = vst.msk [vmem:[%s467 + $0xb8] sm:$0xff] %vm547, %v4320
      %4353 = vst.msk [vmem:[%s467 + $0xc0] sm:$0xff] %vm547, %v4321
      %4354 = vst.msk [vmem:[%s467 + $0xc8] sm:$0xff] %vm547, %v4322
      %4355 = vst.msk [vmem:[%s467 + $0xd0] sm:$0xff] %vm547, %v4323
      %4356 = vst.msk [vmem:[%s467 + $0xd8] sm:$0xff] %vm547, %v4324
      %4357 = vst.msk [vmem:[%s467 + $0xe0] sm:$0xff] %vm547, %v4325
      %4358 = vst.msk [vmem:[%s467 + $0xe8] sm:$0xff] %vm547, %v4326
      %4359 = vst.msk [vmem:[%s467 + $0xf0] sm:$0xff] %vm547, %v4327
      %4360 = vst.msk [vmem:[%s467 + $0xf8] sm:$0xff] %vm547, %v4328
      %p4361 = scmp.lt.s32.totalorder %s25, 1
      %s4362 = scalar_select %p4361, %s25, 1
      %s4363 = smul.addr %s4362, 32
      %s4364 = smul.addr %s4363, 8
      %s4365 = scalar_lea.vmem %s14, %s4364
      // Predicated region
      $region77: #{tpu_custom_call.1} parent=75 // pred_check
        %p4366 = pneg %p342
      $region78: #{tpu_custom_call.1} parent=75 // pred_check_branch
        %4368 = sbr.rel (%p4366) target = $region80
      $region79: #{tpu_custom_call.1} parent=75 // pred_region
        _
      $region80: #{tpu_custom_call.1} parent=75 // pred_fallthru
        _
    $region76: #{tpu_custom_call.1} parent=5 // pred_fallthru
      _
    %p4369 = scmp.le.s32.totalorder 2, %s20
    // Predicated region
    $region81: #{tpu_custom_call.1} parent=5 // pred_check
      %p4370 = pneg %p4369
    $region82: #{tpu_custom_call.1} parent=5 // pred_check_branch
      %4372 = sbr.rel (%p4370) target = $region84
    $region83: #{tpu_custom_call.1} parent=5 // pred_region
      %s4373 = ssub.s32 %s20, 2
      // Predicated region
      $region85: #{tpu_custom_call.1} parent=83 // pred_check
        %p4374 = pneg %p348
      $region86: #{tpu_custom_call.1} parent=83 // pred_check_branch
        %4376 = sbr.rel (%p4374) target = $region88
      $region87: #{tpu_custom_call.1} parent=83 // pred_region
        %p4377 = scmp.lt.s32.totalorder %s26, 1
        %s4378 = scalar_select %p4377, %s26, 1
        %s4379 = smul.addr %s4378, 32
        %s4380 = smul.addr %s4379, 8
        %s4381 = scalar_lea.vmem %s14, %s4380
      $region88: #{tpu_custom_call.1} parent=83 // pred_fallthru
        _
    $region84: #{tpu_custom_call.1} parent=5 // pred_fallthru
      _
  $region6: #{tpu_custom_call.1} parent=0 // loop_footer
    %s24 = sadd.s32 1, %s20
  $region7: #{tpu_custom_call.1} parent=0 // loop_footer_branch
    %19 = sbr.rel target = $region3
  $region8: #{tpu_custom_call.1} parent=0 // loop_exit
    _

</llo_original>
